<compile_context>
chip_gen: v7x
topology: tpu7x:2x2x1
jax: 0.10.0
libtpu: 0.0.40
codegen_flags: <defaults>
</compile_context>

<pallas_src>
import functools

import jax
import jax.numpy as jnp
from jax.experimental import pallas as pl
from jax.experimental.pallas import tpu as pltpu


def _encoder_layer_kernel(
    x_ref,
    wq_ref, wk_ref, wv_ref, wo_ref,
    ln1_g_ref, ln1_b_ref,
    w1_ref, b1_ref, w2_ref, b2_ref,
    ln2_g_ref, ln2_b_ref,
    out_ref, attn_ref,
    k_scratch, v_scratch,
    *, n_head, d_k, d_v, tq,
):
    f32 = jnp.float32
    qi = pl.program_id(1)
    L = x_ref.shape[1]

    # K / V projections for the full sequence, computed once per batch element.
    # (query-tile axis is "arbitrary", so qi == 0 runs first for each b and the
    # scratch stays resident for the remaining query tiles.)
    @pl.when(qi == 0)
    def _():
        x_full = x_ref[0]                                                    # (L, D)
        k_scratch[...] = jnp.dot(x_full, wk_ref[...], preferred_element_type=f32)
        v_scratch[...] = jnp.dot(x_full, wv_ref[...], preferred_element_type=f32)

    q_start = pl.multiple_of(qi * tq, tq)
    xq = x_ref[0, pl.ds(q_start, tq), :]                                     # (tq, D)

    # Q projection, scale applied once to the whole projection.
    inv_temp = 1.0 / (d_k ** 0.5)
    q_all = jnp.dot(xq, wq_ref[...], preferred_element_type=f32) * inv_temp  # (tq, H*dk)

    # Head-batched attention (heads leading -> single batched MXU contraction).
    qh = jnp.transpose(q_all.reshape(tq, n_head, d_k), (1, 0, 2))            # (H, tq, dk)
    kh = jnp.transpose(k_scratch[...].reshape(L, n_head, d_k), (1, 0, 2))    # (H, L, dk)
    vh = jnp.transpose(v_scratch[...].reshape(L, n_head, d_v), (1, 0, 2))    # (H, L, dv)

    scores = jnp.einsum("hqd,hkd->hqk", qh, kh, preferred_element_type=f32)  # (H, tq, L)
    scores = scores - jnp.max(scores, axis=-1, keepdims=True)
    e = jnp.exp(scores)
    attn_p = e * pl.reciprocal(jnp.sum(e, axis=-1, keepdims=True), approx=True)
    attn_ref[0] = attn_p.astype(attn_ref.dtype)

    ctx = jnp.einsum("hqk,hkd->hqd", attn_p, vh, preferred_element_type=f32)  # (H, tq, dv)
    ctx = jnp.transpose(ctx, (1, 0, 2)).reshape(tq, n_head * d_v)             # (tq, H*dv)

    proj = jnp.dot(ctx, wo_ref[...], preferred_element_type=f32)             # (tq, D)
    r1 = proj + xq                                                           # residual

    # LayerNorm 1 (eps = 1e-6), rsqrt on the EUP.
    mean1 = jnp.mean(r1, axis=-1, keepdims=True)
    c1 = r1 - mean1
    var1 = jnp.mean(c1 * c1, axis=-1, keepdims=True)
    y1 = c1 * jax.lax.rsqrt(var1 + 1e-6)
    y1 = y1 * ln1_g_ref[...] + ln1_b_ref[...]

    # Position-wise feed-forward.
    h1 = jnp.dot(y1, w1_ref[...], preferred_element_type=f32) + b1_ref[...]
    h1 = jnp.maximum(h1, 0.0)                                                # ReLU
    h2 = jnp.dot(h1, w2_ref[...], preferred_element_type=f32) + b2_ref[...]
    r2 = h2 + y1                                                             # residual

    # LayerNorm 2 (eps = 1e-6).
    mean2 = jnp.mean(r2, axis=-1, keepdims=True)
    c2 = r2 - mean2
    var2 = jnp.mean(c2 * c2, axis=-1, keepdims=True)
    y2 = c2 * jax.lax.rsqrt(var2 + 1e-6)
    y2 = y2 * ln2_g_ref[...] + ln2_b_ref[...]

    out_ref[0] = y2.astype(out_ref.dtype)


def _make_encoder_call(B, L, D, d_inner, n_head, d_k, d_v, tq, single_buffer_weights):
    n_q = L // tq
    kernel = functools.partial(
        _encoder_layer_kernel, n_head=n_head, d_k=d_k, d_v=d_v, tq=tq
    )

    # Constant-index weight/bias blocks never change across the grid:
    # request single-buffering to halve their VMEM footprint.
    wkw = {"pipeline_mode": pl.Buffered(1)} if single_buffer_weights else {}

    def wspec(shape):
        return pl.BlockSpec(shape, lambda b, q: (0, 0), **wkw)

    grid_spec = pltpu.PrefetchScalarGridSpec(
        num_scalar_prefetch=0,
        grid=(B, n_q),
        in_specs=[
            pl.BlockSpec((1, L, D), lambda b, q: (b, 0, 0)),   # x (full seq per batch)
            wspec((D, n_head * d_k)),                          # wq^T
            wspec((D, n_head * d_k)),                          # wk^T
            wspec((D, n_head * d_v)),                          # wv^T
            wspec((n_head * d_v, D)),                          # wo^T (fc)
            wspec((1, D)),                                     # ln1 gamma
            wspec((1, D)),                                     # ln1 beta
            wspec((D, d_inner)),                               # w1^T
            wspec((1, d_inner)),                               # b1
            wspec((d_inner, D)),                               # w2^T
            wspec((1, D)),                                     # b2
            wspec((1, D)),                                     # ln2 gamma
            wspec((1, D)),                                     # ln2 beta
        ],
        out_specs=[
            pl.BlockSpec((1, tq, D), lambda b, q: (b, q, 0)),            # enc_output
            pl.BlockSpec((1, n_head, tq, L), lambda b, q: (b, 0, q, 0)),  # attn
        ],
        scratch_shapes=[
            pltpu.VMEM((L, n_head * d_k), jnp.float32),        # K projection
            pltpu.VMEM((L, n_head * d_v), jnp.float32),        # V projection
        ],
    )

    # Explicit scoped-VMEM cap: weights + activation blocks with headroom,
    # clipped to stay within the smallest physical VMEM (v7x: 64 MiB).
    w_bytes = 4 * (2 * D * n_head * d_k + 2 * D * n_head * d_v
                   + 2 * D * d_inner + d_inner + 6 * D)
    a_bytes = 4 * (2 * L * D + 2 * tq * D + 4 * n_head * tq * L
                   + L * n_head * (d_k + d_v) + 2 * tq * d_inner)
    vmem_limit = int(min(64 * 1024 * 1024,
                         max(8 * 1024 * 1024, 2 * (w_bytes + a_bytes))))

    return pl.pallas_call(
        kernel,
        grid_spec=grid_spec,
        out_shape=(
            jax.ShapeDtypeStruct((B, L, D), jnp.float32),
            jax.ShapeDtypeStruct((B, n_head, L, L), jnp.float32),
        ),
        compiler_params=pltpu.CompilerParams(
            dimension_semantics=("parallel", "arbitrary"),
            vmem_limit_bytes=vmem_limit,
        ),
    )


def encoder_layer_pallas(x, params, *, n_head, d_k, d_v):
    """x: (B, L, D) float32.  params: dict of weights (PyTorch Linear layout)."""
    B, L, D = x.shape
    d_inner = params["w1"].shape[0]

    # Query-tile size: lane/sublane friendly for long sequences, full L otherwise.
    tq = 128 if (L > 128 and L % 128 == 0) else L

    # Pre-transpose weights once outside the kernel (x @ W, no in-kernel .T).
    args = (
        x,
        params["wq"].T, params["wk"].T, params["wv"].T, params["wo"].T,
        params["ln1_g"], params["ln1_b"],
        params["w1"].T, params["b1"], params["w2"].T, params["b2"],
        params["ln2_g"], params["ln2_b"],
    )

    try:
        call = _make_encoder_call(B, L, D, d_inner, n_head, d_k, d_v, tq,
                                  single_buffer_weights=True)
        return jax.block_until_ready(call(*args))
    except Exception:
        # pipeline_mode=pl.Buffered(1) not supported by this jax build: fall back
        # to default double-buffered weight blocks (identical math).
        call = _make_encoder_call(B, L, D, d_inner, n_head, d_k, d_v, tq,
                                  single_buffer_weights=False)
        return call(*args)


def encoder_layer_ref(x, params, *, n_head, d_k, d_v):
    """Plain-JAX reference mirroring the PyTorch forward (eval mode)."""
    B, L, D = x.shape
    hp = jax.lax.Precision.HIGHEST

    q = jnp.einsum("bld,ed->ble", x, params["wq"], precision=hp).reshape(B, L, n_head, d_k)
    k = jnp.einsum("bld,ed->ble", x, params["wk"], precision=hp).reshape(B, L, n_head, d_k)
    v = jnp.einsum("bld,ed->ble", x, params["wv"], precision=hp).reshape(B, L, n_head, d_v)
    q, k, v = (t.transpose(0, 2, 1, 3) for t in (q, k, v))  # (B, H, L, d)

    scores = jnp.einsum("bhqd,bhkd->bhqk", q / (d_k ** 0.5), k, precision=hp)
    attn = jax.nn.softmax(scores, axis=-1)
    ctx = jnp.einsum("bhqk,bhkd->bhqd", attn, v, precision=hp)
    ctx = ctx.transpose(0, 2, 1, 3).reshape(B, L, n_head * d_v)

    proj = jnp.einsum("ble,de->bld", ctx, params["wo"], precision=hp)
    r1 = proj + x
    m = r1.mean(-1, keepdims=True)
    var = ((r1 - m) ** 2).mean(-1, keepdims=True)
    y1 = (r1 - m) / jnp.sqrt(var + 1e-6) * params["ln1_g"][0] + params["ln1_b"][0]

    h1 = jax.nn.relu(jnp.einsum("bld,ed->ble", y1, params["w1"], precision=hp) + params["b1"][0])
    h2 = jnp.einsum("ble,de->bld", h1, params["w2"], precision=hp) + params["b2"][0]
    r2 = h2 + y1
    m2 = r2.mean(-1, keepdims=True)
    var2 = ((r2 - m2) ** 2).mean(-1, keepdims=True)
    y2 = (r2 - m2) / jnp.sqrt(var2 + 1e-6) * params["ln2_g"][0] + params["ln2_b"][0]
    return y2, attn


if __name__ == "__main__":
    # Small, module-consistent sizes (correctness demo; perf shapes would use
    # D/L multiples of 128).
    B, L = 2, 8
    d_model, d_inner = 32, 64
    n_head, d_k, d_v = 4, 8, 8

    key = jax.random.PRNGKey(0)
    keys = jax.random.split(key, 8)

    def init(k, shape, fan_in):
        return (jax.random.normal(k, shape, jnp.float32) / jnp.sqrt(fan_in)).astype(jnp.float32)

    params = {
        "wq": init(keys[0], (n_head * d_k, d_model), d_model),
        "wk": init(keys[1], (n_head * d_k, d_model), d_model),
        "wv": init(keys[2], (n_head * d_v, d_model), d_model),
        "wo": init(keys[3], (d_model, n_head * d_v), n_head * d_v),
        "ln1_g": jnp.ones((1, d_model), jnp.float32),
        "ln1_b": jnp.zeros((1, d_model), jnp.float32),
        "w1": init(keys[4], (d_inner, d_model), d_model),
        "b1": 0.01 * jnp.ones((1, d_inner), jnp.float32),
        "w2": init(keys[5], (d_model, d_inner), d_inner),
        "b2": 0.01 * jnp.ones((1, d_model), jnp.float32),
        "ln2_g": jnp.ones((1, d_model), jnp.float32),
        "ln2_b": jnp.zeros((1, d_model), jnp.float32),
    }

    x = jax.random.normal(keys[6], (B, L, d_model), jnp.float32)

    out, attn = encoder_layer_pallas(x, params, n_head=n_head, d_k=d_k, d_v=d_v)
    out = jax.block_until_ready(out)
    attn = jax.block_until_ready(attn)

    ref_out, ref_attn = encoder_layer_ref(x, params, n_head=n_head, d_k=d_k, d_v=d_v)

    assert out.shape == (B, L, d_model)
    assert attn.shape == (B, n_head, L, L)
    assert jnp.allclose(attn, ref_attn, atol=2e-3, rtol=1e-2), "attn mismatch"
    assert jnp.allclose(out, ref_out, atol=2e-3, rtol=1e-2), "enc_output mismatch"

    print("KERNEL_OK")
</pallas_src>

<mosaic_0001>
module attributes {stable_mosaic.version = 11 : i64} {
  func.func @_encoder_layer_kernel(%arg0: i32, %arg1: i32, %arg2: memref<1x8x32xf32, #tpu.memory_space<vmem>>, %arg3: memref<32x32xf32, #tpu.memory_space<vmem>>, %arg4: memref<32x32xf32, #tpu.memory_space<vmem>>, %arg5: memref<32x32xf32, #tpu.memory_space<vmem>>, %arg6: memref<32x32xf32, #tpu.memory_space<vmem>>, %arg7: memref<1x32xf32, #tpu.memory_space<vmem>>, %arg8: memref<1x32xf32, #tpu.memory_space<vmem>>, %arg9: memref<32x64xf32, #tpu.memory_space<vmem>>, %arg10: memref<1x64xf32, #tpu.memory_space<vmem>>, %arg11: memref<64x32xf32, #tpu.memory_space<vmem>>, %arg12: memref<1x32xf32, #tpu.memory_space<vmem>>, %arg13: memref<1x32xf32, #tpu.memory_space<vmem>>, %arg14: memref<1x32xf32, #tpu.memory_space<vmem>>, %arg15: memref<1x8x32xf32, #tpu.memory_space<vmem>>, %arg16: memref<1x4x8x8xf32, #tpu.memory_space<vmem>>, %arg17: memref<8x32xf32, #tpu.memory_space<vmem>>, %arg18: memref<8x32xf32, #tpu.memory_space<vmem>>) attributes {dimension_semantics = [#tpu.dimension_semantics<parallel>, #tpu.dimension_semantics<arbitrary>], iteration_bounds = array<i64: 2, 1>, scalar_prefetch = 0 : i64, scratch_operands = 2 : i64, tpu.core_type = #tpu.core_type<tc>, window_params = [{transform_indices = @transform_0, window_bounds = array<i64: 1, 8, 32>}, {pipeline_mode = #tpu.pipeline_mode<synchronous>, transform_indices = @transform_1, window_bounds = array<i64: 32, 32>}, {pipeline_mode = #tpu.pipeline_mode<synchronous>, transform_indices = @transform_2, window_bounds = array<i64: 32, 32>}, {pipeline_mode = #tpu.pipeline_mode<synchronous>, transform_indices = @transform_3, window_bounds = array<i64: 32, 32>}, {pipeline_mode = #tpu.pipeline_mode<synchronous>, transform_indices = @transform_4, window_bounds = array<i64: 32, 32>}, {pipeline_mode = #tpu.pipeline_mode<synchronous>, transform_indices = @transform_5, window_bounds = array<i64: 1, 32>}, {pipeline_mode = #tpu.pipeline_mode<synchronous>, transform_indices = @transform_6, window_bounds = array<i64: 1, 32>}, {pipeline_mode = #tpu.pipeline_mode<synchronous>, transform_indices = @transform_7, window_bounds = array<i64: 32, 64>}, {pipeline_mode = #tpu.pipeline_mode<synchronous>, transform_indices = @transform_8, window_bounds = array<i64: 1, 64>}, {pipeline_mode = #tpu.pipeline_mode<synchronous>, transform_indices = @transform_9, window_bounds = array<i64: 64, 32>}, {pipeline_mode = #tpu.pipeline_mode<synchronous>, transform_indices = @transform_10, window_bounds = array<i64: 1, 32>}, {pipeline_mode = #tpu.pipeline_mode<synchronous>, transform_indices = @transform_11, window_bounds = array<i64: 1, 32>}, {pipeline_mode = #tpu.pipeline_mode<synchronous>, transform_indices = @transform_12, window_bounds = array<i64: 1, 32>}, {transform_indices = @transform_13, window_bounds = array<i64: 1, 8, 32>}, {transform_indices = @transform_14, window_bounds = array<i64: 1, 4, 8, 8>}]} {
    %c0_i32 = arith.constant 0 : i32
    %0 = arith.cmpi eq, %arg1, %c0_i32 : i32
    %1 = arith.extui %0 : i1 to i32
    %c0_i32_0 = arith.constant 0 : i32
    %2 = arith.cmpi ne, %1, %c0_i32_0 : i32
    scf.if %2 {
      %c0_52 = arith.constant 0 : index
      %c0_53 = arith.constant 0 : index
      %c0_54 = arith.constant 0 : index
      %100 = vector.load %arg2[%c0_52, %c0_53, %c0_54] : memref<1x8x32xf32, #tpu.memory_space<vmem>>, vector<1x8x32xf32>
      %101 = vector.shape_cast %100 : vector<1x8x32xf32> to vector<8x32xf32>
      %c0_55 = arith.constant 0 : index
      %c0_56 = arith.constant 0 : index
      %102 = vector.load %arg4[%c0_55, %c0_56] : memref<32x32xf32, #tpu.memory_space<vmem>>, vector<32x32xf32>
      %cst_57 = arith.constant dense<0.000000e+00> : vector<8x32xf32>
      %103 = tpu.matmul %101, %102, %cst_57 {dimension_numbers = #tpu.dot_dimension_numbers<[1], [0], [0], [1], [0, 0, 1, 1], [], []>} : vector<8x32xf32>, vector<32x32xf32>, vector<8x32xf32> -> vector<8x32xf32>
      %c0_58 = arith.constant 0 : index
      %c0_59 = arith.constant 0 : index
      %104 = vector.load %arg17[%c0_58, %c0_59] : memref<8x32xf32, #tpu.memory_space<vmem>>, vector<8x32xf32>
      tpu.vector_store %arg17[%c0_58, %c0_59], %103 {strides = array<i32>} : memref<8x32xf32, #tpu.memory_space<vmem>>, vector<8x32xf32>,
      %c0_60 = arith.constant 0 : index
      %c0_61 = arith.constant 0 : index
      %105 = vector.load %arg5[%c0_60, %c0_61] : memref<32x32xf32, #tpu.memory_space<vmem>>, vector<32x32xf32>
      %cst_62 = arith.constant dense<0.000000e+00> : vector<8x32xf32>
      %106 = tpu.matmul %101, %105, %cst_62 {dimension_numbers = #tpu.dot_dimension_numbers<[1], [0], [0], [1], [0, 0, 1, 1], [], []>} : vector<8x32xf32>, vector<32x32xf32>, vector<8x32xf32> -> vector<8x32xf32>
      %c0_63 = arith.constant 0 : index
      %c0_64 = arith.constant 0 : index
      %107 = vector.load %arg18[%c0_63, %c0_64] : memref<8x32xf32, #tpu.memory_space<vmem>>, vector<8x32xf32>
      tpu.vector_store %arg18[%c0_63, %c0_64], %106 {strides = array<i32>} : memref<8x32xf32, #tpu.memory_space<vmem>>, vector<8x32xf32>,
    } else {
    }
    %c8_i32 = arith.constant 8 : i32
    %3 = arith.muli %arg1, %c8_i32 : i32
    %4 = tpu.assume_multiple %3, 8 : i32
    %c0 = arith.constant 0 : index
    %5 = arith.index_cast %4 : i32 to index
    %c0_1 = arith.constant 0 : index
    %6 = vector.load %arg2[%c0, %5, %c0_1] : memref<1x8x32xf32, #tpu.memory_space<vmem>>, vector<1x8x32xf32>
    %7 = vector.shape_cast %6 : vector<1x8x32xf32> to vector<8x32xf32>
    %c0_2 = arith.constant 0 : index
    %c0_3 = arith.constant 0 : index
    %8 = vector.load %arg3[%c0_2, %c0_3] : memref<32x32xf32, #tpu.memory_space<vmem>>, vector<32x32xf32>
    %cst = arith.constant dense<0.000000e+00> : vector<8x32xf32>
    %9 = tpu.matmul %7, %8, %cst {dimension_numbers = #tpu.dot_dimension_numbers<[1], [0], [0], [1], [0, 0, 1, 1], [], []>} : vector<8x32xf32>, vector<32x32xf32>, vector<8x32xf32> -> vector<8x32xf32>
    %cst_4 = arith.constant 0.353553385 : f32
    %10 = vector.broadcast %cst_4 : f32 to vector<8x32xf32>
    %11 = arith.mulf %9, %10 : vector<8x32xf32>
    %12 = vector.shape_cast %11 : vector<8x32xf32> to vector<8x4x8xf32>
    %13 = tpu.transpose %12, [1, 0, 2] : vector<8x4x8xf32> -> vector<4x8x8xf32>
    %c0_5 = arith.constant 0 : index
    %c0_6 = arith.constant 0 : index
    %14 = vector.load %arg17[%c0_5, %c0_6] : memref<8x32xf32, #tpu.memory_space<vmem>>, vector<8x32xf32>
    %15 = vector.shape_cast %14 : vector<8x32xf32> to vector<8x4x8xf32>
    %16 = tpu.transpose %15, [1, 0, 2] : vector<8x4x8xf32> -> vector<4x8x8xf32>
    %c0_7 = arith.constant 0 : index
    %c0_8 = arith.constant 0 : index
    %17 = vector.load %arg18[%c0_7, %c0_8] : memref<8x32xf32, #tpu.memory_space<vmem>>, vector<8x32xf32>
    %18 = vector.shape_cast %17 : vector<8x32xf32> to vector<8x4x8xf32>
    %19 = tpu.transpose %18, [1, 0, 2] : vector<8x4x8xf32> -> vector<4x8x8xf32>
    "tpu.trace_start"() <{level = 10 : i32, message = "hqd,hkd->hqk"}> : () -> ()
    %cst_9 = arith.constant dense<0.000000e+00> : vector<4x8x8xf32>
    %20 = tpu.matmul %13, %16, %cst_9 {dimension_numbers = #tpu.dot_dimension_numbers<[2], [2], [1], [1], [0, 0, 0, 1, 1, 1], [0], [0]>} : vector<4x8x8xf32>, vector<4x8x8xf32>, vector<4x8x8xf32> -> vector<4x8x8xf32>
    "tpu.trace_stop"() : () -> ()
    %cst_10 = arith.constant dense<0xFF800000> : vector<4x8xf32>
    %21 = vector.multi_reduction <maximumf>, %20, %cst_10 [2] : vector<4x8x8xf32> to vector<4x8xf32>
    %22 = vector.shape_cast %21 : vector<4x8xf32> to vector<4x8x1xf32>
    %23 = vector.broadcast %22 : vector<4x8x1xf32> to vector<4x8x8xf32>
    %24 = arith.subf %20, %23 : vector<4x8x8xf32>
    %25 = math.exp %24 : vector<4x8x8xf32>
    %cst_11 = arith.constant dense<0.000000e+00> : vector<4x8xf32>
    %26 = vector.multi_reduction <add>, %25, %cst_11 [2] : vector<4x8x8xf32> to vector<4x8xf32>
    %27 = vector.shape_cast %26 : vector<4x8xf32> to vector<4x8x1xf32>
    %28 = tpu.reciprocal %27 {approx = true} : vector<4x8x1xf32> -> vector<4x8x1xf32>
    %29 = vector.broadcast %28 : vector<4x8x1xf32> to vector<4x8x8xf32>
    %30 = arith.mulf %25, %29 : vector<4x8x8xf32>
    %c0_12 = arith.constant 0 : index
    %c0_13 = arith.constant 0 : index
    %c0_14 = arith.constant 0 : index
    %c0_15 = arith.constant 0 : index
    %31 = vector.load %arg16[%c0_12, %c0_13, %c0_14, %c0_15] : memref<1x4x8x8xf32, #tpu.memory_space<vmem>>, vector<1x4x8x8xf32>
    %32 = vector.shape_cast %31 : vector<1x4x8x8xf32> to vector<4x8x8xf32>
    %33 = vector.shape_cast %30 : vector<4x8x8xf32> to vector<1x4x8x8xf32>
    tpu.vector_store %arg16[%c0_12, %c0_13, %c0_14, %c0_15], %33 {strides = array<i32>} : memref<1x4x8x8xf32, #tpu.memory_space<vmem>>, vector<1x4x8x8xf32>,
    "tpu.trace_start"() <{level = 10 : i32, message = "hqk,hkd->hqd"}> : () -> ()
    %cst_16 = arith.constant dense<0.000000e+00> : vector<4x8x8xf32>
    %34 = tpu.matmul %30, %19, %cst_16 {dimension_numbers = #tpu.dot_dimension_numbers<[2], [1], [1], [2], [0, 0, 0, 1, 1, 2], [0], [0]>} : vector<4x8x8xf32>, vector<4x8x8xf32>, vector<4x8x8xf32> -> vector<4x8x8xf32>
    "tpu.trace_stop"() : () -> ()
    %35 = tpu.transpose %34, [1, 0, 2] : vector<4x8x8xf32> -> vector<8x4x8xf32>
    %36 = vector.shape_cast %35 : vector<8x4x8xf32> to vector<8x32xf32>
    %c0_17 = arith.constant 0 : index
    %c0_18 = arith.constant 0 : index
    %37 = vector.load %arg6[%c0_17, %c0_18] : memref<32x32xf32, #tpu.memory_space<vmem>>, vector<32x32xf32>
    %cst_19 = arith.constant dense<0.000000e+00> : vector<8x32xf32>
    %38 = tpu.matmul %36, %37, %cst_19 {dimension_numbers = #tpu.dot_dimension_numbers<[1], [0], [0], [1], [0, 0, 1, 1], [], []>} : vector<8x32xf32>, vector<32x32xf32>, vector<8x32xf32> -> vector<8x32xf32>
    %39 = arith.addf %38, %7 : vector<8x32xf32>
    %cst_20 = arith.constant dense<0.000000e+00> : vector<8xf32>
    %40 = vector.multi_reduction <add>, %39, %cst_20 [1] : vector<8x32xf32> to vector<8xf32>
    %41 = vector.shape_cast %40 : vector<8xf32> to vector<8x1xf32>
    %cst_21 = arith.constant 3.200000e+01 : f32
    %42 = vector.broadcast %cst_21 : f32 to vector<8x1xf32>
    %43 = arith.divf %41, %42 : vector<8x1xf32>
    %44 = vector.broadcast %43 : vector<8x1xf32> to vector<8x32xf32>
    %45 = arith.subf %39, %44 : vector<8x32xf32>
    %46 = arith.mulf %45, %45 : vector<8x32xf32>
    %cst_22 = arith.constant dense<0.000000e+00> : vector<8xf32>
    %47 = vector.multi_reduction <add>, %46, %cst_22 [1] : vector<8x32xf32> to vector<8xf32>
    %48 = vector.shape_cast %47 : vector<8xf32> to vector<8x1xf32>
    %cst_23 = arith.constant 3.200000e+01 : f32
    %49 = vector.broadcast %cst_23 : f32 to vector<8x1xf32>
    %50 = arith.divf %48, %49 : vector<8x1xf32>
    %cst_24 = arith.constant 9.99999997E-7 : f32
    %51 = vector.broadcast %cst_24 : f32 to vector<8x1xf32>
    %52 = arith.addf %50, %51 : vector<8x1xf32>
    %53 = math.rsqrt %52 : vector<8x1xf32>
    %54 = vector.broadcast %53 : vector<8x1xf32> to vector<8x32xf32>
    %55 = arith.mulf %45, %54 : vector<8x32xf32>
    %c0_25 = arith.constant 0 : index
    %c0_26 = arith.constant 0 : index
    %56 = vector.load %arg7[%c0_25, %c0_26] : memref<1x32xf32, #tpu.memory_space<vmem>>, vector<1x32xf32>
    %57 = vector.broadcast %56 : vector<1x32xf32> to vector<8x32xf32>
    %58 = arith.mulf %55, %57 : vector<8x32xf32>
    %c0_27 = arith.constant 0 : index
    %c0_28 = arith.constant 0 : index
    %59 = vector.load %arg8[%c0_27, %c0_28] : memref<1x32xf32, #tpu.memory_space<vmem>>, vector<1x32xf32>
    %60 = vector.broadcast %59 : vector<1x32xf32> to vector<8x32xf32>
    %61 = arith.addf %58, %60 : vector<8x32xf32>
    %c0_29 = arith.constant 0 : index
    %c0_30 = arith.constant 0 : index
    %62 = vector.load %arg9[%c0_29, %c0_30] : memref<32x64xf32, #tpu.memory_space<vmem>>, vector<32x64xf32>
    %cst_31 = arith.constant dense<0.000000e+00> : vector<8x64xf32>
    %63 = tpu.matmul %61, %62, %cst_31 {dimension_numbers = #tpu.dot_dimension_numbers<[1], [0], [0], [1], [0, 0, 1, 1], [], []>} : vector<8x32xf32>, vector<32x64xf32>, vector<8x64xf32> -> vector<8x64xf32>
    %c0_32 = arith.constant 0 : index
    %c0_33 = arith.constant 0 : index
    %64 = vector.load %arg10[%c0_32, %c0_33] : memref<1x64xf32, #tpu.memory_space<vmem>>, vector<1x64xf32>
    %65 = vector.broadcast %64 : vector<1x64xf32> to vector<8x64xf32>
    %66 = arith.addf %63, %65 : vector<8x64xf32>
    %cst_34 = arith.constant 0.000000e+00 : f32
    %67 = vector.broadcast %cst_34 : f32 to vector<8x64xf32>
    %68 = arith.maximumf %66, %67 : vector<8x64xf32>
    %c0_35 = arith.constant 0 : index
    %c0_36 = arith.constant 0 : index
    %69 = vector.load %arg11[%c0_35, %c0_36] : memref<64x32xf32, #tpu.memory_space<vmem>>, vector<64x32xf32>
    %cst_37 = arith.constant dense<0.000000e+00> : vector<8x32xf32>
    %70 = tpu.matmul %68, %69, %cst_37 {dimension_numbers = #tpu.dot_dimension_numbers<[1], [0], [0], [1], [0, 0, 1, 1], [], []>} : vector<8x64xf32>, vector<64x32xf32>, vector<8x32xf32> -> vector<8x32xf32>
    %c0_38 = arith.constant 0 : index
    %c0_39 = arith.constant 0 : index
    %71 = vector.load %arg12[%c0_38, %c0_39] : memref<1x32xf32, #tpu.memory_space<vmem>>, vector<1x32xf32>
    %72 = vector.broadcast %71 : vector<1x32xf32> to vector<8x32xf32>
    %73 = arith.addf %70, %72 : vector<8x32xf32>
    %74 = arith.addf %73, %61 : vector<8x32xf32>
    %cst_40 = arith.constant dense<0.000000e+00> : vector<8xf32>
    %75 = vector.multi_reduction <add>, %74, %cst_40 [1] : vector<8x32xf32> to vector<8xf32>
    %76 = vector.shape_cast %75 : vector<8xf32> to vector<8x1xf32>
    %cst_41 = arith.constant 3.200000e+01 : f32
    %77 = vector.broadcast %cst_41 : f32 to vector<8x1xf32>
    %78 = arith.divf %76, %77 : vector<8x1xf32>
    %79 = vector.broadcast %78 : vector<8x1xf32> to vector<8x32xf32>
    %80 = arith.subf %74, %79 : vector<8x32xf32>
    %81 = arith.mulf %80, %80 : vector<8x32xf32>
    %cst_42 = arith.constant dense<0.000000e+00> : vector<8xf32>
    %82 = vector.multi_reduction <add>, %81, %cst_42 [1] : vector<8x32xf32> to vector<8xf32>
    %83 = vector.shape_cast %82 : vector<8xf32> to vector<8x1xf32>
    %cst_43 = arith.constant 3.200000e+01 : f32
    %84 = vector.broadcast %cst_43 : f32 to vector<8x1xf32>
    %85 = arith.divf %83, %84 : vector<8x1xf32>
    %cst_44 = arith.constant 9.99999997E-7 : f32
    %86 = vector.broadcast %cst_44 : f32 to vector<8x1xf32>
    %87 = arith.addf %85, %86 : vector<8x1xf32>
    %88 = math.rsqrt %87 : vector<8x1xf32>
    %89 = vector.broadcast %88 : vector<8x1xf32> to vector<8x32xf32>
    %90 = arith.mulf %80, %89 : vector<8x32xf32>
    %c0_45 = arith.constant 0 : index
    %c0_46 = arith.constant 0 : index
    %91 = vector.load %arg13[%c0_45, %c0_46] : memref<1x32xf32, #tpu.memory_space<vmem>>, vector<1x32xf32>
    %92 = vector.broadcast %91 : vector<1x32xf32> to vector<8x32xf32>
    %93 = arith.mulf %90, %92 : vector<8x32xf32>
    %c0_47 = arith.constant 0 : index
    %c0_48 = arith.constant 0 : index
    %94 = vector.load %arg14[%c0_47, %c0_48] : memref<1x32xf32, #tpu.memory_space<vmem>>, vector<1x32xf32>
    %95 = vector.broadcast %94 : vector<1x32xf32> to vector<8x32xf32>
    %96 = arith.addf %93, %95 : vector<8x32xf32>
    %c0_49 = arith.constant 0 : index
    %c0_50 = arith.constant 0 : index
    %c0_51 = arith.constant 0 : index
    %97 = vector.load %arg15[%c0_49, %c0_50, %c0_51] : memref<1x8x32xf32, #tpu.memory_space<vmem>>, vector<1x8x32xf32>
    %98 = vector.shape_cast %97 : vector<1x8x32xf32> to vector<8x32xf32>
    %99 = vector.shape_cast %96 : vector<8x32xf32> to vector<1x8x32xf32>
    tpu.vector_store %arg15[%c0_49, %c0_50, %c0_51], %99 {strides = array<i32>} : memref<1x8x32xf32, #tpu.memory_space<vmem>>, vector<1x8x32xf32>,
    return
  }
  func.func @transform_0(%arg0: i32, %arg1: i32) -> (i32, i32, i32) {
    %c0_i32 = arith.constant 0 : i32
    %c0_i32_0 = arith.constant 0 : i32
    %c0_i32_1 = arith.constant 0 : i32
    return %arg0, %c0_i32, %c0_i32_0 : i32, i32, i32
  }
  func.func @transform_1(%arg0: i32, %arg1: i32) -> (i32, i32) {
    %c0_i32 = arith.constant 0 : i32
    %c0_i32_0 = arith.constant 0 : i32
    %c0_i32_1 = arith.constant 0 : i32
    return %c0_i32, %c0_i32_0 : i32, i32
  }
  func.func @transform_2(%arg0: i32, %arg1: i32) -> (i32, i32) {
    %c0_i32 = arith.constant 0 : i32
    %c0_i32_0 = arith.constant 0 : i32
    %c0_i32_1 = arith.constant 0 : i32
    return %c0_i32, %c0_i32_0 : i32, i32
  }
  func.func @transform_3(%arg0: i32, %arg1: i32) -> (i32, i32) {
    %c0_i32 = arith.constant 0 : i32
    %c0_i32_0 = arith.constant 0 : i32
    %c0_i32_1 = arith.constant 0 : i32
    return %c0_i32, %c0_i32_0 : i32, i32
  }
  func.func @transform_4(%arg0: i32, %arg1: i32) -> (i32, i32) {
    %c0_i32 = arith.constant 0 : i32
    %c0_i32_0 = arith.constant 0 : i32
    %c0_i32_1 = arith.constant 0 : i32
    return %c0_i32, %c0_i32_0 : i32, i32
  }
  func.func @transform_5(%arg0: i32, %arg1: i32) -> (i32, i32) {
    %c0_i32 = arith.constant 0 : i32
    %c0_i32_0 = arith.constant 0 : i32
    %c0_i32_1 = arith.constant 0 : i32
    return %c0_i32, %c0_i32_0 : i32, i32
  }
  func.func @transform_6(%arg0: i32, %arg1: i32) -> (i32, i32) {
    %c0_i32 = arith.constant 0 : i32
    %c0_i32_0 = arith.constant 0 : i32
    %c0_i32_1 = arith.constant 0 : i32
    return %c0_i32, %c0_i32_0 : i32, i32
  }
  func.func @transform_7(%arg0: i32, %arg1: i32) -> (i32, i32) {
    %c0_i32 = arith.constant 0 : i32
    %c0_i32_0 = arith.constant 0 : i32
    %c0_i32_1 = arith.constant 0 : i32
    return %c0_i32, %c0_i32_0 : i32, i32
  }
  func.func @transform_8(%arg0: i32, %arg1: i32) -> (i32, i32) {
    %c0_i32 = arith.constant 0 : i32
    %c0_i32_0 = arith.constant 0 : i32
    %c0_i32_1 = arith.constant 0 : i32
    return %c0_i32, %c0_i32_0 : i32, i32
  }
  func.func @transform_9(%arg0: i32, %arg1: i32) -> (i32, i32) {
    %c0_i32 = arith.constant 0 : i32
    %c0_i32_0 = arith.constant 0 : i32
    %c0_i32_1 = arith.constant 0 : i32
    return %c0_i32, %c0_i32_0 : i32, i32
  }
  func.func @transform_10(%arg0: i32, %arg1: i32) -> (i32, i32) {
    %c0_i32 = arith.constant 0 : i32
    %c0_i32_0 = arith.constant 0 : i32
    %c0_i32_1 = arith.constant 0 : i32
    return %c0_i32, %c0_i32_0 : i32, i32
  }
  func.func @transform_11(%arg0: i32, %arg1: i32) -> (i32, i32) {
    %c0_i32 = arith.constant 0 : i32
    %c0_i32_0 = arith.constant 0 : i32
    %c0_i32_1 = arith.constant 0 : i32
    return %c0_i32, %c0_i32_0 : i32, i32
  }
  func.func @transform_12(%arg0: i32, %arg1: i32) -> (i32, i32) {
    %c0_i32 = arith.constant 0 : i32
    %c0_i32_0 = arith.constant 0 : i32
    %c0_i32_1 = arith.constant 0 : i32
    return %c0_i32, %c0_i32_0 : i32, i32
  }
  func.func @transform_13(%arg0: i32, %arg1: i32) -> (i32, i32, i32) {
    %c0_i32 = arith.constant 0 : i32
    %c0_i32_0 = arith.constant 0 : i32
    return %arg0, %arg1, %c0_i32 : i32, i32, i32
  }
  func.func @transform_14(%arg0: i32, %arg1: i32) -> (i32, i32, i32, i32) {
    %c0_i32 = arith.constant 0 : i32
    %c0_i32_0 = arith.constant 0 : i32
    %c0_i32_1 = arith.constant 0 : i32
    return %arg0, %c0_i32, %arg1, %c0_i32_0 : i32, i32, i32, i32
  }
}

module attributes {stable_mosaic.version = 11 : i64} {
  func.func @_encoder_layer_kernel(%arg0: i32, %arg1: i32, %arg2: memref<1x8x32xf32, #tpu.memory_space<vmem>>, %arg3: memref<32x32xf32, #tpu.memory_space<vmem>>, %arg4: memref<32x32xf32, #tpu.memory_space<vmem>>, %arg5: memref<32x32xf32, #tpu.memory_space<vmem>>, %arg6: memref<32x32xf32, #tpu.memory_space<vmem>>, %arg7: memref<1x32xf32, #tpu.memory_space<vmem>>, %arg8: memref<1x32xf32, #tpu.memory_space<vmem>>, %arg9: memref<32x64xf32, #tpu.memory_space<vmem>>, %arg10: memref<1x64xf32, #tpu.memory_space<vmem>>, %arg11: memref<64x32xf32, #tpu.memory_space<vmem>>, %arg12: memref<1x32xf32, #tpu.memory_space<vmem>>, %arg13: memref<1x32xf32, #tpu.memory_space<vmem>>, %arg14: memref<1x32xf32, #tpu.memory_space<vmem>>, %arg15: memref<1x8x32xf32, #tpu.memory_space<vmem>>, %arg16: memref<1x4x8x8xf32, #tpu.memory_space<vmem>>, %arg17: memref<8x32xf32, #tpu.memory_space<vmem>>, %arg18: memref<8x32xf32, #tpu.memory_space<vmem>>) attributes {dimension_semantics = [#tpu.dimension_semantics<parallel>, #tpu.dimension_semantics<arbitrary>], iteration_bounds = array<i64: 2, 1>, scalar_prefetch = 0 : i64, scratch_operands = 2 : i64, tpu.core_type = #tpu.core_type<tc>, window_params = [{transform_indices = @transform_0, window_bounds = array<i64: 1, 8, 32>}, {pipeline_mode = #tpu.pipeline_mode<synchronous>, transform_indices = @transform_1, window_bounds = array<i64: 32, 32>}, {pipeline_mode = #tpu.pipeline_mode<synchronous>, transform_indices = @transform_2, window_bounds = array<i64: 32, 32>}, {pipeline_mode = #tpu.pipeline_mode<synchronous>, transform_indices = @transform_3, window_bounds = array<i64: 32, 32>}, {pipeline_mode = #tpu.pipeline_mode<synchronous>, transform_indices = @transform_4, window_bounds = array<i64: 32, 32>}, {pipeline_mode = #tpu.pipeline_mode<synchronous>, transform_indices = @transform_5, window_bounds = array<i64: 1, 32>}, {pipeline_mode = #tpu.pipeline_mode<synchronous>, transform_indices = @transform_6, window_bounds = array<i64: 1, 32>}, {pipeline_mode = #tpu.pipeline_mode<synchronous>, transform_indices = @transform_7, window_bounds = array<i64: 32, 64>}, {pipeline_mode = #tpu.pipeline_mode<synchronous>, transform_indices = @transform_8, window_bounds = array<i64: 1, 64>}, {pipeline_mode = #tpu.pipeline_mode<synchronous>, transform_indices = @transform_9, window_bounds = array<i64: 64, 32>}, {pipeline_mode = #tpu.pipeline_mode<synchronous>, transform_indices = @transform_10, window_bounds = array<i64: 1, 32>}, {pipeline_mode = #tpu.pipeline_mode<synchronous>, transform_indices = @transform_11, window_bounds = array<i64: 1, 32>}, {pipeline_mode = #tpu.pipeline_mode<synchronous>, transform_indices = @transform_12, window_bounds = array<i64: 1, 32>}, {transform_indices = @transform_13, window_bounds = array<i64: 1, 8, 32>}, {transform_indices = @transform_14, window_bounds = array<i64: 1, 4, 8, 8>}]} {
    %c0_i32 = arith.constant 0 : i32
    %0 = arith.cmpi eq, %arg1, %c0_i32 : i32
    %1 = arith.extui %0 : i1 to i32
    %c0_i32_0 = arith.constant 0 : i32
    %2 = arith.cmpi ne, %1, %c0_i32_0 : i32
    scf.if %2 {
      %c0_52 = arith.constant 0 : index
      %c0_53 = arith.constant 0 : index
      %c0_54 = arith.constant 0 : index
      %100 = vector.load %arg2[%c0_52, %c0_53, %c0_54] : memref<1x8x32xf32, #tpu.memory_space<vmem>>, vector<1x8x32xf32>
      %101 = vector.shape_cast %100 : vector<1x8x32xf32> to vector<8x32xf32>
      %c0_55 = arith.constant 0 : index
      %c0_56 = arith.constant 0 : index
      %102 = vector.load %arg4[%c0_55, %c0_56] : memref<32x32xf32, #tpu.memory_space<vmem>>, vector<32x32xf32>
      %cst_57 = arith.constant dense<0.000000e+00> : vector<8x32xf32>
      %103 = tpu.matmul %101, %102, %cst_57 {dimension_numbers = #tpu.dot_dimension_numbers<[1], [0], [0], [1], [0, 0, 1, 1], [], []>} : vector<8x32xf32>, vector<32x32xf32>, vector<8x32xf32> -> vector<8x32xf32>
      %c0_58 = arith.constant 0 : index
      %c0_59 = arith.constant 0 : index
      %104 = vector.load %arg17[%c0_58, %c0_59] : memref<8x32xf32, #tpu.memory_space<vmem>>, vector<8x32xf32>
      tpu.vector_store %arg17[%c0_58, %c0_59], %103 {strides = array<i32>} : memref<8x32xf32, #tpu.memory_space<vmem>>, vector<8x32xf32>,
      %c0_60 = arith.constant 0 : index
      %c0_61 = arith.constant 0 : index
      %105 = vector.load %arg5[%c0_60, %c0_61] : memref<32x32xf32, #tpu.memory_space<vmem>>, vector<32x32xf32>
      %cst_62 = arith.constant dense<0.000000e+00> : vector<8x32xf32>
      %106 = tpu.matmul %101, %105, %cst_62 {dimension_numbers = #tpu.dot_dimension_numbers<[1], [0], [0], [1], [0, 0, 1, 1], [], []>} : vector<8x32xf32>, vector<32x32xf32>, vector<8x32xf32> -> vector<8x32xf32>
      %c0_63 = arith.constant 0 : index
      %c0_64 = arith.constant 0 : index
      %107 = vector.load %arg18[%c0_63, %c0_64] : memref<8x32xf32, #tpu.memory_space<vmem>>, vector<8x32xf32>
      tpu.vector_store %arg18[%c0_63, %c0_64], %106 {strides = array<i32>} : memref<8x32xf32, #tpu.memory_space<vmem>>, vector<8x32xf32>,
    } else {
    }
    %c8_i32 = arith.constant 8 : i32
    %3 = arith.muli %arg1, %c8_i32 : i32
    %4 = tpu.assume_multiple %3, 8 : i32
    %c0 = arith.constant 0 : index
    %5 = arith.index_cast %4 : i32 to index
    %c0_1 = arith.constant 0 : index
    %6 = vector.load %arg2[%c0, %5, %c0_1] : memref<1x8x32xf32, #tpu.memory_space<vmem>>, vector<1x8x32xf32>
    %7 = vector.shape_cast %6 : vector<1x8x32xf32> to vector<8x32xf32>
    %c0_2 = arith.constant 0 : index
    %c0_3 = arith.constant 0 : index
    %8 = vector.load %arg3[%c0_2, %c0_3] : memref<32x32xf32, #tpu.memory_space<vmem>>, vector<32x32xf32>
    %cst = arith.constant dense<0.000000e+00> : vector<8x32xf32>
    %9 = tpu.matmul %7, %8, %cst {dimension_numbers = #tpu.dot_dimension_numbers<[1], [0], [0], [1], [0, 0, 1, 1], [], []>} : vector<8x32xf32>, vector<32x32xf32>, vector<8x32xf32> -> vector<8x32xf32>
    %cst_4 = arith.constant 0.353553385 : f32
    %10 = vector.broadcast %cst_4 : f32 to vector<8x32xf32>
    %11 = arith.mulf %9, %10 : vector<8x32xf32>
    %12 = vector.shape_cast %11 : vector<8x32xf32> to vector<8x4x8xf32>
    %13 = tpu.transpose %12, [1, 0, 2] : vector<8x4x8xf32> -> vector<4x8x8xf32>
    %c0_5 = arith.constant 0 : index
    %c0_6 = arith.constant 0 : index
    %14 = vector.load %arg17[%c0_5, %c0_6] : memref<8x32xf32, #tpu.memory_space<vmem>>, vector<8x32xf32>
    %15 = vector.shape_cast %14 : vector<8x32xf32> to vector<8x4x8xf32>
    %16 = tpu.transpose %15, [1, 0, 2] : vector<8x4x8xf32> -> vector<4x8x8xf32>
    %c0_7 = arith.constant 0 : index
    %c0_8 = arith.constant 0 : index
    %17 = vector.load %arg18[%c0_7, %c0_8] : memref<8x32xf32, #tpu.memory_space<vmem>>, vector<8x32xf32>
    %18 = vector.shape_cast %17 : vector<8x32xf32> to vector<8x4x8xf32>
    %19 = tpu.transpose %18, [1, 0, 2] : vector<8x4x8xf32> -> vector<4x8x8xf32>
    "tpu.trace_start"() <{level = 10 : i32, message = "hqd,hkd->hqk"}> : () -> ()
    %cst_9 = arith.constant dense<0.000000e+00> : vector<4x8x8xf32>
    %20 = tpu.matmul %13, %16, %cst_9 {dimension_numbers = #tpu.dot_dimension_numbers<[2], [2], [1], [1], [0, 0, 0, 1, 1, 1], [0], [0]>} : vector<4x8x8xf32>, vector<4x8x8xf32>, vector<4x8x8xf32> -> vector<4x8x8xf32>
    "tpu.trace_stop"() : () -> ()
    %cst_10 = arith.constant dense<0xFF800000> : vector<4x8xf32>
    %21 = vector.multi_reduction <maximumf>, %20, %cst_10 [2] : vector<4x8x8xf32> to vector<4x8xf32>
    %22 = vector.shape_cast %21 : vector<4x8xf32> to vector<4x8x1xf32>
    %23 = vector.broadcast %22 : vector<4x8x1xf32> to vector<4x8x8xf32>
    %24 = arith.subf %20, %23 : vector<4x8x8xf32>
    %25 = math.exp %24 : vector<4x8x8xf32>
    %cst_11 = arith.constant dense<0.000000e+00> : vector<4x8xf32>
    %26 = vector.multi_reduction <add>, %25, %cst_11 [2] : vector<4x8x8xf32> to vector<4x8xf32>
    %27 = vector.shape_cast %26 : vector<4x8xf32> to vector<4x8x1xf32>
    %28 = tpu.reciprocal %27 {approx = true} : vector<4x8x1xf32> -> vector<4x8x1xf32>
    %29 = vector.broadcast %28 : vector<4x8x1xf32> to vector<4x8x8xf32>
    %30 = arith.mulf %25, %29 : vector<4x8x8xf32>
    %c0_12 = arith.constant 0 : index
    %c0_13 = arith.constant 0 : index
    %c0_14 = arith.constant 0 : index
    %c0_15 = arith.constant 0 : index
    %31 = vector.load %arg16[%c0_12, %c0_13, %c0_14, %c0_15] : memref<1x4x8x8xf32, #tpu.memory_space<vmem>>, vector<1x4x8x8xf32>
    %32 = vector.shape_cast %31 : vector<1x4x8x8xf32> to vector<4x8x8xf32>
    %33 = vector.shape_cast %30 : vector<4x8x8xf32> to vector<1x4x8x8xf32>
    tpu.vector_store %arg16[%c0_12, %c0_13, %c0_14, %c0_15], %33 {strides = array<i32>} : memref<1x4x8x8xf32, #tpu.memory_space<vmem>>, vector<1x4x8x8xf32>,
    "tpu.trace_start"() <{level = 10 : i32, message = "hqk,hkd->hqd"}> : () -> ()
    %cst_16 = arith.constant dense<0.000000e+00> : vector<4x8x8xf32>
    %34 = tpu.matmul %30, %19, %cst_16 {dimension_numbers = #tpu.dot_dimension_numbers<[2], [1], [1], [2], [0, 0, 0, 1, 1, 2], [0], [0]>} : vector<4x8x8xf32>, vector<4x8x8xf32>, vector<4x8x8xf32> -> vector<4x8x8xf32>
    "tpu.trace_stop"() : () -> ()
    %35 = tpu.transpose %34, [1, 0, 2] : vector<4x8x8xf32> -> vector<8x4x8xf32>
    %36 = vector.shape_cast %35 : vector<8x4x8xf32> to vector<8x32xf32>
    %c0_17 = arith.constant 0 : index
    %c0_18 = arith.constant 0 : index
    %37 = vector.load %arg6[%c0_17, %c0_18] : memref<32x32xf32, #tpu.memory_space<vmem>>, vector<32x32xf32>
    %cst_19 = arith.constant dense<0.000000e+00> : vector<8x32xf32>
    %38 = tpu.matmul %36, %37, %cst_19 {dimension_numbers = #tpu.dot_dimension_numbers<[1], [0], [0], [1], [0, 0, 1, 1], [], []>} : vector<8x32xf32>, vector<32x32xf32>, vector<8x32xf32> -> vector<8x32xf32>
    %39 = arith.addf %38, %7 : vector<8x32xf32>
    %cst_20 = arith.constant dense<0.000000e+00> : vector<8xf32>
    %40 = vector.multi_reduction <add>, %39, %cst_20 [1] : vector<8x32xf32> to vector<8xf32>
    %41 = vector.shape_cast %40 : vector<8xf32> to vector<8x1xf32>
    %cst_21 = arith.constant 3.200000e+01 : f32
    %42 = vector.broadcast %cst_21 : f32 to vector<8x1xf32>
    %43 = arith.divf %41, %42 : vector<8x1xf32>
    %44 = vector.broadcast %43 : vector<8x1xf32> to vector<8x32xf32>
    %45 = arith.subf %39, %44 : vector<8x32xf32>
    %46 = arith.mulf %45, %45 : vector<8x32xf32>
    %cst_22 = arith.constant dense<0.000000e+00> : vector<8xf32>
    %47 = vector.multi_reduction <add>, %46, %cst_22 [1] : vector<8x32xf32> to vector<8xf32>
    %48 = vector.shape_cast %47 : vector<8xf32> to vector<8x1xf32>
    %cst_23 = arith.constant 3.200000e+01 : f32
    %49 = vector.broadcast %cst_23 : f32 to vector<8x1xf32>
    %50 = arith.divf %48, %49 : vector<8x1xf32>
    %cst_24 = arith.constant 9.99999997E-7 : f32
    %51 = vector.broadcast %cst_24 : f32 to vector<8x1xf32>
    %52 = arith.addf %50, %51 : vector<8x1xf32>
    %53 = math.rsqrt %52 : vector<8x1xf32>
    %54 = vector.broadcast %53 : vector<8x1xf32> to vector<8x32xf32>
    %55 = arith.mulf %45, %54 : vector<8x32xf32>
    %c0_25 = arith.constant 0 : index
    %c0_26 = arith.constant 0 : index
    %56 = vector.load %arg7[%c0_25, %c0_26] : memref<1x32xf32, #tpu.memory_space<vmem>>, vector<1x32xf32>
    %57 = vector.broadcast %56 : vector<1x32xf32> to vector<8x32xf32>
    %58 = arith.mulf %55, %57 : vector<8x32xf32>
    %c0_27 = arith.constant 0 : index
    %c0_28 = arith.constant 0 : index
    %59 = vector.load %arg8[%c0_27, %c0_28] : memref<1x32xf32, #tpu.memory_space<vmem>>, vector<1x32xf32>
    %60 = vector.broadcast %59 : vector<1x32xf32> to vector<8x32xf32>
    %61 = arith.addf %58, %60 : vector<8x32xf32>
    %c0_29 = arith.constant 0 : index
    %c0_30 = arith.constant 0 : index
    %62 = vector.load %arg9[%c0_29, %c0_30] : memref<32x64xf32, #tpu.memory_space<vmem>>, vector<32x64xf32>
    %cst_31 = arith.constant dense<0.000000e+00> : vector<8x64xf32>
    %63 = tpu.matmul %61, %62, %cst_31 {dimension_numbers = #tpu.dot_dimension_numbers<[1], [0], [0], [1], [0, 0, 1, 1], [], []>} : vector<8x32xf32>, vector<32x64xf32>, vector<8x64xf32> -> vector<8x64xf32>
    %c0_32 = arith.constant 0 : index
    %c0_33 = arith.constant 0 : index
    %64 = vector.load %arg10[%c0_32, %c0_33] : memref<1x64xf32, #tpu.memory_space<vmem>>, vector<1x64xf32>
    %65 = vector.broadcast %64 : vector<1x64xf32> to vector<8x64xf32>
    %66 = arith.addf %63, %65 : vector<8x64xf32>
    %cst_34 = arith.constant 0.000000e+00 : f32
    %67 = vector.broadcast %cst_34 : f32 to vector<8x64xf32>
    %68 = arith.maximumf %66, %67 : vector<8x64xf32>
    %c0_35 = arith.constant 0 : index
    %c0_36 = arith.constant 0 : index
    %69 = vector.load %arg11[%c0_35, %c0_36] : memref<64x32xf32, #tpu.memory_space<vmem>>, vector<64x32xf32>
    %cst_37 = arith.constant dense<0.000000e+00> : vector<8x32xf32>
    %70 = tpu.matmul %68, %69, %cst_37 {dimension_numbers = #tpu.dot_dimension_numbers<[1], [0], [0], [1], [0, 0, 1, 1], [], []>} : vector<8x64xf32>, vector<64x32xf32>, vector<8x32xf32> -> vector<8x32xf32>
    %c0_38 = arith.constant 0 : index
    %c0_39 = arith.constant 0 : index
    %71 = vector.load %arg12[%c0_38, %c0_39] : memref<1x32xf32, #tpu.memory_space<vmem>>, vector<1x32xf32>
    %72 = vector.broadcast %71 : vector<1x32xf32> to vector<8x32xf32>
    %73 = arith.addf %70, %72 : vector<8x32xf32>
    %74 = arith.addf %73, %61 : vector<8x32xf32>
    %cst_40 = arith.constant dense<0.000000e+00> : vector<8xf32>
    %75 = vector.multi_reduction <add>, %74, %cst_40 [1] : vector<8x32xf32> to vector<8xf32>
    %76 = vector.shape_cast %75 : vector<8xf32> to vector<8x1xf32>
    %cst_41 = arith.constant 3.200000e+01 : f32
    %77 = vector.broadcast %cst_41 : f32 to vector<8x1xf32>
    %78 = arith.divf %76, %77 : vector<8x1xf32>
    %79 = vector.broadcast %78 : vector<8x1xf32> to vector<8x32xf32>
    %80 = arith.subf %74, %79 : vector<8x32xf32>
    %81 = arith.mulf %80, %80 : vector<8x32xf32>
    %cst_42 = arith.constant dense<0.000000e+00> : vector<8xf32>
    %82 = vector.multi_reduction <add>, %81, %cst_42 [1] : vector<8x32xf32> to vector<8xf32>
    %83 = vector.shape_cast %82 : vector<8xf32> to vector<8x1xf32>
    %cst_43 = arith.constant 3.200000e+01 : f32
    %84 = vector.broadcast %cst_43 : f32 to vector<8x1xf32>
    %85 = arith.divf %83, %84 : vector<8x1xf32>
    %cst_44 = arith.constant 9.99999997E-7 : f32
    %86 = vector.broadcast %cst_44 : f32 to vector<8x1xf32>
    %87 = arith.addf %85, %86 : vector<8x1xf32>
    %88 = math.rsqrt %87 : vector<8x1xf32>
    %89 = vector.broadcast %88 : vector<8x1xf32> to vector<8x32xf32>
    %90 = arith.mulf %80, %89 : vector<8x32xf32>
    %c0_45 = arith.constant 0 : index
    %c0_46 = arith.constant 0 : index
    %91 = vector.load %arg13[%c0_45, %c0_46] : memref<1x32xf32, #tpu.memory_space<vmem>>, vector<1x32xf32>
    %92 = vector.broadcast %91 : vector<1x32xf32> to vector<8x32xf32>
    %93 = arith.mulf %90, %92 : vector<8x32xf32>
    %c0_47 = arith.constant 0 : index
    %c0_48 = arith.constant 0 : index
    %94 = vector.load %arg14[%c0_47, %c0_48] : memref<1x32xf32, #tpu.memory_space<vmem>>, vector<1x32xf32>
    %95 = vector.broadcast %94 : vector<1x32xf32> to vector<8x32xf32>
    %96 = arith.addf %93, %95 : vector<8x32xf32>
    %c0_49 = arith.constant 0 : index
    %c0_50 = arith.constant 0 : index
    %c0_51 = arith.constant 0 : index
    %97 = vector.load %arg15[%c0_49, %c0_50, %c0_51] : memref<1x8x32xf32, #tpu.memory_space<vmem>>, vector<1x8x32xf32>
    %98 = vector.shape_cast %97 : vector<1x8x32xf32> to vector<8x32xf32>
    %99 = vector.shape_cast %96 : vector<8x32xf32> to vector<1x8x32xf32>
    tpu.vector_store %arg15[%c0_49, %c0_50, %c0_51], %99 {strides = array<i32>} : memref<1x8x32xf32, #tpu.memory_space<vmem>>, vector<1x8x32xf32>,
    return
  }
  func.func @transform_0(%arg0: i32, %arg1: i32) -> (i32, i32, i32) {
    %c0_i32 = arith.constant 0 : i32
    %c0_i32_0 = arith.constant 0 : i32
    %c0_i32_1 = arith.constant 0 : i32
    return %arg0, %c0_i32, %c0_i32_0 : i32, i32, i32
  }
  func.func @transform_1(%arg0: i32, %arg1: i32) -> (i32, i32) {
    %c0_i32 = arith.constant 0 : i32
    %c0_i32_0 = arith.constant 0 : i32
    %c0_i32_1 = arith.constant 0 : i32
    return %c0_i32, %c0_i32_0 : i32, i32
  }
  func.func @transform_2(%arg0: i32, %arg1: i32) -> (i32, i32) {
    %c0_i32 = arith.constant 0 : i32
    %c0_i32_0 = arith.constant 0 : i32
    %c0_i32_1 = arith.constant 0 : i32
    return %c0_i32, %c0_i32_0 : i32, i32
  }
  func.func @transform_3(%arg0: i32, %arg1: i32) -> (i32, i32) {
    %c0_i32 = arith.constant 0 : i32
    %c0_i32_0 = arith.constant 0 : i32
    %c0_i32_1 = arith.constant 0 : i32
    return %c0_i32, %c0_i32_0 : i32, i32
  }
  func.func @transform_4(%arg0: i32, %arg1: i32) -> (i32, i32) {
    %c0_i32 = arith.constant 0 : i32
    %c0_i32_0 = arith.constant 0 : i32
    %c0_i32_1 = arith.constant 0 : i32
    return %c0_i32, %c0_i32_0 : i32, i32
  }
  func.func @transform_5(%arg0: i32, %arg1: i32) -> (i32, i32) {
    %c0_i32 = arith.constant 0 : i32
    %c0_i32_0 = arith.constant 0 : i32
    %c0_i32_1 = arith.constant 0 : i32
    return %c0_i32, %c0_i32_0 : i32, i32
  }
  func.func @transform_6(%arg0: i32, %arg1: i32) -> (i32, i32) {
    %c0_i32 = arith.constant 0 : i32
    %c0_i32_0 = arith.constant 0 : i32
    %c0_i32_1 = arith.constant 0 : i32
    return %c0_i32, %c0_i32_0 : i32, i32
  }
  func.func @transform_7(%arg0: i32, %arg1: i32) -> (i32, i32) {
    %c0_i32 = arith.constant 0 : i32
    %c0_i32_0 = arith.constant 0 : i32
    %c0_i32_1 = arith.constant 0 : i32
    return %c0_i32, %c0_i32_0 : i32, i32
  }
  func.func @transform_8(%arg0: i32, %arg1: i32) -> (i32, i32) {
    %c0_i32 = arith.constant 0 : i32
    %c0_i32_0 = arith.constant 0 : i32
    %c0_i32_1 = arith.constant 0 : i32
    return %c0_i32, %c0_i32_0 : i32, i32
  }
  func.func @transform_9(%arg0: i32, %arg1: i32) -> (i32, i32) {
    %c0_i32 = arith.constant 0 : i32
    %c0_i32_0 = arith.constant 0 : i32
    %c0_i32_1 = arith.constant 0 : i32
    return %c0_i32, %c0_i32_0 : i32, i32
  }
  func.func @transform_10(%arg0: i32, %arg1: i32) -> (i32, i32) {
    %c0_i32 = arith.constant 0 : i32
    %c0_i32_0 = arith.constant 0 : i32
    %c0_i32_1 = arith.constant 0 : i32
    return %c0_i32, %c0_i32_0 : i32, i32
  }
  func.func @transform_11(%arg0: i32, %arg1: i32) -> (i32, i32) {
    %c0_i32 = arith.constant 0 : i32
    %c0_i32_0 = arith.constant 0 : i32
    %c0_i32_1 = arith.constant 0 : i32
    return %c0_i32, %c0_i32_0 : i32, i32
  }
  func.func @transform_12(%arg0: i32, %arg1: i32) -> (i32, i32) {
    %c0_i32 = arith.constant 0 : i32
    %c0_i32_0 = arith.constant 0 : i32
    %c0_i32_1 = arith.constant 0 : i32
    return %c0_i32, %c0_i32_0 : i32, i32
  }
  func.func @transform_13(%arg0: i32, %arg1: i32) -> (i32, i32, i32) {
    %c0_i32 = arith.constant 0 : i32
    %c0_i32_0 = arith.constant 0 : i32
    return %arg0, %arg1, %c0_i32 : i32, i32, i32
  }
  func.func @transform_14(%arg0: i32, %arg1: i32) -> (i32, i32, i32, i32) {
    %c0_i32 = arith.constant 0 : i32
    %c0_i32_0 = arith.constant 0 : i32
    %c0_i32_1 = arith.constant 0 : i32
    return %arg0, %c0_i32, %arg1, %c0_i32_0 : i32, i32, i32, i32
  }
}

</mosaic_0001>

<llo_original>
// kernel: tpu_custom_call.1
$region0: #{tpu_custom_call.1}
  #allocation0 [shape = 'u32[]', space=smem, size = 0x4, offset = 0x4, fixed_abs, tag = 'smem constant byte address 0x4 - core index']
  #allocation1 [shape = 'u32[144,128]{1,0:T(1,128)}', space=vmem, size = 0x12000, scoped, tag = 'internal scratch']
  #allocation2 [shape = 'f32[8,32]{1,0:T(8,128)}', space=vmem, size = 0x1000, scoped, tag = 'scratch operand']
  #allocation3 [shape = 'f32[8,32]{1,0:T(8,128)}', space=vmem, size = 0x1000, scoped, tag = 'scratch operand']
  %s0 = inlined_call_operand.hbm [shape: f32[2,8,32], index: 0, kind: input, shape index: {}]
  %s1 = inlined_call_operand.vmem [shape: f32[32,32], index: 1, kind: input, shape index: {}]
  %s2 = inlined_call_operand.vmem [shape: f32[32,32], index: 2, kind: input, shape index: {}]
  %s3 = inlined_call_operand.vmem [shape: f32[32,32], index: 3, kind: input, shape index: {}]
  %s4 = inlined_call_operand.hbm [shape: f32[32,32], index: 4, kind: input, shape index: {}]
  %s5 = inlined_call_operand.vmem [shape: f32[1,32], index: 5, kind: input, shape index: {}]
  %s6 = inlined_call_operand.vmem [shape: f32[1,32], index: 6, kind: input, shape index: {}]
  %s7 = inlined_call_operand.hbm [shape: f32[32,64], index: 7, kind: input, shape index: {}]
  %s8 = inlined_call_operand.hbm [shape: f32[1,64], index: 8, kind: input, shape index: {}]
  %s9 = inlined_call_operand.vmem [shape: f32[64,32], index: 9, kind: input, shape index: {}]
  %s10 = inlined_call_operand.vmem [shape: f32[1,32], index: 10, kind: input, shape index: {}]
  %s11 = inlined_call_operand.vmem [shape: f32[1,32], index: 11, kind: input, shape index: {}]
  %s12 = inlined_call_operand.vmem [shape: f32[1,32], index: 12, kind: input, shape index: {}]
  %s13 = inlined_call_operand.hbm [shape: f32[2,8,32], index: 13, kind: output, shape index: {0}]
  %s14 = inlined_call_operand.hbm [shape: f32[2,4,8,8], index: 14, kind: output, shape index: {1}]
  %15 = xla_tuple %s13, %s14
  %s16 = sld [smem:[#allocation0]]
  $region113: #{tpu_custom_call.1} parent=0
    _
  %s18 = ssub.s32 1, %s16
  %s19 = scalar_select 0, %s18, %s16
  $region1: #{tpu_custom_call.1} parent=0
    #allocation4 [shape = 'u8[8192]{0}', space=vmem, size = 0x2000, scoped, tag = 'input window, operand 0']
    #allocation5 [shape = 's32[2]{0}', space=sflag, size = 0x8, scoped, tag = 'scoped memory for tpu_custom_call.1']
    #allocation6 [shape = 's32[2]{0}', space=sflag, size = 0x8, scoped, tag = 'scoped memory for tpu_custom_call.1']
    #allocation7 [shape = 'u8[16384]{0}', space=vmem, size = 0x4000, scoped, tag = 'input window, operand 4, single buffered']
    #allocation8 [shape = 's32[1]{0}', space=sflag, size = 0x4, scoped, tag = 'scoped memory for tpu_custom_call.1']
    #allocation9 [shape = 'u8[16384]{0}', space=vmem, size = 0x4000, scoped, tag = 'input window, operand 7, single buffered']
    #allocation10 [shape = 'u8[512]{0}', space=vmem, size = 0x400, scoped, tag = 'input window, operand 8, single buffered']
    #allocation11 [shape = 's32[1]{0}', space=sflag, size = 0x4, scoped, tag = 'scoped memory for tpu_custom_call.1']
    #allocation12 [shape = 'u8[8192]{0}', space=vmem, size = 0x2000, scoped, tag = 'output window, operand 0']
    #allocation13 [shape = 'u8[32768]{0}', space=vmem, size = 0x8000, scoped, tag = 'output window, operand 1']
    #allocation14 [shape = 's32[2]{0}', space=sflag, size = 0x8, scoped, tag = 'scoped memory for tpu_custom_call.1']
    %20 = vsyncpa [#allocation5], 0
    %s21 = scalar_lea.sflag [#allocation5], 1
    %22 = vsyncpa %s21, 0
    %23 = vsyncpa [#allocation8], 0
    %24 = vsyncpa [#allocation11], 0
    %25 = vsyncpa [#allocation6], 0
    %s26 = scalar_lea.sflag [#allocation6], 1
    %27 = vsyncpa %s26, 0
    %28 = vsyncpa [#allocation14], 0
    %s29 = scalar_lea.sflag [#allocation14], 1
    %30 = vsyncpa %s29, 0
    loop: start=0, step=1, limit=4
    $region2: #{tpu_custom_call.1} parent=1 // loop_pre_header
      _
    $region3: #{tpu_custom_call.1} parent=1 // loop_header
      %s32 = sphi 0, %s36
      %p33 = scmp.ge.s32.totalorder %s32, 4
      %s39 = sphi 0, %s51
      %s40 = sphi 0, %s47
      %s41 = sphi 0, %s39
      %s42 = sphi 0, %s40
      %s43 = sphi 0, %s41
      %s44 = sphi 0, %s42
      %s54 = sphi 0, %s56
      %s57 = sphi 0, %s54
      %s58 = sphi 0, %s57
      %s74 = sphi 0, %s58
      %s78 = sphi 0, %s78
      %s80 = sphi 0, %s78
      %s81 = sphi 0, %s80
      %s95 = sphi 0, %s81
      %s99 = sphi 0, %s99
      %s101 = sphi 0, %s99
      %s102 = sphi 0, %s101
      %s116 = sphi 0, %s102
      %s120 = sphi 0, %s120
      %s122 = sphi 0, %s120
      %s123 = sphi 0, %s122
      %s137 = sphi 0, %s123
      %s141 = sphi 0, %s141
      %s143 = sphi 0, %s141
      %s144 = sphi 0, %s143
      %s158 = sphi 0, %s144
      %s162 = sphi 0, %s162
      %s164 = sphi 0, %s162
      %s165 = sphi 0, %s164
      %s179 = sphi 0, %s165
      %s183 = sphi 0, %s183
      %s185 = sphi 0, %s183
      %s186 = sphi 0, %s185
      %s200 = sphi 0, %s186
      %s204 = sphi 0, %s204
      %s206 = sphi 0, %s204
      %s207 = sphi 0, %s206
      %s221 = sphi 0, %s207
      %s225 = sphi 0, %s225
      %s227 = sphi 0, %s225
      %s228 = sphi 0, %s227
      %s242 = sphi 0, %s228
      %s246 = sphi 0, %s246
      %s248 = sphi 0, %s246
      %s249 = sphi 0, %s248
      %s263 = sphi 0, %s249
      %s267 = sphi 0, %s267
      %s269 = sphi 0, %s267
      %s270 = sphi 0, %s269
      %s284 = sphi 0, %s270
      %s288 = sphi 0, %s288
      %s290 = sphi 0, %s288
      %s291 = sphi 0, %s290
      %s305 = sphi 0, %s291
      %s309 = sphi 0, %s309
      %s311 = sphi 0, %s309
      %s312 = sphi 0, %s311
      %s326 = sphi 0, %s312
      %s334 = sphi 0, %s336
      %s337 = sphi 0, %s334
      %s338 = sphi 0, %s337
      %s354 = sphi 0, %s338
      %s362 = sphi 0, %s364
      %s365 = sphi 0, %s362
      %s366 = sphi 0, %s365
      %s382 = sphi 0, %s366
    $region4: #{tpu_custom_call.1} parent=1 // loop_header_branch
      %35 = sbr.rel (%p33) target = $region8
    $region5: #{tpu_custom_call.1} parent=1 // loop_body
      %s37 = ssub.s32 %s32, 1
      %s38 = ssub.s32 %s32, 2
      %s45 = sadd.s32 1, %s40
      %p46 = scmp.ge.s32.totalorder %s45, 1
      %s47 = scalar_select %p46, 0, %s45
      %s48 = sadd.s32 1, %s39
      %s49 = scalar_select %p46, %s48, %s39
      %p50 = scmp.ge.s32.totalorder %s49, 2
      %s51 = scalar_select %p50, 0, %s49
      %s52 = ssub.s32 %s39, %s51
      %p53 = scmp.eq.s32.totalorder %s52, 0
      %s55 = sadd.s32 %s54, 1
      %s56 = scalar_select %p53, %s54, %s55
      %p59 = pneg %p53
      %p60 = scmp.eq.s32.totalorder %s32, 1
      %p61 = por %p59, %p60
      %p62 = scmp.ne.s32.totalorder %s54, %s57
      %p63 = scmp.eq.s32.totalorder %s32, 0
      %p64 = por %p62, %p63
      %p65 = scmp.ne.s32.totalorder %s54, %s57
      %p66 = scmp.eq.s32.totalorder %s37, 1
      %p67 = por %p65, %p66
      %p68 = scmp.ne.s32.totalorder %s57, %s58
      %p69 = scmp.eq.s32.totalorder %s37, 0
      %p70 = por %p68, %p69
      %p71 = scmp.ne.s32.totalorder %s57, %s58
      %p72 = scmp.eq.s32.totalorder %s38, 1
      %p73 = por %p71, %p72
      %p75 = scmp.ne.s32.totalorder %s58, %s74
      %p76 = scmp.eq.s32.totalorder %s38, 0
      %p77 = por %p75, %p76
      %s79 = sadd.s32 %s78, 1
      %p82 = scmp.eq.s32.totalorder %s32, 1
      %p83 = scmp.ne.s32.totalorder %s78, %s80
      %p84 = scmp.eq.s32.totalorder %s32, 0
      %p85 = por %p83, %p84
      %p86 = scmp.ne.s32.totalorder %s78, %s80
      %p87 = scmp.eq.s32.totalorder %s37, 1
      %p88 = por %p86, %p87
      %p89 = scmp.ne.s32.totalorder %s80, %s81
      %p90 = scmp.eq.s32.totalorder %s37, 0
      %p91 = por %p89, %p90
      %p92 = scmp.ne.s32.totalorder %s80, %s81
      %p93 = scmp.eq.s32.totalorder %s38, 1
      %p94 = por %p92, %p93
      %p96 = scmp.ne.s32.totalorder %s81, %s95
      %p97 = scmp.eq.s32.totalorder %s38, 0
      %p98 = por %p96, %p97
      %s100 = sadd.s32 %s99, 1
      %p103 = scmp.eq.s32.totalorder %s32, 1
      %p104 = scmp.ne.s32.totalorder %s99, %s101
      %p105 = scmp.eq.s32.totalorder %s32, 0
      %p106 = por %p104, %p105
      %p107 = scmp.ne.s32.totalorder %s99, %s101
      %p108 = scmp.eq.s32.totalorder %s37, 1
      %p109 = por %p107, %p108
      %p110 = scmp.ne.s32.totalorder %s101, %s102
      %p111 = scmp.eq.s32.totalorder %s37, 0
      %p112 = por %p110, %p111
      %p113 = scmp.ne.s32.totalorder %s101, %s102
      %p114 = scmp.eq.s32.totalorder %s38, 1
      %p115 = por %p113, %p114
      %p117 = scmp.ne.s32.totalorder %s102, %s116
      %p118 = scmp.eq.s32.totalorder %s38, 0
      %p119 = por %p117, %p118
      %s121 = sadd.s32 %s120, 1
      %p124 = scmp.eq.s32.totalorder %s32, 1
      %p125 = scmp.ne.s32.totalorder %s120, %s122
      %p126 = scmp.eq.s32.totalorder %s32, 0
      %p127 = por %p125, %p126
      %p128 = scmp.ne.s32.totalorder %s120, %s122
      %p129 = scmp.eq.s32.totalorder %s37, 1
      %p130 = por %p128, %p129
      %p131 = scmp.ne.s32.totalorder %s122, %s123
      %p132 = scmp.eq.s32.totalorder %s37, 0
      %p133 = por %p131, %p132
      %p134 = scmp.ne.s32.totalorder %s122, %s123
      %p135 = scmp.eq.s32.totalorder %s38, 1
      %p136 = por %p134, %p135
      %p138 = scmp.ne.s32.totalorder %s123, %s137
      %p139 = scmp.eq.s32.totalorder %s38, 0
      %p140 = por %p138, %p139
      %s142 = sadd.s32 %s141, 1
      %p145 = scmp.eq.s32.totalorder %s32, 1
      %p146 = scmp.ne.s32.totalorder %s141, %s143
      %p147 = scmp.eq.s32.totalorder %s32, 0
      %p148 = por %p146, %p147
      %p149 = scmp.ne.s32.totalorder %s141, %s143
      %p150 = scmp.eq.s32.totalorder %s37, 1
      %p151 = por %p149, %p150
      %p152 = scmp.ne.s32.totalorder %s143, %s144
      %p153 = scmp.eq.s32.totalorder %s37, 0
      %p154 = por %p152, %p153
      %p155 = scmp.ne.s32.totalorder %s143, %s144
      %p156 = scmp.eq.s32.totalorder %s38, 1
      %p157 = por %p155, %p156
      %p159 = scmp.ne.s32.totalorder %s144, %s158
      %p160 = scmp.eq.s32.totalorder %s38, 0
      %p161 = por %p159, %p160
      %s163 = sadd.s32 %s162, 1
      %p166 = scmp.eq.s32.totalorder %s32, 1
      %p167 = scmp.ne.s32.totalorder %s162, %s164
      %p168 = scmp.eq.s32.totalorder %s32, 0
      %p169 = por %p167, %p168
      %p170 = scmp.ne.s32.totalorder %s162, %s164
      %p171 = scmp.eq.s32.totalorder %s37, 1
      %p172 = por %p170, %p171
      %p173 = scmp.ne.s32.totalorder %s164, %s165
      %p174 = scmp.eq.s32.totalorder %s37, 0
      %p175 = por %p173, %p174
      %p176 = scmp.ne.s32.totalorder %s164, %s165
      %p177 = scmp.eq.s32.totalorder %s38, 1
      %p178 = por %p176, %p177
      %p180 = scmp.ne.s32.totalorder %s165, %s179
      %p181 = scmp.eq.s32.totalorder %s38, 0
      %p182 = por %p180, %p181
      %s184 = sadd.s32 %s183, 1
      %p187 = scmp.eq.s32.totalorder %s32, 1
      %p188 = scmp.ne.s32.totalorder %s183, %s185
      %p189 = scmp.eq.s32.totalorder %s32, 0
      %p190 = por %p188, %p189
      %p191 = scmp.ne.s32.totalorder %s183, %s185
      %p192 = scmp.eq.s32.totalorder %s37, 1
      %p193 = por %p191, %p192
      %p194 = scmp.ne.s32.totalorder %s185, %s186
      %p195 = scmp.eq.s32.totalorder %s37, 0
      %p196 = por %p194, %p195
      %p197 = scmp.ne.s32.totalorder %s185, %s186
      %p198 = scmp.eq.s32.totalorder %s38, 1
      %p199 = por %p197, %p198
      %p201 = scmp.ne.s32.totalorder %s186, %s200
      %p202 = scmp.eq.s32.totalorder %s38, 0
      %p203 = por %p201, %p202
      %s205 = sadd.s32 %s204, 1
      %p208 = scmp.eq.s32.totalorder %s32, 1
      %p209 = scmp.ne.s32.totalorder %s204, %s206
      %p210 = scmp.eq.s32.totalorder %s32, 0
      %p211 = por %p209, %p210
      %p212 = scmp.ne.s32.totalorder %s204, %s206
      %p213 = scmp.eq.s32.totalorder %s37, 1
      %p214 = por %p212, %p213
      %p215 = scmp.ne.s32.totalorder %s206, %s207
      %p216 = scmp.eq.s32.totalorder %s37, 0
      %p217 = por %p215, %p216
      %p218 = scmp.ne.s32.totalorder %s206, %s207
      %p219 = scmp.eq.s32.totalorder %s38, 1
      %p220 = por %p218, %p219
      %p222 = scmp.ne.s32.totalorder %s207, %s221
      %p223 = scmp.eq.s32.totalorder %s38, 0
      %p224 = por %p222, %p223
      %s226 = sadd.s32 %s225, 1
      %p229 = scmp.eq.s32.totalorder %s32, 1
      %p230 = scmp.ne.s32.totalorder %s225, %s227
      %p231 = scmp.eq.s32.totalorder %s32, 0
      %p232 = por %p230, %p231
      %p233 = scmp.ne.s32.totalorder %s225, %s227
      %p234 = scmp.eq.s32.totalorder %s37, 1
      %p235 = por %p233, %p234
      %p236 = scmp.ne.s32.totalorder %s227, %s228
      %p237 = scmp.eq.s32.totalorder %s37, 0
      %p238 = por %p236, %p237
      %p239 = scmp.ne.s32.totalorder %s227, %s228
      %p240 = scmp.eq.s32.totalorder %s38, 1
      %p241 = por %p239, %p240
      %p243 = scmp.ne.s32.totalorder %s228, %s242
      %p244 = scmp.eq.s32.totalorder %s38, 0
      %p245 = por %p243, %p244
      %s247 = sadd.s32 %s246, 1
      %p250 = scmp.eq.s32.totalorder %s32, 1
      %p251 = scmp.ne.s32.totalorder %s246, %s248
      %p252 = scmp.eq.s32.totalorder %s32, 0
      %p253 = por %p251, %p252
      %p254 = scmp.ne.s32.totalorder %s246, %s248
      %p255 = scmp.eq.s32.totalorder %s37, 1
      %p256 = por %p254, %p255
      %p257 = scmp.ne.s32.totalorder %s248, %s249
      %p258 = scmp.eq.s32.totalorder %s37, 0
      %p259 = por %p257, %p258
      %p260 = scmp.ne.s32.totalorder %s248, %s249
      %p261 = scmp.eq.s32.totalorder %s38, 1
      %p262 = por %p260, %p261
      %p264 = scmp.ne.s32.totalorder %s249, %s263
      %p265 = scmp.eq.s32.totalorder %s38, 0
      %p266 = por %p264, %p265
      %s268 = sadd.s32 %s267, 1
      %p271 = scmp.eq.s32.totalorder %s32, 1
      %p272 = scmp.ne.s32.totalorder %s267, %s269
      %p273 = scmp.eq.s32.totalorder %s32, 0
      %p274 = por %p272, %p273
      %p275 = scmp.ne.s32.totalorder %s267, %s269
      %p276 = scmp.eq.s32.totalorder %s37, 1
      %p277 = por %p275, %p276
      %p278 = scmp.ne.s32.totalorder %s269, %s270
      %p279 = scmp.eq.s32.totalorder %s37, 0
      %p280 = por %p278, %p279
      %p281 = scmp.ne.s32.totalorder %s269, %s270
      %p282 = scmp.eq.s32.totalorder %s38, 1
      %p283 = por %p281, %p282
      %p285 = scmp.ne.s32.totalorder %s270, %s284
      %p286 = scmp.eq.s32.totalorder %s38, 0
      %p287 = por %p285, %p286
      %s289 = sadd.s32 %s288, 1
      %p292 = scmp.eq.s32.totalorder %s32, 1
      %p293 = scmp.ne.s32.totalorder %s288, %s290
      %p294 = scmp.eq.s32.totalorder %s32, 0
      %p295 = por %p293, %p294
      %p296 = scmp.ne.s32.totalorder %s288, %s290
      %p297 = scmp.eq.s32.totalorder %s37, 1
      %p298 = por %p296, %p297
      %p299 = scmp.ne.s32.totalorder %s290, %s291
      %p300 = scmp.eq.s32.totalorder %s37, 0
      %p301 = por %p299, %p300
      %p302 = scmp.ne.s32.totalorder %s290, %s291
      %p303 = scmp.eq.s32.totalorder %s38, 1
      %p304 = por %p302, %p303
      %p306 = scmp.ne.s32.totalorder %s291, %s305
      %p307 = scmp.eq.s32.totalorder %s38, 0
      %p308 = por %p306, %p307
      %s310 = sadd.s32 %s309, 1
      %p313 = scmp.eq.s32.totalorder %s32, 1
      %p314 = scmp.ne.s32.totalorder %s309, %s311
      %p315 = scmp.eq.s32.totalorder %s32, 0
      %p316 = por %p314, %p315
      %p317 = scmp.ne.s32.totalorder %s309, %s311
      %p318 = scmp.eq.s32.totalorder %s37, 1
      %p319 = por %p317, %p318
      %p320 = scmp.ne.s32.totalorder %s311, %s312
      %p321 = scmp.eq.s32.totalorder %s37, 0
      %p322 = por %p320, %p321
      %p323 = scmp.ne.s32.totalorder %s311, %s312
      %p324 = scmp.eq.s32.totalorder %s38, 1
      %p325 = por %p323, %p324
      %p327 = scmp.ne.s32.totalorder %s312, %s326
      %p328 = scmp.eq.s32.totalorder %s38, 0
      %p329 = por %p327, %p328
      %s330 = ssub.s32 %s39, %s51
      %s331 = ssub.s32 %s40, %s47
      %s332 = sor.u32 %s330, %s331
      %p333 = scmp.eq.s32.totalorder %s332, 0
      %s335 = sadd.s32 %s334, 1
      %s336 = scalar_select %p333, %s334, %s335
      %p339 = pneg %p333
      %p340 = scmp.eq.s32.totalorder %s32, 1
      %p341 = por %p339, %p340
      %p342 = scmp.ne.s32.totalorder %s334, %s337
      %p343 = scmp.eq.s32.totalorder %s32, 0
      %p344 = por %p342, %p343
      %p345 = scmp.ne.s32.totalorder %s334, %s337
      %p346 = scmp.eq.s32.totalorder %s37, 1
      %p347 = por %p345, %p346
      %p348 = scmp.ne.s32.totalorder %s337, %s338
      %p349 = scmp.eq.s32.totalorder %s37, 0
      %p350 = por %p348, %p349
      %p351 = scmp.ne.s32.totalorder %s337, %s338
      %p352 = scmp.eq.s32.totalorder %s38, 1
      %p353 = por %p351, %p352
      %p355 = scmp.ne.s32.totalorder %s338, %s354
      %p356 = scmp.eq.s32.totalorder %s38, 0
      %p357 = por %p355, %p356
      %s358 = ssub.s32 %s39, %s51
      %s359 = ssub.s32 %s40, %s47
      %s360 = sor.u32 %s358, %s359
      %p361 = scmp.eq.s32.totalorder %s360, 0
      %s363 = sadd.s32 %s362, 1
      %s364 = scalar_select %p361, %s362, %s363
      %p367 = pneg %p361
      %p368 = scmp.eq.s32.totalorder %s32, 1
      %p369 = por %p367, %p368
      %p370 = scmp.ne.s32.totalorder %s362, %s365
      %p371 = scmp.eq.s32.totalorder %s32, 0
      %p372 = por %p370, %p371
      %p373 = scmp.ne.s32.totalorder %s362, %s365
      %p374 = scmp.eq.s32.totalorder %s37, 1
      %p375 = por %p373, %p374
      %p376 = scmp.ne.s32.totalorder %s365, %s366
      %p377 = scmp.eq.s32.totalorder %s37, 0
      %p378 = por %p376, %p377
      %p379 = scmp.ne.s32.totalorder %s365, %s366
      %p380 = scmp.eq.s32.totalorder %s38, 1
      %p381 = por %p379, %p380
      %p383 = scmp.ne.s32.totalorder %s366, %s382
      %p384 = scmp.eq.s32.totalorder %s38, 0
      %p385 = por %p383, %p384
      %p386 = scmp.le.s32.totalorder 1, %s32
      %p387 = scmp.lt.s32.totalorder %s32, 3
      %p388 = pnand %p386, %p387
      %p389 = pneg %p388
      // Predicated region
      $region9: #{tpu_custom_call.1} parent=5 // pred_check
        _
      $region10: #{tpu_custom_call.1} parent=5 // pred_check_branch
        %391 = sbr.rel (%p388) target = $region12
      $region11: #{tpu_custom_call.1} parent=5 // pred_region
        %s392 = ssub.s32 %s32, 1
        // Predicated region
        $region13: #{tpu_custom_call.1} parent=11 // pred_check
          %p393 = pneg %p91
        $region14: #{tpu_custom_call.1} parent=11 // pred_check_branch
          %395 = sbr.rel (%p393) target = $region16
        $region15: #{tpu_custom_call.1} parent=11 // pred_region
          _
        $region16: #{tpu_custom_call.1} parent=11 // pred_fallthru
          _
        // Predicated region
        $region17: #{tpu_custom_call.1} parent=11 // pred_check
          %p396 = pneg %p112
        $region18: #{tpu_custom_call.1} parent=11 // pred_check_branch
          %398 = sbr.rel (%p396) target = $region20
        $region19: #{tpu_custom_call.1} parent=11 // pred_region
          _
        $region20: #{tpu_custom_call.1} parent=11 // pred_fallthru
          _
        // Predicated region
        $region21: #{tpu_custom_call.1} parent=11 // pred_check
          %p399 = pneg %p133
        $region22: #{tpu_custom_call.1} parent=11 // pred_check_branch
          %401 = sbr.rel (%p399) target = $region24
        $region23: #{tpu_custom_call.1} parent=11 // pred_region
          _
        $region24: #{tpu_custom_call.1} parent=11 // pred_fallthru
          _
        // Predicated region
        $region25: #{tpu_custom_call.1} parent=11 // pred_check
          %p402 = pneg %p154
        $region26: #{tpu_custom_call.1} parent=11 // pred_check_branch
          %404 = sbr.rel (%p402) target = $region28
        $region27: #{tpu_custom_call.1} parent=11 // pred_region
          %s406 = ssub.s32 512, 512
          %407 = vsyncadd [#allocation8], %s406
          %s408 = sshll.u32 [#allocation7], 4
          %s409 = int_to_ptr.vmem [resolvable:$true] %s408
          %414 = dma.hbm_to_vmem [thread:$0]  %s4, 512, %s409, [#allocation8], 128, 128, 8
        $region28: #{tpu_custom_call.1} parent=11 // pred_fallthru
          _
        // Predicated region
        $region29: #{tpu_custom_call.1} parent=11 // pred_check
          %p415 = pneg %p175
        $region30: #{tpu_custom_call.1} parent=11 // pred_check_branch
          %417 = sbr.rel (%p415) target = $region32
        $region31: #{tpu_custom_call.1} parent=11 // pred_region
          _
        $region32: #{tpu_custom_call.1} parent=11 // pred_fallthru
          _
        // Predicated region
        $region33: #{tpu_custom_call.1} parent=11 // pred_check
          %p418 = pneg %p196
        $region34: #{tpu_custom_call.1} parent=11 // pred_check_branch
          %420 = sbr.rel (%p418) target = $region36
        $region35: #{tpu_custom_call.1} parent=11 // pred_region
          _
        $region36: #{tpu_custom_call.1} parent=11 // pred_fallthru
          _
        // Predicated region
        $region37: #{tpu_custom_call.1} parent=11 // pred_check
          %p421 = pneg %p217
        $region38: #{tpu_custom_call.1} parent=11 // pred_check_branch
          %423 = sbr.rel (%p421) target = $region40
        $region39: #{tpu_custom_call.1} parent=11 // pred_region
          %s425 = ssub.s32 512, 512
          %426 = vsyncadd [#allocation8], %s425
          %s427 = sshll.u32 [#allocation9], 4
          %s428 = int_to_ptr.vmem [resolvable:$true] %s427
          %433 = dma.hbm_to_vmem [thread:$0]  %s7, 512, %s428, [#allocation8], 128, 128, 8
        $region40: #{tpu_custom_call.1} parent=11 // pred_fallthru
          _
        // Predicated region
        $region41: #{tpu_custom_call.1} parent=11 // pred_check
          %p434 = pneg %p238
        $region42: #{tpu_custom_call.1} parent=11 // pred_check_branch
          %436 = sbr.rel (%p434) target = $region44
        $region43: #{tpu_custom_call.1} parent=11 // pred_region
          %s438 = ssub.s32 16, 16
          %439 = vsyncadd [#allocation11], %s438
          %s441 = sshll.u32 [#allocation10], 4
          %s442 = int_to_ptr.vmem [resolvable:$true] %s441
          %444 = dma.hbm_to_vmem [thread:$0]  %s8, 16, %s442, [#allocation11]
        $region44: #{tpu_custom_call.1} parent=11 // pred_fallthru
          _
        // Predicated region
        $region45: #{tpu_custom_call.1} parent=11 // pred_check
          %p445 = pneg %p259
        $region46: #{tpu_custom_call.1} parent=11 // pred_check_branch
          %447 = sbr.rel (%p445) target = $region48
        $region47: #{tpu_custom_call.1} parent=11 // pred_region
          _
        $region48: #{tpu_custom_call.1} parent=11 // pred_fallthru
          _
        // Predicated region
        $region49: #{tpu_custom_call.1} parent=11 // pred_check
          %p448 = pneg %p280
        $region50: #{tpu_custom_call.1} parent=11 // pred_check_branch
          %450 = sbr.rel (%p448) target = $region52
        $region51: #{tpu_custom_call.1} parent=11 // pred_region
          _
        $region52: #{tpu_custom_call.1} parent=11 // pred_fallthru
          _
        // Predicated region
        $region53: #{tpu_custom_call.1} parent=11 // pred_check
          %p451 = pneg %p301
        $region54: #{tpu_custom_call.1} parent=11 // pred_check_branch
          %453 = sbr.rel (%p451) target = $region56
        $region55: #{tpu_custom_call.1} parent=11 // pred_region
          _
        $region56: #{tpu_custom_call.1} parent=11 // pred_fallthru
          _
        // Predicated region
        $region57: #{tpu_custom_call.1} parent=11 // pred_check
          %p454 = pneg %p322
        $region58: #{tpu_custom_call.1} parent=11 // pred_check_branch
          %456 = sbr.rel (%p454) target = $region60
        $region59: #{tpu_custom_call.1} parent=11 // pred_region
          _
        $region60: #{tpu_custom_call.1} parent=11 // pred_fallthru
          _
      $region12: #{tpu_custom_call.1} parent=5 // pred_fallthru
        _
      %p457 = scmp.lt.s32.totalorder %s32, 2
      // Predicated region
      $region61: #{tpu_custom_call.1} parent=5 // pred_check
        %p458 = pneg %p457
      $region62: #{tpu_custom_call.1} parent=5 // pred_check_branch
        %460 = sbr.rel (%p458) target = $region64
      $region63: #{tpu_custom_call.1} parent=5 // pred_region
        // Predicated region
        $region65: #{tpu_custom_call.1} parent=63 // pred_check
          %p461 = pneg %p64
        $region66: #{tpu_custom_call.1} parent=63 // pred_check_branch
          %463 = sbr.rel (%p461) target = $region68
        $region67: #{tpu_custom_call.1} parent=63 // pred_region
          %s464 = sand.u32 %s54, 1
          %s465 = scalar_lea.sflag [#allocation5], %s464
          %s466 = sand.u32 %s54, 1
          %s467 = smul.addr %s466, 8
          %s468 = scalar_lea.vmem [#allocation4], %s467
          %s470 = ssub.s32 128, 128
          %471 = vsyncadd %s465, %s470
          %s472 = smul.addr %s39, 128
          %s473 = scalar_lea.hbm %s0, %s472
          %s475 = sshll.u32 %s468, 4
          %s476 = int_to_ptr.vmem [resolvable:$true] %s475
          %478 = dma.hbm_to_vmem [thread:$0]  %s473, 128, %s476, %s465
        $region68: #{tpu_custom_call.1} parent=63 // pred_fallthru
          _
      $region64: #{tpu_custom_call.1} parent=5 // pred_fallthru
        _
      %p479 = scmp.le.s32.totalorder 1, %s32
      %p480 = scmp.lt.s32.totalorder %s32, 3
      %p481 = pnand %p479, %p480
      %p482 = pneg %p481
      // Predicated region
      $region69: #{tpu_custom_call.1} parent=5 // pred_check
        _
      $region70: #{tpu_custom_call.1} parent=5 // pred_check_branch
        %484 = sbr.rel (%p481) target = $region72
      $region71: #{tpu_custom_call.1} parent=5 // pred_region
        %s485 = ssub.s32 %s32, 1
        %s486 = sand.u32 %s57, 1
        %s487 = scalar_lea.sflag [#allocation5], %s486
        %s488 = sand.u32 %s57, 1
        %s489 = smul.addr %s488, 8
        %s490 = scalar_lea.vmem [#allocation4], %s489
        // Predicated region
        $region73: #{tpu_custom_call.1} parent=71 // pred_check
          %p491 = pneg %p70
        $region74: #{tpu_custom_call.1} parent=71 // pred_check_branch
          %493 = sbr.rel (%p491) target = $region76
        $region75: #{tpu_custom_call.1} parent=71 // pred_region
          %494 = dma.done %s487, 128
        $region76: #{tpu_custom_call.1} parent=71 // pred_fallthru
          _
        // Predicated region
        $region77: #{tpu_custom_call.1} parent=71 // pred_check
          %p495 = pneg %p154
        $region78: #{tpu_custom_call.1} parent=71 // pred_check_branch
          %497 = sbr.rel (%p495) target = $region80
        $region79: #{tpu_custom_call.1} parent=71 // pred_region
          %498 = dma.done [#allocation8], 512
        $region80: #{tpu_custom_call.1} parent=71 // pred_fallthru
          _
        // Predicated region
        $region81: #{tpu_custom_call.1} parent=71 // pred_check
          %p499 = pneg %p217
        $region82: #{tpu_custom_call.1} parent=71 // pred_check_branch
          %501 = sbr.rel (%p499) target = $region84
        $region83: #{tpu_custom_call.1} parent=71 // pred_region
          %502 = dma.done [#allocation8], 512
        $region84: #{tpu_custom_call.1} parent=71 // pred_fallthru
          _
        // Predicated region
        $region85: #{tpu_custom_call.1} parent=71 // pred_check
          %p503 = pneg %p238
        $region86: #{tpu_custom_call.1} parent=71 // pred_check_branch
          %505 = sbr.rel (%p503) target = $region88
        $region87: #{tpu_custom_call.1} parent=71 // pred_region
          %506 = dma.done [#allocation11], 16
        $region88: #{tpu_custom_call.1} parent=71 // pred_fallthru
          _
        %s507 = sand.u32 %s57, 1
        %s508 = scalar_lea.sflag [#allocation5], %s507
        %s509 = sand.u32 %s57, 1
        %s510 = smul.addr %s509, 8
        %s511 = scalar_lea.vmem [#allocation4], %s510
        %p512 = pneg %p70
        %p513 = pneg %p67
        %p514 = pneg %p91
        %p515 = pneg %p88
        %p516 = pneg %p112
        %p517 = pneg %p109
        %p518 = pneg %p133
        %p519 = pneg %p130
        %p520 = pneg %p154
        %p521 = pneg %p151
        %p522 = pneg %p175
        %p523 = pneg %p172
        %p524 = pneg %p196
        %p525 = pneg %p193
        %p526 = pneg %p217
        %p527 = pneg %p214
        %p528 = pneg %p238
        %p529 = pneg %p235
        %p530 = pneg %p259
        %p531 = pneg %p256
        %p532 = pneg %p280
        %p533 = pneg %p277
        %p534 = pneg %p301
        %p535 = pneg %p298
        %p536 = pneg %p322
        %p537 = pneg %p319
        %p538 = pneg %p350
        %p539 = pneg %p347
        %s540 = sand.u32 %s337, 1
        %s541 = scalar_lea.sflag [#allocation6], %s540
        %s542 = sand.u32 %s337, 1
        %s543 = smul.addr %s542, 8
        %s544 = scalar_lea.vmem [#allocation12], %s543
        %p545 = pneg %p378
        %p546 = pneg %p375
        %s547 = sand.u32 %s365, 1
        %s548 = scalar_lea.sflag [#allocation14], %s547
        %s549 = sand.u32 %s365, 1
        %s550 = smul.addr %s549, 32
        %s551 = scalar_lea.vmem [#allocation13], %s550
        %p552 = scmp.eq.s32.totalorder %s42, 0
        // Predicated region
        $region89: #{tpu_custom_call.1} parent=71 // pred_check
          %p553 = pneg %p552
        $region90: #{tpu_custom_call.1} parent=71 // pred_check_branch
          %555 = sbr.rel (%p553) target = $region92
        $region91: #{tpu_custom_call.1} parent=71 // pred_region
          %v556 = vld [vmem:[%s490] sm:$0xff]
          %v557 = vld [vmem:[%s2] sm:$0xff]
          %v558 = vld [vmem:[%s2 + $0x8] sm:$0xff]
          %v559 = vld [vmem:[%s2 + $0x10] sm:$0xff]
          %v560 = vld [vmem:[%s2 + $0x18] sm:$0xff]
          %vm561 = vcmask 261120
          %v563 = vsel %vm561, %v556, 0
          %565 = vmatprep.subr.mxu0 0.0
          %566 = vmatpush1.msra.mxu0 %v557
          %567 = vmatprep.subr.mxu0 0.0
          %568 = vmatpush1.msra.mxu0 %v558
          %569 = vmatprep.subr.mxu0 0.0
          %570 = vmatpush1.msra.mxu0 %v559
          %571 = vmatprep.subr.mxu0 0.0
          %572 = vmatpush1.msra.mxu0 %v560
          %573 = vmatprep.subr.mxu0 0.0
          %574 = vmatpush1.msra.mxu0 0.0
          %575 = vmatprep.subr.mxu0 0.0
          %576 = vmatpush1.msra.mxu0 0.0
          %577 = vmatprep.subr.mxu0 0.0
          %578 = vmatpush1.msra.mxu0 0.0
          %579 = vmatprep.subr.mxu0 0.0
          %580 = vmatpush1.msra.mxu0 0.0
          %581 = vmatprep.subr.mxu0 0.0
          %582 = vmatpush1.msra.mxu0 0.0
          %583 = vmatprep.subr.mxu0 0.0
          %584 = vmatpush1.msra.mxu0 0.0
          %585 = vmatprep.subr.mxu0 0.0
          %586 = vmatpush1.msra.mxu0 0.0
          %587 = vmatprep.subr.mxu0 0.0
          %588 = vmatpush1.msra.mxu0 0.0
          %589 = vmatprep.subr.mxu0 0.0
          %590 = vmatpush1.msra.mxu0 0.0
          %591 = vmatprep.subr.mxu0 0.0
          %592 = vmatpush1.msra.mxu0 0.0
          %593 = vmatprep.subr.mxu0 0.0
          %594 = vmatpush1.msra.mxu0 0.0
          %595 = vmatprep.subr.mxu0 0.0
          %596 = vmatpush1.msra.mxu0 0.0
          %597 = vmatprep.subr.mxu0 0.0
          %598 = vmatpush1.msra.mxu0 0.0
          %599 = vmatprep.subr.mxu0 0.0
          %600 = vmatpush1.msra.mxu0 0.0
          %601 = vmatprep.subr.mxu0 0.0
          %602 = vmatpush1.msra.mxu0 0.0
          %603 = vmatprep.subr.mxu0 0.0
          %604 = vmatpush1.msra.mxu0 0.0
          %605 = vmatprep.subr.mxu0 0.0
          %606 = vmatpush1.msra.mxu0 0.0
          %607 = vmatprep.subr.mxu0 0.0
          %608 = vmatpush1.msra.mxu0 0.0
          %609 = vmatprep.subr.mxu0 0.0
          %610 = vmatpush1.msra.mxu0 0.0
          %611 = vmatprep.subr.mxu0 0.0
          %612 = vmatpush1.msra.mxu0 0.0
          %613 = vmatprep.subr.mxu0 0.0
          %614 = vmatpush1.msra.mxu0 0.0
          %615 = vmatprep.subr.mxu0 0.0
          %616 = vmatpush1.msra.mxu0 0.0
          %617 = vmatprep.subr.mxu0 0.0
          %618 = vmatpush1.msra.mxu0 0.0
          %619 = vmatprep.subr.mxu0 0.0
          %620 = vmatpush1.msra.mxu0 0.0
          %621 = vmatprep.subr.mxu0 0.0
          %622 = vmatpush1.msra.mxu0 0.0
          %623 = vmatprep.subr.mxu0 0.0
          %624 = vmatpush1.msra.mxu0 0.0
          %625 = vmatprep.subr.mxu0 0.0
          %626 = vmatpush1.msra.mxu0 0.0
          %627 = vmatprep.subr.mxu0 0.0
          %628 = vmatpush1.msra.mxu0 0.0
          %629 = vmatprep.mubr.f32.mxu0 0.0
          %630 = vmatmul.mubr.f32.gmra.mrb[0].mxu0 %v563
          %v631 = vpop.f32.mrb[0].mxu0
          %v632 = vadd.f32 0.0, %v631
          %v633 = vpop.f32.mrb[0].mxu0
          %634 = vdwg.mxu0
          %635 = vst.msk [vmem:[#allocation2] sm:$0xff] %vm561, %v632
          %v636 = vld [vmem:[%s3] sm:$0xff]
          %v637 = vld [vmem:[%s3 + $0x8] sm:$0xff]
          %v638 = vld [vmem:[%s3 + $0x10] sm:$0xff]
          %v639 = vld [vmem:[%s3 + $0x18] sm:$0xff]
          %640 = vmatprep.subr.mxu0 0.0
          %641 = vmatpush1.msra.mxu0 %v636
          %642 = vmatprep.subr.mxu0 0.0
          %643 = vmatpush1.msra.mxu0 %v637
          %644 = vmatprep.subr.mxu0 0.0
          %645 = vmatpush1.msra.mxu0 %v638
          %646 = vmatprep.subr.mxu0 0.0
          %647 = vmatpush1.msra.mxu0 %v639
          %648 = vmatprep.subr.mxu0 0.0
          %649 = vmatpush1.msra.mxu0 0.0
          %650 = vmatprep.subr.mxu0 0.0
          %651 = vmatpush1.msra.mxu0 0.0
          %652 = vmatprep.subr.mxu0 0.0
          %653 = vmatpush1.msra.mxu0 0.0
          %654 = vmatprep.subr.mxu0 0.0
          %655 = vmatpush1.msra.mxu0 0.0
          %656 = vmatprep.subr.mxu0 0.0
          %657 = vmatpush1.msra.mxu0 0.0
          %658 = vmatprep.subr.mxu0 0.0
          %659 = vmatpush1.msra.mxu0 0.0
          %660 = vmatprep.subr.mxu0 0.0
          %661 = vmatpush1.msra.mxu0 0.0
          %662 = vmatprep.subr.mxu0 0.0
          %663 = vmatpush1.msra.mxu0 0.0
          %664 = vmatprep.subr.mxu0 0.0
          %665 = vmatpush1.msra.mxu0 0.0
          %666 = vmatprep.subr.mxu0 0.0
          %667 = vmatpush1.msra.mxu0 0.0
          %668 = vmatprep.subr.mxu0 0.0
          %669 = vmatpush1.msra.mxu0 0.0
          %670 = vmatprep.subr.mxu0 0.0
          %671 = vmatpush1.msra.mxu0 0.0
          %672 = vmatprep.subr.mxu0 0.0
          %673 = vmatpush1.msra.mxu0 0.0
          %674 = vmatprep.subr.mxu0 0.0
          %675 = vmatpush1.msra.mxu0 0.0
          %676 = vmatprep.subr.mxu0 0.0
          %677 = vmatpush1.msra.mxu0 0.0
          %678 = vmatprep.subr.mxu0 0.0
          %679 = vmatpush1.msra.mxu0 0.0
          %680 = vmatprep.subr.mxu0 0.0
          %681 = vmatpush1.msra.mxu0 0.0
          %682 = vmatprep.subr.mxu0 0.0
          %683 = vmatpush1.msra.mxu0 0.0
          %684 = vmatprep.subr.mxu0 0.0
          %685 = vmatpush1.msra.mxu0 0.0
          %686 = vmatprep.subr.mxu0 0.0
          %687 = vmatpush1.msra.mxu0 0.0
          %688 = vmatprep.subr.mxu0 0.0
          %689 = vmatpush1.msra.mxu0 0.0
          %690 = vmatprep.subr.mxu0 0.0
          %691 = vmatpush1.msra.mxu0 0.0
          %692 = vmatprep.subr.mxu0 0.0
          %693 = vmatpush1.msra.mxu0 0.0
          %694 = vmatprep.subr.mxu0 0.0
          %695 = vmatpush1.msra.mxu0 0.0
          %696 = vmatprep.subr.mxu0 0.0
          %697 = vmatpush1.msra.mxu0 0.0
          %698 = vmatprep.subr.mxu0 0.0
          %699 = vmatpush1.msra.mxu0 0.0
          %700 = vmatprep.subr.mxu0 0.0
          %701 = vmatpush1.msra.mxu0 0.0
          %702 = vmatprep.subr.mxu0 0.0
          %703 = vmatpush1.msra.mxu0 0.0
          %704 = vmatprep.mubr.f32.mxu0 0.0
          %705 = vmatmul.mubr.f32.gmra.mrb[0].mxu0 %v563
          %v706 = vpop.f32.mrb[0].mxu0
          %v707 = vadd.f32 0.0, %v706
          %v708 = vpop.f32.mrb[0].mxu0
          %709 = vdwg.mxu0
          %710 = vst.msk [vmem:[#allocation3] sm:$0xff] %vm561, %v707
        $region92: #{tpu_custom_call.1} parent=71 // pred_fallthru
          _
        %s711 = smul.u32 %s42, 8
        %s712 = scalar_lea.vmem %s490, %s711 [#allocation4]
        %v713 = vld [vmem:[%s712] sm:$0xff]
        %v714 = vld [vmem:[%s1] sm:$0xff]
        %v715 = vld [vmem:[%s1 + $0x8] sm:$0xff]
        %v716 = vld [vmem:[%s1 + $0x10] sm:$0xff]
        %v717 = vld [vmem:[%s1 + $0x18] sm:$0xff]
        %vm718 = vcmask 261120
        %v720 = vsel %vm718, %v713, 0
        %722 = vmatprep.subr.mxu0 0.0
        %723 = vmatpush1.msra.mxu0 %v714
        %724 = vmatprep.subr.mxu0 0.0
        %725 = vmatpush1.msra.mxu0 %v715
        %726 = vmatprep.subr.mxu0 0.0
        %727 = vmatpush1.msra.mxu0 %v716
        %728 = vmatprep.subr.mxu0 0.0
        %729 = vmatpush1.msra.mxu0 %v717
        %730 = vmatprep.subr.mxu0 0.0
        %731 = vmatpush1.msra.mxu0 0.0
        %732 = vmatprep.subr.mxu0 0.0
        %733 = vmatpush1.msra.mxu0 0.0
        %734 = vmatprep.subr.mxu0 0.0
        %735 = vmatpush1.msra.mxu0 0.0
        %736 = vmatprep.subr.mxu0 0.0
        %737 = vmatpush1.msra.mxu0 0.0
        %738 = vmatprep.subr.mxu0 0.0
        %739 = vmatpush1.msra.mxu0 0.0
        %740 = vmatprep.subr.mxu0 0.0
        %741 = vmatpush1.msra.mxu0 0.0
        %742 = vmatprep.subr.mxu0 0.0
        %743 = vmatpush1.msra.mxu0 0.0
        %744 = vmatprep.subr.mxu0 0.0
        %745 = vmatpush1.msra.mxu0 0.0
        %746 = vmatprep.subr.mxu0 0.0
        %747 = vmatpush1.msra.mxu0 0.0
        %748 = vmatprep.subr.mxu0 0.0
        %749 = vmatpush1.msra.mxu0 0.0
        %750 = vmatprep.subr.mxu0 0.0
        %751 = vmatpush1.msra.mxu0 0.0
        %752 = vmatprep.subr.mxu0 0.0
        %753 = vmatpush1.msra.mxu0 0.0
        %754 = vmatprep.subr.mxu0 0.0
        %755 = vmatpush1.msra.mxu0 0.0
        %756 = vmatprep.subr.mxu0 0.0
        %757 = vmatpush1.msra.mxu0 0.0
        %758 = vmatprep.subr.mxu0 0.0
        %759 = vmatpush1.msra.mxu0 0.0
        %760 = vmatprep.subr.mxu0 0.0
        %761 = vmatpush1.msra.mxu0 0.0
        %762 = vmatprep.subr.mxu0 0.0
        %763 = vmatpush1.msra.mxu0 0.0
        %764 = vmatprep.subr.mxu0 0.0
        %765 = vmatpush1.msra.mxu0 0.0
        %766 = vmatprep.subr.mxu0 0.0
        %767 = vmatpush1.msra.mxu0 0.0
        %768 = vmatprep.subr.mxu0 0.0
        %769 = vmatpush1.msra.mxu0 0.0
        %770 = vmatprep.subr.mxu0 0.0
        %771 = vmatpush1.msra.mxu0 0.0
        %772 = vmatprep.subr.mxu0 0.0
        %773 = vmatpush1.msra.mxu0 0.0
        %774 = vmatprep.subr.mxu0 0.0
        %775 = vmatpush1.msra.mxu0 0.0
        %776 = vmatprep.subr.mxu0 0.0
        %777 = vmatpush1.msra.mxu0 0.0
        %778 = vmatprep.subr.mxu0 0.0
        %779 = vmatpush1.msra.mxu0 0.0
        %780 = vmatprep.subr.mxu0 0.0
        %781 = vmatpush1.msra.mxu0 0.0
        %782 = vmatprep.subr.mxu0 0.0
        %783 = vmatpush1.msra.mxu0 0.0
        %784 = vmatprep.subr.mxu0 0.0
        %785 = vmatpush1.msra.mxu0 0.0
        %786 = vmatprep.mubr.f32.mxu0 0.0
        %787 = vmatmul.mubr.f32.gmra.mrb[0].mxu0 %v720
        %v788 = vpop.f32.mrb[0].mxu0
        %v789 = vadd.f32 0.0, %v788
        %v790 = vpop.f32.mrb[0].mxu0
        %791 = vdwg.mxu0
        %v792 = vmul.f32 %v789, 0.35355338
        %794 = vrot.lane.b32.xlu0 %v792, 120
        %v795 = vpop.permute.xlu0 %794
        %797 = vrot.lane.b32.xlu0 %v792, 112
        %v798 = vpop.permute.xlu0 %797
        %800 = vrot.lane.b32.xlu0 %v792, 104
        %v801 = vpop.permute.xlu0 %800
        %v803 = vcombine.low %v792, %v798
        %v804 = vcombine.high %v792, %v798
        %v806 = vunpack.c.l.s4 1983009808
        %v807 = vunpack.c.0.s8 %v806
        %v808 = vlaneseq
        %v809 = vshrl.u32 %v808, 7
        %v810 = vsub.s32 %v807, %v809
        %v811 = vrot.slane %v803, %v810
        %v813 = vunpack.c.l.s4 1983009808
        %v814 = vunpack.c.0.s8 %v813
        %v815 = vlaneseq
        %v816 = vshrl.u32 %v815, 7
        %v817 = vsub.s32 %v814, %v816
        %v818 = vrot.slane %v804, %v817
        %v819 = vcombine.low %v795, %v801
        %v820 = vcombine.high %v795, %v801
        %v822 = vunpack.c.l.s4 1983009808
        %v823 = vunpack.c.0.s8 %v822
        %v824 = vlaneseq
        %v825 = vshrl.u32 %v824, 7
        %v826 = vsub.s32 %v823, %v825
        %v827 = vrot.slane %v819, %v826
        %v829 = vunpack.c.l.s4 1983009808
        %v830 = vunpack.c.0.s8 %v829
        %v831 = vlaneseq
        %v832 = vshrl.u32 %v831, 7
        %v833 = vsub.s32 %v830, %v832
        %v834 = vrot.slane %v820, %v833
        %v835 = vcombine.low %v811, %v827
        %v836 = vcombine.high %v811, %v827
        %v838 = vunpack.c.l.s4 1934713408
        %v839 = vunpack.c.0.s8 %v838
        %v840 = vlaneseq
        %v841 = vshrl.u32 %v840, 7
        %v842 = vsub.s32 %v839, %v841
        %v843 = vrot.slane %v835, %v842
        %v845 = vunpack.c.l.s4 1934713408
        %v846 = vunpack.c.0.s8 %v845
        %v847 = vlaneseq
        %v848 = vshrl.u32 %v847, 7
        %v849 = vsub.s32 %v846, %v848
        %v850 = vrot.slane %v836, %v849
        %v851 = vcombine.low %v818, %v834
        %v852 = vcombine.high %v818, %v834
        %v854 = vunpack.c.l.s4 1934713408
        %v855 = vunpack.c.0.s8 %v854
        %v856 = vlaneseq
        %v857 = vshrl.u32 %v856, 7
        %v858 = vsub.s32 %v855, %v857
        %v859 = vrot.slane %v851, %v858
        %v861 = vunpack.c.l.s4 1934713408
        %v862 = vunpack.c.0.s8 %v861
        %v863 = vlaneseq
        %v864 = vshrl.u32 %v863, 7
        %v865 = vsub.s32 %v862, %v864
        %v866 = vrot.slane %v852, %v865
        %v867 = vcombine.high %v843, 0.0
        %v868 = vcombine.high %v850, 0.0
        %v869 = vcombine.high %v859, 0.0
        %v870 = vcombine.high %v866, 0.0
        %v871 = vcombine.low %v843, %v850
        %v873 = vunpack.c.l.s4 1983009808
        %v874 = vunpack.c.0.s8 %v873
        %v875 = vlaneseq
        %v876 = vshrl.u32 %v875, 7
        %v877 = vsub.s32 %v874, %v876
        %v878 = vrot.slane %v871, %v877
        %v879 = vcombine.low %v867, %v868
        %v881 = vunpack.c.l.s4 1983009808
        %v882 = vunpack.c.0.s8 %v881
        %v883 = vlaneseq
        %v884 = vshrl.u32 %v883, 7
        %v885 = vsub.s32 %v882, %v884
        %v886 = vrot.slane %v879, %v885
        %v887 = vcombine.low %v859, %v866
        %v889 = vunpack.c.l.s4 1983009808
        %v890 = vunpack.c.0.s8 %v889
        %v891 = vlaneseq
        %v892 = vshrl.u32 %v891, 7
        %v893 = vsub.s32 %v890, %v892
        %v894 = vrot.slane %v887, %v893
        %v895 = vcombine.low %v869, %v870
        %v897 = vunpack.c.l.s4 1983009808
        %v898 = vunpack.c.0.s8 %v897
        %v899 = vlaneseq
        %v900 = vshrl.u32 %v899, 7
        %v901 = vsub.s32 %v898, %v900
        %v902 = vrot.slane %v895, %v901
        %v903 = vcombine.low %v878, %v886
        %v904 = vcombine.high %v878, %v886
        %v906 = vunpack.c.l.s4 1934713408
        %v907 = vunpack.c.0.s8 %v906
        %v908 = vlaneseq
        %v909 = vshrl.u32 %v908, 7
        %v910 = vsub.s32 %v907, %v909
        %v911 = vrot.slane %v903, %v910
        %v913 = vunpack.c.l.s4 1934713408
        %v914 = vunpack.c.0.s8 %v913
        %v915 = vlaneseq
        %v916 = vshrl.u32 %v915, 7
        %v917 = vsub.s32 %v914, %v916
        %v918 = vrot.slane %v904, %v917
        %v919 = vcombine.low %v894, %v902
        %v920 = vcombine.high %v894, %v902
        %v922 = vunpack.c.l.s4 1934713408
        %v923 = vunpack.c.0.s8 %v922
        %v924 = vlaneseq
        %v925 = vshrl.u32 %v924, 7
        %v926 = vsub.s32 %v923, %v925
        %v927 = vrot.slane %v919, %v926
        %v929 = vunpack.c.l.s4 1934713408
        %v930 = vunpack.c.0.s8 %v929
        %v931 = vlaneseq
        %v932 = vshrl.u32 %v931, 7
        %v933 = vsub.s32 %v930, %v932
        %v934 = vrot.slane %v920, %v933
        %v935 = vcombine.low %v911, %v927
        %v936 = vcombine.high %v911, %v927
        %v937 = vcombine.low %v918, %v934
        %v938 = vcombine.high %v918, %v934
        %v939 = vld [vmem:[#allocation2] sm:$0xff]
        %941 = vrot.lane.b32.xlu0 %v939, 120
        %v942 = vpop.permute.xlu0 %941
        %944 = vrot.lane.b32.xlu0 %v939, 112
        %v945 = vpop.permute.xlu0 %944
        %947 = vrot.lane.b32.xlu0 %v939, 104
        %v948 = vpop.permute.xlu0 %947
        %v950 = vcombine.low %v939, %v945
        %v951 = vcombine.high %v939, %v945
        %v953 = vunpack.c.l.s4 1983009808
        %v954 = vunpack.c.0.s8 %v953
        %v955 = vlaneseq
        %v956 = vshrl.u32 %v955, 7
        %v957 = vsub.s32 %v954, %v956
        %v958 = vrot.slane %v950, %v957
        %v960 = vunpack.c.l.s4 1983009808
        %v961 = vunpack.c.0.s8 %v960
        %v962 = vlaneseq
        %v963 = vshrl.u32 %v962, 7
        %v964 = vsub.s32 %v961, %v963
        %v965 = vrot.slane %v951, %v964
        %v966 = vcombine.low %v942, %v948
        %v967 = vcombine.high %v942, %v948
        %v969 = vunpack.c.l.s4 1983009808
        %v970 = vunpack.c.0.s8 %v969
        %v971 = vlaneseq
        %v972 = vshrl.u32 %v971, 7
        %v973 = vsub.s32 %v970, %v972
        %v974 = vrot.slane %v966, %v973
        %v976 = vunpack.c.l.s4 1983009808
        %v977 = vunpack.c.0.s8 %v976
        %v978 = vlaneseq
        %v979 = vshrl.u32 %v978, 7
        %v980 = vsub.s32 %v977, %v979
        %v981 = vrot.slane %v967, %v980
        %v982 = vcombine.low %v958, %v974
        %v983 = vcombine.high %v958, %v974
        %v985 = vunpack.c.l.s4 1934713408
        %v986 = vunpack.c.0.s8 %v985
        %v987 = vlaneseq
        %v988 = vshrl.u32 %v987, 7
        %v989 = vsub.s32 %v986, %v988
        %v990 = vrot.slane %v982, %v989
        %v992 = vunpack.c.l.s4 1934713408
        %v993 = vunpack.c.0.s8 %v992
        %v994 = vlaneseq
        %v995 = vshrl.u32 %v994, 7
        %v996 = vsub.s32 %v993, %v995
        %v997 = vrot.slane %v983, %v996
        %v998 = vcombine.low %v965, %v981
        %v999 = vcombine.high %v965, %v981
        %v1001 = vunpack.c.l.s4 1934713408
        %v1002 = vunpack.c.0.s8 %v1001
        %v1003 = vlaneseq
        %v1004 = vshrl.u32 %v1003, 7
        %v1005 = vsub.s32 %v1002, %v1004
        %v1006 = vrot.slane %v998, %v1005
        %v1008 = vunpack.c.l.s4 1934713408
        %v1009 = vunpack.c.0.s8 %v1008
        %v1010 = vlaneseq
        %v1011 = vshrl.u32 %v1010, 7
        %v1012 = vsub.s32 %v1009, %v1011
        %v1013 = vrot.slane %v999, %v1012
        %v1014 = vcombine.high %v990, 0.0
        %v1015 = vcombine.high %v997, 0.0
        %v1016 = vcombine.high %v1006, 0.0
        %v1017 = vcombine.high %v1013, 0.0
        %v1018 = vcombine.low %v990, %v997
        %v1020 = vunpack.c.l.s4 1983009808
        %v1021 = vunpack.c.0.s8 %v1020
        %v1022 = vlaneseq
        %v1023 = vshrl.u32 %v1022, 7
        %v1024 = vsub.s32 %v1021, %v1023
        %v1025 = vrot.slane %v1018, %v1024
        %v1026 = vcombine.low %v1014, %v1015
        %v1028 = vunpack.c.l.s4 1983009808
        %v1029 = vunpack.c.0.s8 %v1028
        %v1030 = vlaneseq
        %v1031 = vshrl.u32 %v1030, 7
        %v1032 = vsub.s32 %v1029, %v1031
        %v1033 = vrot.slane %v1026, %v1032
        %v1034 = vcombine.low %v1006, %v1013
        %v1036 = vunpack.c.l.s4 1983009808
        %v1037 = vunpack.c.0.s8 %v1036
        %v1038 = vlaneseq
        %v1039 = vshrl.u32 %v1038, 7
        %v1040 = vsub.s32 %v1037, %v1039
        %v1041 = vrot.slane %v1034, %v1040
        %v1042 = vcombine.low %v1016, %v1017
        %v1044 = vunpack.c.l.s4 1983009808
        %v1045 = vunpack.c.0.s8 %v1044
        %v1046 = vlaneseq
        %v1047 = vshrl.u32 %v1046, 7
        %v1048 = vsub.s32 %v1045, %v1047
        %v1049 = vrot.slane %v1042, %v1048
        %v1050 = vcombine.low %v1025, %v1033
        %v1051 = vcombine.high %v1025, %v1033
        %v1053 = vunpack.c.l.s4 1934713408
        %v1054 = vunpack.c.0.s8 %v1053
        %v1055 = vlaneseq
        %v1056 = vshrl.u32 %v1055, 7
        %v1057 = vsub.s32 %v1054, %v1056
        %v1058 = vrot.slane %v1050, %v1057
        %v1060 = vunpack.c.l.s4 1934713408
        %v1061 = vunpack.c.0.s8 %v1060
        %v1062 = vlaneseq
        %v1063 = vshrl.u32 %v1062, 7
        %v1064 = vsub.s32 %v1061, %v1063
        %v1065 = vrot.slane %v1051, %v1064
        %v1066 = vcombine.low %v1041, %v1049
        %v1067 = vcombine.high %v1041, %v1049
        %v1069 = vunpack.c.l.s4 1934713408
        %v1070 = vunpack.c.0.s8 %v1069
        %v1071 = vlaneseq
        %v1072 = vshrl.u32 %v1071, 7
        %v1073 = vsub.s32 %v1070, %v1072
        %v1074 = vrot.slane %v1066, %v1073
        %v1076 = vunpack.c.l.s4 1934713408
        %v1077 = vunpack.c.0.s8 %v1076
        %v1078 = vlaneseq
        %v1079 = vshrl.u32 %v1078, 7
        %v1080 = vsub.s32 %v1077, %v1079
        %v1081 = vrot.slane %v1067, %v1080
        %v1082 = vcombine.low %v1058, %v1074
        %v1083 = vcombine.high %v1058, %v1074
        %v1084 = vcombine.low %v1065, %v1081
        %v1085 = vcombine.high %v1065, %v1081
        %v1086 = vld [vmem:[#allocation3] sm:$0xff]
        %1088 = vrot.lane.b32.xlu0 %v1086, 120
        %v1089 = vpop.permute.xlu0 %1088
        %1091 = vrot.lane.b32.xlu0 %v1086, 112
        %v1092 = vpop.permute.xlu0 %1091
        %1094 = vrot.lane.b32.xlu0 %v1086, 104
        %v1095 = vpop.permute.xlu0 %1094
        %v1097 = vcombine.low %v1086, %v1092
        %v1098 = vcombine.high %v1086, %v1092
        %v1100 = vunpack.c.l.s4 1983009808
        %v1101 = vunpack.c.0.s8 %v1100
        %v1102 = vlaneseq
        %v1103 = vshrl.u32 %v1102, 7
        %v1104 = vsub.s32 %v1101, %v1103
        %v1105 = vrot.slane %v1097, %v1104
        %v1107 = vunpack.c.l.s4 1983009808
        %v1108 = vunpack.c.0.s8 %v1107
        %v1109 = vlaneseq
        %v1110 = vshrl.u32 %v1109, 7
        %v1111 = vsub.s32 %v1108, %v1110
        %v1112 = vrot.slane %v1098, %v1111
        %v1113 = vcombine.low %v1089, %v1095
        %v1114 = vcombine.high %v1089, %v1095
        %v1116 = vunpack.c.l.s4 1983009808
        %v1117 = vunpack.c.0.s8 %v1116
        %v1118 = vlaneseq
        %v1119 = vshrl.u32 %v1118, 7
        %v1120 = vsub.s32 %v1117, %v1119
        %v1121 = vrot.slane %v1113, %v1120
        %v1123 = vunpack.c.l.s4 1983009808
        %v1124 = vunpack.c.0.s8 %v1123
        %v1125 = vlaneseq
        %v1126 = vshrl.u32 %v1125, 7
        %v1127 = vsub.s32 %v1124, %v1126
        %v1128 = vrot.slane %v1114, %v1127
        %v1129 = vcombine.low %v1105, %v1121
        %v1130 = vcombine.high %v1105, %v1121
        %v1132 = vunpack.c.l.s4 1934713408
        %v1133 = vunpack.c.0.s8 %v1132
        %v1134 = vlaneseq
        %v1135 = vshrl.u32 %v1134, 7
        %v1136 = vsub.s32 %v1133, %v1135
        %v1137 = vrot.slane %v1129, %v1136
        %v1139 = vunpack.c.l.s4 1934713408
        %v1140 = vunpack.c.0.s8 %v1139
        %v1141 = vlaneseq
        %v1142 = vshrl.u32 %v1141, 7
        %v1143 = vsub.s32 %v1140, %v1142
        %v1144 = vrot.slane %v1130, %v1143
        %v1145 = vcombine.low %v1112, %v1128
        %v1146 = vcombine.high %v1112, %v1128
        %v1148 = vunpack.c.l.s4 1934713408
        %v1149 = vunpack.c.0.s8 %v1148
        %v1150 = vlaneseq
        %v1151 = vshrl.u32 %v1150, 7
        %v1152 = vsub.s32 %v1149, %v1151
        %v1153 = vrot.slane %v1145, %v1152
        %v1155 = vunpack.c.l.s4 1934713408
        %v1156 = vunpack.c.0.s8 %v1155
        %v1157 = vlaneseq
        %v1158 = vshrl.u32 %v1157, 7
        %v1159 = vsub.s32 %v1156, %v1158
        %v1160 = vrot.slane %v1146, %v1159
        %v1161 = vcombine.high %v1137, 0.0
        %v1162 = vcombine.high %v1144, 0.0
        %v1163 = vcombine.high %v1153, 0.0
        %v1164 = vcombine.high %v1160, 0.0
        %v1165 = vcombine.low %v1137, %v1144
        %v1167 = vunpack.c.l.s4 1983009808
        %v1168 = vunpack.c.0.s8 %v1167
        %v1169 = vlaneseq
        %v1170 = vshrl.u32 %v1169, 7
        %v1171 = vsub.s32 %v1168, %v1170
        %v1172 = vrot.slane %v1165, %v1171
        %v1173 = vcombine.low %v1161, %v1162
        %v1175 = vunpack.c.l.s4 1983009808
        %v1176 = vunpack.c.0.s8 %v1175
        %v1177 = vlaneseq
        %v1178 = vshrl.u32 %v1177, 7
        %v1179 = vsub.s32 %v1176, %v1178
        %v1180 = vrot.slane %v1173, %v1179
        %v1181 = vcombine.low %v1153, %v1160
        %v1183 = vunpack.c.l.s4 1983009808
        %v1184 = vunpack.c.0.s8 %v1183
        %v1185 = vlaneseq
        %v1186 = vshrl.u32 %v1185, 7
        %v1187 = vsub.s32 %v1184, %v1186
        %v1188 = vrot.slane %v1181, %v1187
        %v1189 = vcombine.low %v1163, %v1164
        %v1191 = vunpack.c.l.s4 1983009808
        %v1192 = vunpack.c.0.s8 %v1191
        %v1193 = vlaneseq
        %v1194 = vshrl.u32 %v1193, 7
        %v1195 = vsub.s32 %v1192, %v1194
        %v1196 = vrot.slane %v1189, %v1195
        %v1197 = vcombine.low %v1172, %v1180
        %v1198 = vcombine.high %v1172, %v1180
        %v1200 = vunpack.c.l.s4 1934713408
        %v1201 = vunpack.c.0.s8 %v1200
        %v1202 = vlaneseq
        %v1203 = vshrl.u32 %v1202, 7
        %v1204 = vsub.s32 %v1201, %v1203
        %v1205 = vrot.slane %v1197, %v1204
        %v1207 = vunpack.c.l.s4 1934713408
        %v1208 = vunpack.c.0.s8 %v1207
        %v1209 = vlaneseq
        %v1210 = vshrl.u32 %v1209, 7
        %v1211 = vsub.s32 %v1208, %v1210
        %v1212 = vrot.slane %v1198, %v1211
        %v1213 = vcombine.low %v1188, %v1196
        %v1214 = vcombine.high %v1188, %v1196
        %v1216 = vunpack.c.l.s4 1934713408
        %v1217 = vunpack.c.0.s8 %v1216
        %v1218 = vlaneseq
        %v1219 = vshrl.u32 %v1218, 7
        %v1220 = vsub.s32 %v1217, %v1219
        %v1221 = vrot.slane %v1213, %v1220
        %v1223 = vunpack.c.l.s4 1934713408
        %v1224 = vunpack.c.0.s8 %v1223
        %v1225 = vlaneseq
        %v1226 = vshrl.u32 %v1225, 7
        %v1227 = vsub.s32 %v1224, %v1226
        %v1228 = vrot.slane %v1214, %v1227
        %v1229 = vcombine.low %v1205, %v1221
        %v1230 = vcombine.high %v1205, %v1221
        %v1231 = vcombine.low %v1212, %v1228
        %v1232 = vcombine.high %v1212, %v1228
        %vm1233 = vcmask 64512
        %v1235 = vsel %vm1233, %v935, 0
        %v1238 = vsel %vm1233, %v1082, 0
        %1240 = vmatprep.subr.mxu0 0.0
        %1241 = vmatpush1.xpose.msra.mxu0 %v1238
        %1242 = vmatprep.subr.mxu0 0.0
        %1243 = vmatpush1.xpose.msra.mxu0 0.0
        %1244 = vmatprep.subr.mxu0 0.0
        %1245 = vmatpush1.xpose.msra.mxu0 0.0
        %1246 = vmatprep.subr.mxu0 0.0
        %1247 = vmatpush1.xpose.msra.mxu0 0.0
        %1248 = vmatprep.subr.mxu0 0.0
        %1249 = vmatpush1.xpose.msra.mxu0 0.0
        %1250 = vmatprep.subr.mxu0 0.0
        %1251 = vmatpush1.xpose.msra.mxu0 0.0
        %1252 = vmatprep.subr.mxu0 0.0
        %1253 = vmatpush1.xpose.msra.mxu0 0.0
        %1254 = vmatprep.subr.mxu0 0.0
        %1255 = vmatpush1.xpose.msra.mxu0 0.0
        %1256 = vmatprep.subr.mxu0 0.0
        %1257 = vmatpush1.xpose.msra.mxu0 0.0
        %1258 = vmatprep.subr.mxu0 0.0
        %1259 = vmatpush1.xpose.msra.mxu0 0.0
        %1260 = vmatprep.subr.mxu0 0.0
        %1261 = vmatpush1.xpose.msra.mxu0 0.0
        %1262 = vmatprep.subr.mxu0 0.0
        %1263 = vmatpush1.xpose.msra.mxu0 0.0
        %1264 = vmatprep.subr.mxu0 0.0
        %1265 = vmatpush1.xpose.msra.mxu0 0.0
        %1266 = vmatprep.subr.mxu0 0.0
        %1267 = vmatpush1.xpose.msra.mxu0 0.0
        %1268 = vmatprep.subr.mxu0 0.0
        %1269 = vmatpush1.xpose.msra.mxu0 0.0
        %1270 = vmatprep.subr.mxu0 0.0
        %1271 = vmatpush1.xpose.msra.mxu0 0.0
        %1272 = vmatprep.subr.mxu0 0.0
        %1273 = vmatpush1.xpose.msra.mxu0 0.0
        %1274 = vmatprep.subr.mxu0 0.0
        %1275 = vmatpush1.xpose.msra.mxu0 0.0
        %1276 = vmatprep.subr.mxu0 0.0
        %1277 = vmatpush1.xpose.msra.mxu0 0.0
        %1278 = vmatprep.subr.mxu0 0.0
        %1279 = vmatpush1.xpose.msra.mxu0 0.0
        %1280 = vmatprep.subr.mxu0 0.0
        %1281 = vmatpush1.xpose.msra.mxu0 0.0
        %1282 = vmatprep.subr.mxu0 0.0
        %1283 = vmatpush1.xpose.msra.mxu0 0.0
        %1284 = vmatprep.subr.mxu0 0.0
        %1285 = vmatpush1.xpose.msra.mxu0 0.0
        %1286 = vmatprep.subr.mxu0 0.0
        %1287 = vmatpush1.xpose.msra.mxu0 0.0
        %1288 = vmatprep.subr.mxu0 0.0
        %1289 = vmatpush1.xpose.msra.mxu0 0.0
        %1290 = vmatprep.subr.mxu0 0.0
        %1291 = vmatpush1.xpose.msra.mxu0 0.0
        %1292 = vmatprep.subr.mxu0 0.0
        %1293 = vmatpush1.xpose.msra.mxu0 0.0
        %1294 = vmatprep.subr.mxu0 0.0
        %1295 = vmatpush1.xpose.msra.mxu0 0.0
        %1296 = vmatprep.subr.mxu0 0.0
        %1297 = vmatpush1.xpose.msra.mxu0 0.0
        %1298 = vmatprep.subr.mxu0 0.0
        %1299 = vmatpush1.xpose.msra.mxu0 0.0
        %1300 = vmatprep.subr.mxu0 0.0
        %1301 = vmatpush1.xpose.msra.mxu0 0.0
        %1302 = vmatprep.subr.mxu0 0.0
        %1303 = vmatpush1.xpose.msra.mxu0 0.0
        %1304 = vmatprep.mubr.f32.mxu0 0.0
        %1305 = vmatmul.mubr.f32.gmra.mrb[0].mxu0 %v1235
        %v1306 = vpop.f32.mrb[0].mxu0
        %v1307 = vadd.f32 0.0, %v1306
        %v1308 = vpop.f32.mrb[0].mxu0
        %1309 = vdwg.mxu0
        %v1311 = vsel %vm1233, %v936, 0
        %v1314 = vsel %vm1233, %v1083, 0
        %1316 = vmatprep.subr.mxu0 0.0
        %1317 = vmatpush1.xpose.msra.mxu0 %v1314
        %1318 = vmatprep.subr.mxu0 0.0
        %1319 = vmatpush1.xpose.msra.mxu0 0.0
        %1320 = vmatprep.subr.mxu0 0.0
        %1321 = vmatpush1.xpose.msra.mxu0 0.0
        %1322 = vmatprep.subr.mxu0 0.0
        %1323 = vmatpush1.xpose.msra.mxu0 0.0
        %1324 = vmatprep.subr.mxu0 0.0
        %1325 = vmatpush1.xpose.msra.mxu0 0.0
        %1326 = vmatprep.subr.mxu0 0.0
        %1327 = vmatpush1.xpose.msra.mxu0 0.0
        %1328 = vmatprep.subr.mxu0 0.0
        %1329 = vmatpush1.xpose.msra.mxu0 0.0
        %1330 = vmatprep.subr.mxu0 0.0
        %1331 = vmatpush1.xpose.msra.mxu0 0.0
        %1332 = vmatprep.subr.mxu0 0.0
        %1333 = vmatpush1.xpose.msra.mxu0 0.0
        %1334 = vmatprep.subr.mxu0 0.0
        %1335 = vmatpush1.xpose.msra.mxu0 0.0
        %1336 = vmatprep.subr.mxu0 0.0
        %1337 = vmatpush1.xpose.msra.mxu0 0.0
        %1338 = vmatprep.subr.mxu0 0.0
        %1339 = vmatpush1.xpose.msra.mxu0 0.0
        %1340 = vmatprep.subr.mxu0 0.0
        %1341 = vmatpush1.xpose.msra.mxu0 0.0
        %1342 = vmatprep.subr.mxu0 0.0
        %1343 = vmatpush1.xpose.msra.mxu0 0.0
        %1344 = vmatprep.subr.mxu0 0.0
        %1345 = vmatpush1.xpose.msra.mxu0 0.0
        %1346 = vmatprep.subr.mxu0 0.0
        %1347 = vmatpush1.xpose.msra.mxu0 0.0
        %1348 = vmatprep.subr.mxu0 0.0
        %1349 = vmatpush1.xpose.msra.mxu0 0.0
        %1350 = vmatprep.subr.mxu0 0.0
        %1351 = vmatpush1.xpose.msra.mxu0 0.0
        %1352 = vmatprep.subr.mxu0 0.0
        %1353 = vmatpush1.xpose.msra.mxu0 0.0
        %1354 = vmatprep.subr.mxu0 0.0
        %1355 = vmatpush1.xpose.msra.mxu0 0.0
        %1356 = vmatprep.subr.mxu0 0.0
        %1357 = vmatpush1.xpose.msra.mxu0 0.0
        %1358 = vmatprep.subr.mxu0 0.0
        %1359 = vmatpush1.xpose.msra.mxu0 0.0
        %1360 = vmatprep.subr.mxu0 0.0
        %1361 = vmatpush1.xpose.msra.mxu0 0.0
        %1362 = vmatprep.subr.mxu0 0.0
        %1363 = vmatpush1.xpose.msra.mxu0 0.0
        %1364 = vmatprep.subr.mxu0 0.0
        %1365 = vmatpush1.xpose.msra.mxu0 0.0
        %1366 = vmatprep.subr.mxu0 0.0
        %1367 = vmatpush1.xpose.msra.mxu0 0.0
        %1368 = vmatprep.subr.mxu0 0.0
        %1369 = vmatpush1.xpose.msra.mxu0 0.0
        %1370 = vmatprep.subr.mxu0 0.0
        %1371 = vmatpush1.xpose.msra.mxu0 0.0
        %1372 = vmatprep.subr.mxu0 0.0
        %1373 = vmatpush1.xpose.msra.mxu0 0.0
        %1374 = vmatprep.subr.mxu0 0.0
        %1375 = vmatpush1.xpose.msra.mxu0 0.0
        %1376 = vmatprep.subr.mxu0 0.0
        %1377 = vmatpush1.xpose.msra.mxu0 0.0
        %1378 = vmatprep.subr.mxu0 0.0
        %1379 = vmatpush1.xpose.msra.mxu0 0.0
        %1380 = vmatprep.mubr.f32.mxu0 0.0
        %1381 = vmatmul.mubr.f32.gmra.mrb[0].mxu0 %v1311
        %v1382 = vpop.f32.mrb[0].mxu0
        %v1383 = vadd.f32 0.0, %v1382
        %v1384 = vpop.f32.mrb[0].mxu0
        %1385 = vdwg.mxu0
        %v1387 = vsel %vm1233, %v937, 0
        %v1390 = vsel %vm1233, %v1084, 0
        %1392 = vmatprep.subr.mxu0 0.0
        %1393 = vmatpush1.xpose.msra.mxu0 %v1390
        %1394 = vmatprep.subr.mxu0 0.0
        %1395 = vmatpush1.xpose.msra.mxu0 0.0
        %1396 = vmatprep.subr.mxu0 0.0
        %1397 = vmatpush1.xpose.msra.mxu0 0.0
        %1398 = vmatprep.subr.mxu0 0.0
        %1399 = vmatpush1.xpose.msra.mxu0 0.0
        %1400 = vmatprep.subr.mxu0 0.0
        %1401 = vmatpush1.xpose.msra.mxu0 0.0
        %1402 = vmatprep.subr.mxu0 0.0
        %1403 = vmatpush1.xpose.msra.mxu0 0.0
        %1404 = vmatprep.subr.mxu0 0.0
        %1405 = vmatpush1.xpose.msra.mxu0 0.0
        %1406 = vmatprep.subr.mxu0 0.0
        %1407 = vmatpush1.xpose.msra.mxu0 0.0
        %1408 = vmatprep.subr.mxu0 0.0
        %1409 = vmatpush1.xpose.msra.mxu0 0.0
        %1410 = vmatprep.subr.mxu0 0.0
        %1411 = vmatpush1.xpose.msra.mxu0 0.0
        %1412 = vmatprep.subr.mxu0 0.0
        %1413 = vmatpush1.xpose.msra.mxu0 0.0
        %1414 = vmatprep.subr.mxu0 0.0
        %1415 = vmatpush1.xpose.msra.mxu0 0.0
        %1416 = vmatprep.subr.mxu0 0.0
        %1417 = vmatpush1.xpose.msra.mxu0 0.0
        %1418 = vmatprep.subr.mxu0 0.0
        %1419 = vmatpush1.xpose.msra.mxu0 0.0
        %1420 = vmatprep.subr.mxu0 0.0
        %1421 = vmatpush1.xpose.msra.mxu0 0.0
        %1422 = vmatprep.subr.mxu0 0.0
        %1423 = vmatpush1.xpose.msra.mxu0 0.0
        %1424 = vmatprep.subr.mxu0 0.0
        %1425 = vmatpush1.xpose.msra.mxu0 0.0
        %1426 = vmatprep.subr.mxu0 0.0
        %1427 = vmatpush1.xpose.msra.mxu0 0.0
        %1428 = vmatprep.subr.mxu0 0.0
        %1429 = vmatpush1.xpose.msra.mxu0 0.0
        %1430 = vmatprep.subr.mxu0 0.0
        %1431 = vmatpush1.xpose.msra.mxu0 0.0
        %1432 = vmatprep.subr.mxu0 0.0
        %1433 = vmatpush1.xpose.msra.mxu0 0.0
        %1434 = vmatprep.subr.mxu0 0.0
        %1435 = vmatpush1.xpose.msra.mxu0 0.0
        %1436 = vmatprep.subr.mxu0 0.0
        %1437 = vmatpush1.xpose.msra.mxu0 0.0
        %1438 = vmatprep.subr.mxu0 0.0
        %1439 = vmatpush1.xpose.msra.mxu0 0.0
        %1440 = vmatprep.subr.mxu0 0.0
        %1441 = vmatpush1.xpose.msra.mxu0 0.0
        %1442 = vmatprep.subr.mxu0 0.0
        %1443 = vmatpush1.xpose.msra.mxu0 0.0
        %1444 = vmatprep.subr.mxu0 0.0
        %1445 = vmatpush1.xpose.msra.mxu0 0.0
        %1446 = vmatprep.subr.mxu0 0.0
        %1447 = vmatpush1.xpose.msra.mxu0 0.0
        %1448 = vmatprep.subr.mxu0 0.0
        %1449 = vmatpush1.xpose.msra.mxu0 0.0
        %1450 = vmatprep.subr.mxu0 0.0
        %1451 = vmatpush1.xpose.msra.mxu0 0.0
        %1452 = vmatprep.subr.mxu0 0.0
        %1453 = vmatpush1.xpose.msra.mxu0 0.0
        %1454 = vmatprep.subr.mxu0 0.0
        %1455 = vmatpush1.xpose.msra.mxu0 0.0
        %1456 = vmatprep.mubr.f32.mxu0 0.0
        %1457 = vmatmul.mubr.f32.gmra.mrb[0].mxu0 %v1387
        %v1458 = vpop.f32.mrb[0].mxu0
        %v1459 = vadd.f32 0.0, %v1458
        %v1460 = vpop.f32.mrb[0].mxu0
        %1461 = vdwg.mxu0
        %v1463 = vsel %vm1233, %v938, 0
        %v1466 = vsel %vm1233, %v1085, 0
        %1468 = vmatprep.subr.mxu0 0.0
        %1469 = vmatpush1.xpose.msra.mxu0 %v1466
        %1470 = vmatprep.subr.mxu0 0.0
        %1471 = vmatpush1.xpose.msra.mxu0 0.0
        %1472 = vmatprep.subr.mxu0 0.0
        %1473 = vmatpush1.xpose.msra.mxu0 0.0
        %1474 = vmatprep.subr.mxu0 0.0
        %1475 = vmatpush1.xpose.msra.mxu0 0.0
        %1476 = vmatprep.subr.mxu0 0.0
        %1477 = vmatpush1.xpose.msra.mxu0 0.0
        %1478 = vmatprep.subr.mxu0 0.0
        %1479 = vmatpush1.xpose.msra.mxu0 0.0
        %1480 = vmatprep.subr.mxu0 0.0
        %1481 = vmatpush1.xpose.msra.mxu0 0.0
        %1482 = vmatprep.subr.mxu0 0.0
        %1483 = vmatpush1.xpose.msra.mxu0 0.0
        %1484 = vmatprep.subr.mxu0 0.0
        %1485 = vmatpush1.xpose.msra.mxu0 0.0
        %1486 = vmatprep.subr.mxu0 0.0
        %1487 = vmatpush1.xpose.msra.mxu0 0.0
        %1488 = vmatprep.subr.mxu0 0.0
        %1489 = vmatpush1.xpose.msra.mxu0 0.0
        %1490 = vmatprep.subr.mxu0 0.0
        %1491 = vmatpush1.xpose.msra.mxu0 0.0
        %1492 = vmatprep.subr.mxu0 0.0
        %1493 = vmatpush1.xpose.msra.mxu0 0.0
        %1494 = vmatprep.subr.mxu0 0.0
        %1495 = vmatpush1.xpose.msra.mxu0 0.0
        %1496 = vmatprep.subr.mxu0 0.0
        %1497 = vmatpush1.xpose.msra.mxu0 0.0
        %1498 = vmatprep.subr.mxu0 0.0
        %1499 = vmatpush1.xpose.msra.mxu0 0.0
        %1500 = vmatprep.subr.mxu0 0.0
        %1501 = vmatpush1.xpose.msra.mxu0 0.0
        %1502 = vmatprep.subr.mxu0 0.0
        %1503 = vmatpush1.xpose.msra.mxu0 0.0
        %1504 = vmatprep.subr.mxu0 0.0
        %1505 = vmatpush1.xpose.msra.mxu0 0.0
        %1506 = vmatprep.subr.mxu0 0.0
        %1507 = vmatpush1.xpose.msra.mxu0 0.0
        %1508 = vmatprep.subr.mxu0 0.0
        %1509 = vmatpush1.xpose.msra.mxu0 0.0
        %1510 = vmatprep.subr.mxu0 0.0
        %1511 = vmatpush1.xpose.msra.mxu0 0.0
        %1512 = vmatprep.subr.mxu0 0.0
        %1513 = vmatpush1.xpose.msra.mxu0 0.0
        %1514 = vmatprep.subr.mxu0 0.0
        %1515 = vmatpush1.xpose.msra.mxu0 0.0
        %1516 = vmatprep.subr.mxu0 0.0
        %1517 = vmatpush1.xpose.msra.mxu0 0.0
        %1518 = vmatprep.subr.mxu0 0.0
        %1519 = vmatpush1.xpose.msra.mxu0 0.0
        %1520 = vmatprep.subr.mxu0 0.0
        %1521 = vmatpush1.xpose.msra.mxu0 0.0
        %1522 = vmatprep.subr.mxu0 0.0
        %1523 = vmatpush1.xpose.msra.mxu0 0.0
        %1524 = vmatprep.subr.mxu0 0.0
        %1525 = vmatpush1.xpose.msra.mxu0 0.0
        %1526 = vmatprep.subr.mxu0 0.0
        %1527 = vmatpush1.xpose.msra.mxu0 0.0
        %1528 = vmatprep.subr.mxu0 0.0
        %1529 = vmatpush1.xpose.msra.mxu0 0.0
        %1530 = vmatprep.subr.mxu0 0.0
        %1531 = vmatpush1.xpose.msra.mxu0 0.0
        %1532 = vmatprep.mubr.f32.mxu0 0.0
        %1533 = vmatmul.mubr.f32.gmra.mrb[0].mxu0 %v1463
        %v1534 = vpop.f32.mrb[0].mxu0
        %v1535 = vadd.f32 0.0, %v1534
        %v1536 = vpop.f32.mrb[0].mxu0
        %1537 = vdwg.mxu0
        %v1538 = vsel %vm1233, %v1307, -inf
        %1539 = vmax.xlane.f32.xlu0 %v1538
        %v1540 = vpop.xlane.xlu0 %1539
        %v1541 = vsel %vm1233, %v1383, -inf
        %1542 = vmax.xlane.f32.xlu0 %v1541
        %v1543 = vpop.xlane.xlu0 %1542
        %v1544 = vsel %vm1233, %v1459, -inf
        %1545 = vmax.xlane.f32.xlu0 %v1544
        %v1546 = vpop.xlane.xlu0 %1545
        %v1547 = vsel %vm1233, %v1535, -inf
        %1548 = vmax.xlane.f32.xlu0 %v1547
        %v1549 = vpop.xlane.xlu0 %1548
        %v1550 = vsub.f32 %v1307, %v1540
        %v1551 = vsub.f32 %v1383, %v1543
        %v1552 = vsub.f32 %v1459, %v1546
        %v1553 = vsub.f32 %v1535, %v1549
        %v1554 = vmul.f32 %v1550, 1.442695
        %v1555 = vpow.pop %v1554
        %v1556 = vmul.f32 %v1551, 1.442695
        %v1557 = vpow.pop %v1556
        %v1558 = vmul.f32 %v1552, 1.442695
        %v1559 = vpow.pop %v1558
        %v1560 = vmul.f32 %v1553, 1.442695
        %v1561 = vpow.pop %v1560
        %v1562 = vsel %vm1233, %v1555, 0.0
        %1563 = vadd.xlane.f32.xlu0 %v1562
        %v1564 = vpop.xlane.xlu0 %1563
        %v1565 = vsel %vm1233, %v1557, 0.0
        %1566 = vadd.xlane.f32.xlu0 %v1565
        %v1567 = vpop.xlane.xlu0 %1566
        %v1568 = vsel %vm1233, %v1559, 0.0
        %1569 = vadd.xlane.f32.xlu0 %v1568
        %v1570 = vpop.xlane.xlu0 %1569
        %v1571 = vsel %vm1233, %v1561, 0.0
        %1572 = vadd.xlane.f32.xlu0 %v1571
        %v1573 = vpop.xlane.xlu0 %1572
        %v1574 = vrcp.pop %v1564
        %v1575 = vrcp.pop %v1567
        %v1576 = vrcp.pop %v1570
        %v1577 = vrcp.pop %v1573
        %v1578 = vmul.f32 %v1555, %v1574
        %v1579 = vmul.f32 %v1557, %v1575
        %v1580 = vmul.f32 %v1559, %v1576
        %v1581 = vmul.f32 %v1561, %v1577
        %1582 = vst.msk [vmem:[%s551] sm:$0xff] %vm1233, %v1578
        %1583 = vst.msk [vmem:[%s551 + $0x8] sm:$0xff] %vm1233, %v1579
        %1584 = vst.msk [vmem:[%s551 + $0x10] sm:$0xff] %vm1233, %v1580
        %1585 = vst.msk [vmem:[%s551 + $0x18] sm:$0xff] %vm1233, %v1581
        %v1587 = vsel %vm1233, %v1578, 0
        %1589 = vmatprep.subr.mxu0 0.0
        %1590 = vmatpush1.msra.mxu0 %v1229
        %1591 = vmatprep.subr.mxu0 0.0
        %1592 = vmatpush1.msra.mxu0 0.0
        %1593 = vmatprep.subr.mxu0 0.0
        %1594 = vmatpush1.msra.mxu0 0.0
        %1595 = vmatprep.subr.mxu0 0.0
        %1596 = vmatpush1.msra.mxu0 0.0
        %1597 = vmatprep.subr.mxu0 0.0
        %1598 = vmatpush1.msra.mxu0 0.0
        %1599 = vmatprep.subr.mxu0 0.0
        %1600 = vmatpush1.msra.mxu0 0.0
        %1601 = vmatprep.subr.mxu0 0.0
        %1602 = vmatpush1.msra.mxu0 0.0
        %1603 = vmatprep.subr.mxu0 0.0
        %1604 = vmatpush1.msra.mxu0 0.0
        %1605 = vmatprep.subr.mxu0 0.0
        %1606 = vmatpush1.msra.mxu0 0.0
        %1607 = vmatprep.subr.mxu0 0.0
        %1608 = vmatpush1.msra.mxu0 0.0
        %1609 = vmatprep.subr.mxu0 0.0
        %1610 = vmatpush1.msra.mxu0 0.0
        %1611 = vmatprep.subr.mxu0 0.0
        %1612 = vmatpush1.msra.mxu0 0.0
        %1613 = vmatprep.subr.mxu0 0.0
        %1614 = vmatpush1.msra.mxu0 0.0
        %1615 = vmatprep.subr.mxu0 0.0
        %1616 = vmatpush1.msra.mxu0 0.0
        %1617 = vmatprep.subr.mxu0 0.0
        %1618 = vmatpush1.msra.mxu0 0.0
        %1619 = vmatprep.subr.mxu0 0.0
        %1620 = vmatpush1.msra.mxu0 0.0
        %1621 = vmatprep.subr.mxu0 0.0
        %1622 = vmatpush1.msra.mxu0 0.0
        %1623 = vmatprep.subr.mxu0 0.0
        %1624 = vmatpush1.msra.mxu0 0.0
        %1625 = vmatprep.subr.mxu0 0.0
        %1626 = vmatpush1.msra.mxu0 0.0
        %1627 = vmatprep.subr.mxu0 0.0
        %1628 = vmatpush1.msra.mxu0 0.0
        %1629 = vmatprep.subr.mxu0 0.0
        %1630 = vmatpush1.msra.mxu0 0.0
        %1631 = vmatprep.subr.mxu0 0.0
        %1632 = vmatpush1.msra.mxu0 0.0
        %1633 = vmatprep.subr.mxu0 0.0
        %1634 = vmatpush1.msra.mxu0 0.0
        %1635 = vmatprep.subr.mxu0 0.0
        %1636 = vmatpush1.msra.mxu0 0.0
        %1637 = vmatprep.subr.mxu0 0.0
        %1638 = vmatpush1.msra.mxu0 0.0
        %1639 = vmatprep.subr.mxu0 0.0
        %1640 = vmatpush1.msra.mxu0 0.0
        %1641 = vmatprep.subr.mxu0 0.0
        %1642 = vmatpush1.msra.mxu0 0.0
        %1643 = vmatprep.subr.mxu0 0.0
        %1644 = vmatpush1.msra.mxu0 0.0
        %1645 = vmatprep.subr.mxu0 0.0
        %1646 = vmatpush1.msra.mxu0 0.0
        %1647 = vmatprep.subr.mxu0 0.0
        %1648 = vmatpush1.msra.mxu0 0.0
        %1649 = vmatprep.subr.mxu0 0.0
        %1650 = vmatpush1.msra.mxu0 0.0
        %1651 = vmatprep.subr.mxu0 0.0
        %1652 = vmatpush1.msra.mxu0 0.0
        %1653 = vmatprep.mubr.f32.mxu0 0.0
        %1654 = vmatmul.mubr.f32.gmra.mrb[0].mxu0 %v1587
        %v1655 = vpop.f32.mrb[0].mxu0
        %v1656 = vadd.f32 0.0, %v1655
        %v1657 = vpop.f32.mrb[0].mxu0
        %1658 = vdwg.mxu0
        %v1660 = vsel %vm1233, %v1579, 0
        %1662 = vmatprep.subr.mxu0 0.0
        %1663 = vmatpush1.msra.mxu0 %v1230
        %1664 = vmatprep.subr.mxu0 0.0
        %1665 = vmatpush1.msra.mxu0 0.0
        %1666 = vmatprep.subr.mxu0 0.0
        %1667 = vmatpush1.msra.mxu0 0.0
        %1668 = vmatprep.subr.mxu0 0.0
        %1669 = vmatpush1.msra.mxu0 0.0
        %1670 = vmatprep.subr.mxu0 0.0
        %1671 = vmatpush1.msra.mxu0 0.0
        %1672 = vmatprep.subr.mxu0 0.0
        %1673 = vmatpush1.msra.mxu0 0.0
        %1674 = vmatprep.subr.mxu0 0.0
        %1675 = vmatpush1.msra.mxu0 0.0
        %1676 = vmatprep.subr.mxu0 0.0
        %1677 = vmatpush1.msra.mxu0 0.0
        %1678 = vmatprep.subr.mxu0 0.0
        %1679 = vmatpush1.msra.mxu0 0.0
        %1680 = vmatprep.subr.mxu0 0.0
        %1681 = vmatpush1.msra.mxu0 0.0
        %1682 = vmatprep.subr.mxu0 0.0
        %1683 = vmatpush1.msra.mxu0 0.0
        %1684 = vmatprep.subr.mxu0 0.0
        %1685 = vmatpush1.msra.mxu0 0.0
        %1686 = vmatprep.subr.mxu0 0.0
        %1687 = vmatpush1.msra.mxu0 0.0
        %1688 = vmatprep.subr.mxu0 0.0
        %1689 = vmatpush1.msra.mxu0 0.0
        %1690 = vmatprep.subr.mxu0 0.0
        %1691 = vmatpush1.msra.mxu0 0.0
        %1692 = vmatprep.subr.mxu0 0.0
        %1693 = vmatpush1.msra.mxu0 0.0
        %1694 = vmatprep.subr.mxu0 0.0
        %1695 = vmatpush1.msra.mxu0 0.0
        %1696 = vmatprep.subr.mxu0 0.0
        %1697 = vmatpush1.msra.mxu0 0.0
        %1698 = vmatprep.subr.mxu0 0.0
        %1699 = vmatpush1.msra.mxu0 0.0
        %1700 = vmatprep.subr.mxu0 0.0
        %1701 = vmatpush1.msra.mxu0 0.0
        %1702 = vmatprep.subr.mxu0 0.0
        %1703 = vmatpush1.msra.mxu0 0.0
        %1704 = vmatprep.subr.mxu0 0.0
        %1705 = vmatpush1.msra.mxu0 0.0
        %1706 = vmatprep.subr.mxu0 0.0
        %1707 = vmatpush1.msra.mxu0 0.0
        %1708 = vmatprep.subr.mxu0 0.0
        %1709 = vmatpush1.msra.mxu0 0.0
        %1710 = vmatprep.subr.mxu0 0.0
        %1711 = vmatpush1.msra.mxu0 0.0
        %1712 = vmatprep.subr.mxu0 0.0
        %1713 = vmatpush1.msra.mxu0 0.0
        %1714 = vmatprep.subr.mxu0 0.0
        %1715 = vmatpush1.msra.mxu0 0.0
        %1716 = vmatprep.subr.mxu0 0.0
        %1717 = vmatpush1.msra.mxu0 0.0
        %1718 = vmatprep.subr.mxu0 0.0
        %1719 = vmatpush1.msra.mxu0 0.0
        %1720 = vmatprep.subr.mxu0 0.0
        %1721 = vmatpush1.msra.mxu0 0.0
        %1722 = vmatprep.subr.mxu0 0.0
        %1723 = vmatpush1.msra.mxu0 0.0
        %1724 = vmatprep.subr.mxu0 0.0
        %1725 = vmatpush1.msra.mxu0 0.0
        %1726 = vmatprep.mubr.f32.mxu0 0.0
        %1727 = vmatmul.mubr.f32.gmra.mrb[0].mxu0 %v1660
        %v1728 = vpop.f32.mrb[0].mxu0
        %v1729 = vadd.f32 0.0, %v1728
        %v1730 = vpop.f32.mrb[0].mxu0
        %1731 = vdwg.mxu0
        %v1733 = vsel %vm1233, %v1580, 0
        %1735 = vmatprep.subr.mxu0 0.0
        %1736 = vmatpush1.msra.mxu0 %v1231
        %1737 = vmatprep.subr.mxu0 0.0
        %1738 = vmatpush1.msra.mxu0 0.0
        %1739 = vmatprep.subr.mxu0 0.0
        %1740 = vmatpush1.msra.mxu0 0.0
        %1741 = vmatprep.subr.mxu0 0.0
        %1742 = vmatpush1.msra.mxu0 0.0
        %1743 = vmatprep.subr.mxu0 0.0
        %1744 = vmatpush1.msra.mxu0 0.0
        %1745 = vmatprep.subr.mxu0 0.0
        %1746 = vmatpush1.msra.mxu0 0.0
        %1747 = vmatprep.subr.mxu0 0.0
        %1748 = vmatpush1.msra.mxu0 0.0
        %1749 = vmatprep.subr.mxu0 0.0
        %1750 = vmatpush1.msra.mxu0 0.0
        %1751 = vmatprep.subr.mxu0 0.0
        %1752 = vmatpush1.msra.mxu0 0.0
        %1753 = vmatprep.subr.mxu0 0.0
        %1754 = vmatpush1.msra.mxu0 0.0
        %1755 = vmatprep.subr.mxu0 0.0
        %1756 = vmatpush1.msra.mxu0 0.0
        %1757 = vmatprep.subr.mxu0 0.0
        %1758 = vmatpush1.msra.mxu0 0.0
        %1759 = vmatprep.subr.mxu0 0.0
        %1760 = vmatpush1.msra.mxu0 0.0
        %1761 = vmatprep.subr.mxu0 0.0
        %1762 = vmatpush1.msra.mxu0 0.0
        %1763 = vmatprep.subr.mxu0 0.0
        %1764 = vmatpush1.msra.mxu0 0.0
        %1765 = vmatprep.subr.mxu0 0.0
        %1766 = vmatpush1.msra.mxu0 0.0
        %1767 = vmatprep.subr.mxu0 0.0
        %1768 = vmatpush1.msra.mxu0 0.0
        %1769 = vmatprep.subr.mxu0 0.0
        %1770 = vmatpush1.msra.mxu0 0.0
        %1771 = vmatprep.subr.mxu0 0.0
        %1772 = vmatpush1.msra.mxu0 0.0
        %1773 = vmatprep.subr.mxu0 0.0
        %1774 = vmatpush1.msra.mxu0 0.0
        %1775 = vmatprep.subr.mxu0 0.0
        %1776 = vmatpush1.msra.mxu0 0.0
        %1777 = vmatprep.subr.mxu0 0.0
        %1778 = vmatpush1.msra.mxu0 0.0
        %1779 = vmatprep.subr.mxu0 0.0
        %1780 = vmatpush1.msra.mxu0 0.0
        %1781 = vmatprep.subr.mxu0 0.0
        %1782 = vmatpush1.msra.mxu0 0.0
        %1783 = vmatprep.subr.mxu0 0.0
        %1784 = vmatpush1.msra.mxu0 0.0
        %1785 = vmatprep.subr.mxu0 0.0
        %1786 = vmatpush1.msra.mxu0 0.0
        %1787 = vmatprep.subr.mxu0 0.0
        %1788 = vmatpush1.msra.mxu0 0.0
        %1789 = vmatprep.subr.mxu0 0.0
        %1790 = vmatpush1.msra.mxu0 0.0
        %1791 = vmatprep.subr.mxu0 0.0
        %1792 = vmatpush1.msra.mxu0 0.0
        %1793 = vmatprep.subr.mxu0 0.0
        %1794 = vmatpush1.msra.mxu0 0.0
        %1795 = vmatprep.subr.mxu0 0.0
        %1796 = vmatpush1.msra.mxu0 0.0
        %1797 = vmatprep.subr.mxu0 0.0
        %1798 = vmatpush1.msra.mxu0 0.0
        %1799 = vmatprep.mubr.f32.mxu0 0.0
        %1800 = vmatmul.mubr.f32.gmra.mrb[0].mxu0 %v1733
        %v1801 = vpop.f32.mrb[0].mxu0
        %v1802 = vadd.f32 0.0, %v1801
        %v1803 = vpop.f32.mrb[0].mxu0
        %1804 = vdwg.mxu0
        %v1806 = vsel %vm1233, %v1581, 0
        %1808 = vmatprep.subr.mxu0 0.0
        %1809 = vmatpush1.msra.mxu0 %v1232
        %1810 = vmatprep.subr.mxu0 0.0
        %1811 = vmatpush1.msra.mxu0 0.0
        %1812 = vmatprep.subr.mxu0 0.0
        %1813 = vmatpush1.msra.mxu0 0.0
        %1814 = vmatprep.subr.mxu0 0.0
        %1815 = vmatpush1.msra.mxu0 0.0
        %1816 = vmatprep.subr.mxu0 0.0
        %1817 = vmatpush1.msra.mxu0 0.0
        %1818 = vmatprep.subr.mxu0 0.0
        %1819 = vmatpush1.msra.mxu0 0.0
        %1820 = vmatprep.subr.mxu0 0.0
        %1821 = vmatpush1.msra.mxu0 0.0
        %1822 = vmatprep.subr.mxu0 0.0
        %1823 = vmatpush1.msra.mxu0 0.0
        %1824 = vmatprep.subr.mxu0 0.0
        %1825 = vmatpush1.msra.mxu0 0.0
        %1826 = vmatprep.subr.mxu0 0.0
        %1827 = vmatpush1.msra.mxu0 0.0
        %1828 = vmatprep.subr.mxu0 0.0
        %1829 = vmatpush1.msra.mxu0 0.0
        %1830 = vmatprep.subr.mxu0 0.0
        %1831 = vmatpush1.msra.mxu0 0.0
        %1832 = vmatprep.subr.mxu0 0.0
        %1833 = vmatpush1.msra.mxu0 0.0
        %1834 = vmatprep.subr.mxu0 0.0
        %1835 = vmatpush1.msra.mxu0 0.0
        %1836 = vmatprep.subr.mxu0 0.0
        %1837 = vmatpush1.msra.mxu0 0.0
        %1838 = vmatprep.subr.mxu0 0.0
        %1839 = vmatpush1.msra.mxu0 0.0
        %1840 = vmatprep.subr.mxu0 0.0
        %1841 = vmatpush1.msra.mxu0 0.0
        %1842 = vmatprep.subr.mxu0 0.0
        %1843 = vmatpush1.msra.mxu0 0.0
        %1844 = vmatprep.subr.mxu0 0.0
        %1845 = vmatpush1.msra.mxu0 0.0
        %1846 = vmatprep.subr.mxu0 0.0
        %1847 = vmatpush1.msra.mxu0 0.0
        %1848 = vmatprep.subr.mxu0 0.0
        %1849 = vmatpush1.msra.mxu0 0.0
        %1850 = vmatprep.subr.mxu0 0.0
        %1851 = vmatpush1.msra.mxu0 0.0
        %1852 = vmatprep.subr.mxu0 0.0
        %1853 = vmatpush1.msra.mxu0 0.0
        %1854 = vmatprep.subr.mxu0 0.0
        %1855 = vmatpush1.msra.mxu0 0.0
        %1856 = vmatprep.subr.mxu0 0.0
        %1857 = vmatpush1.msra.mxu0 0.0
        %1858 = vmatprep.subr.mxu0 0.0
        %1859 = vmatpush1.msra.mxu0 0.0
        %1860 = vmatprep.subr.mxu0 0.0
        %1861 = vmatpush1.msra.mxu0 0.0
        %1862 = vmatprep.subr.mxu0 0.0
        %1863 = vmatpush1.msra.mxu0 0.0
        %1864 = vmatprep.subr.mxu0 0.0
        %1865 = vmatpush1.msra.mxu0 0.0
        %1866 = vmatprep.subr.mxu0 0.0
        %1867 = vmatpush1.msra.mxu0 0.0
        %1868 = vmatprep.subr.mxu0 0.0
        %1869 = vmatpush1.msra.mxu0 0.0
        %1870 = vmatprep.subr.mxu0 0.0
        %1871 = vmatpush1.msra.mxu0 0.0
        %1872 = vmatprep.mubr.f32.mxu0 0.0
        %1873 = vmatmul.mubr.f32.gmra.mrb[0].mxu0 %v1806
        %v1874 = vpop.f32.mrb[0].mxu0
        %v1875 = vadd.f32 0.0, %v1874
        %v1876 = vpop.f32.mrb[0].mxu0
        %1877 = vdwg.mxu0
        %v1878 = vcombine.low %v1656, %v1802
        %v1879 = vcombine.high %v1656, %v1802
        %v1881 = vunpack.c.l.s4 1983009808
        %v1882 = vunpack.c.0.s8 %v1881
        %v1883 = vlaneseq
        %v1884 = vshrl.u32 %v1883, 7
        %v1885 = vsub.s32 %v1882, %v1884
        %v1886 = vrot.slane %v1878, %v1885
        %v1888 = vunpack.c.l.s4 1983009808
        %v1889 = vunpack.c.0.s8 %v1888
        %v1890 = vlaneseq
        %v1891 = vshrl.u32 %v1890, 7
        %v1892 = vsub.s32 %v1889, %v1891
        %v1893 = vrot.slane %v1879, %v1892
        %v1894 = vcombine.low %v1729, %v1875
        %v1895 = vcombine.high %v1729, %v1875
        %v1897 = vunpack.c.l.s4 1983009808
        %v1898 = vunpack.c.0.s8 %v1897
        %v1899 = vlaneseq
        %v1900 = vshrl.u32 %v1899, 7
        %v1901 = vsub.s32 %v1898, %v1900
        %v1902 = vrot.slane %v1894, %v1901
        %v1904 = vunpack.c.l.s4 1983009808
        %v1905 = vunpack.c.0.s8 %v1904
        %v1906 = vlaneseq
        %v1907 = vshrl.u32 %v1906, 7
        %v1908 = vsub.s32 %v1905, %v1907
        %v1909 = vrot.slane %v1895, %v1908
        %v1910 = vcombine.low %v1886, %v1902
        %v1911 = vcombine.high %v1886, %v1902
        %v1913 = vunpack.c.l.s4 1934713408
        %v1914 = vunpack.c.0.s8 %v1913
        %v1915 = vlaneseq
        %v1916 = vshrl.u32 %v1915, 7
        %v1917 = vsub.s32 %v1914, %v1916
        %v1918 = vrot.slane %v1910, %v1917
        %v1920 = vunpack.c.l.s4 1934713408
        %v1921 = vunpack.c.0.s8 %v1920
        %v1922 = vlaneseq
        %v1923 = vshrl.u32 %v1922, 7
        %v1924 = vsub.s32 %v1921, %v1923
        %v1925 = vrot.slane %v1911, %v1924
        %v1926 = vcombine.low %v1893, %v1909
        %v1927 = vcombine.high %v1893, %v1909
        %v1929 = vunpack.c.l.s4 1934713408
        %v1930 = vunpack.c.0.s8 %v1929
        %v1931 = vlaneseq
        %v1932 = vshrl.u32 %v1931, 7
        %v1933 = vsub.s32 %v1930, %v1932
        %v1934 = vrot.slane %v1926, %v1933
        %v1936 = vunpack.c.l.s4 1934713408
        %v1937 = vunpack.c.0.s8 %v1936
        %v1938 = vlaneseq
        %v1939 = vshrl.u32 %v1938, 7
        %v1940 = vsub.s32 %v1937, %v1939
        %v1941 = vrot.slane %v1927, %v1940
        %v1942 = vcombine.high %v1918, 0.0
        %v1943 = vcombine.high %v1925, 0.0
        %v1944 = vcombine.high %v1934, 0.0
        %v1945 = vcombine.high %v1941, 0.0
        %v1946 = vcombine.low %v1918, %v1925
        %v1948 = vunpack.c.l.s4 1983009808
        %v1949 = vunpack.c.0.s8 %v1948
        %v1950 = vlaneseq
        %v1951 = vshrl.u32 %v1950, 7
        %v1952 = vsub.s32 %v1949, %v1951
        %v1953 = vrot.slane %v1946, %v1952
        %v1954 = vcombine.low %v1942, %v1943
        %v1956 = vunpack.c.l.s4 1983009808
        %v1957 = vunpack.c.0.s8 %v1956
        %v1958 = vlaneseq
        %v1959 = vshrl.u32 %v1958, 7
        %v1960 = vsub.s32 %v1957, %v1959
        %v1961 = vrot.slane %v1954, %v1960
        %v1962 = vcombine.low %v1934, %v1941
        %v1964 = vunpack.c.l.s4 1983009808
        %v1965 = vunpack.c.0.s8 %v1964
        %v1966 = vlaneseq
        %v1967 = vshrl.u32 %v1966, 7
        %v1968 = vsub.s32 %v1965, %v1967
        %v1969 = vrot.slane %v1962, %v1968
        %v1970 = vcombine.low %v1944, %v1945
        %v1972 = vunpack.c.l.s4 1983009808
        %v1973 = vunpack.c.0.s8 %v1972
        %v1974 = vlaneseq
        %v1975 = vshrl.u32 %v1974, 7
        %v1976 = vsub.s32 %v1973, %v1975
        %v1977 = vrot.slane %v1970, %v1976
        %v1978 = vcombine.low %v1953, %v1961
        %v1979 = vcombine.high %v1953, %v1961
        %v1981 = vunpack.c.l.s4 1934713408
        %v1982 = vunpack.c.0.s8 %v1981
        %v1983 = vlaneseq
        %v1984 = vshrl.u32 %v1983, 7
        %v1985 = vsub.s32 %v1982, %v1984
        %v1986 = vrot.slane %v1978, %v1985
        %v1988 = vunpack.c.l.s4 1934713408
        %v1989 = vunpack.c.0.s8 %v1988
        %v1990 = vlaneseq
        %v1991 = vshrl.u32 %v1990, 7
        %v1992 = vsub.s32 %v1989, %v1991
        %v1993 = vrot.slane %v1979, %v1992
        %v1994 = vcombine.low %v1969, %v1977
        %v1995 = vcombine.high %v1969, %v1977
        %v1997 = vunpack.c.l.s4 1934713408
        %v1998 = vunpack.c.0.s8 %v1997
        %v1999 = vlaneseq
        %v2000 = vshrl.u32 %v1999, 7
        %v2001 = vsub.s32 %v1998, %v2000
        %v2002 = vrot.slane %v1994, %v2001
        %v2004 = vunpack.c.l.s4 1934713408
        %v2005 = vunpack.c.0.s8 %v2004
        %v2006 = vlaneseq
        %v2007 = vshrl.u32 %v2006, 7
        %v2008 = vsub.s32 %v2005, %v2007
        %v2009 = vrot.slane %v1995, %v2008
        %v2010 = vcombine.low %v1986, %v2002
        %v2011 = vcombine.high %v1986, %v2002
        %v2012 = vcombine.low %v1993, %v2009
        %v2013 = vcombine.high %v1993, %v2009
        %2015 = vrot.lane.b32.xlu0 %v2011, 8
        %v2016 = vpop.permute.xlu0 %2015
        %2019 = vrot.lane.b32.xlu0 %v2012, 16
        %v2020 = vpop.permute.xlu0 %2019
        %2023 = vrot.lane.b32.xlu0 %v2013, 24
        %v2024 = vpop.permute.xlu0 %2023
        %v2026 = vsel %vm1233, %v2010, %v2016
        %vm2027 = vcmask 130048
        %v2028 = vsel %vm2027, %v2026, %v2020
        %vm2029 = vcmask 195584
        %v2030 = vsel %vm2029, %v2028, %v2024
        %v2031 = vld [vmem:[#allocation7] sm:$0xff]
        %v2032 = vld [vmem:[#allocation7 + $0x8] sm:$0xff]
        %v2033 = vld [vmem:[#allocation7 + $0x10] sm:$0xff]
        %v2034 = vld [vmem:[#allocation7 + $0x18] sm:$0xff]
        %v2036 = vsel %vm718, %v2030, 0
        %2038 = vmatprep.subr.mxu0 0.0
        %2039 = vmatpush1.msra.mxu0 %v2031
        %2040 = vmatprep.subr.mxu0 0.0
        %2041 = vmatpush1.msra.mxu0 %v2032
        %2042 = vmatprep.subr.mxu0 0.0
        %2043 = vmatpush1.msra.mxu0 %v2033
        %2044 = vmatprep.subr.mxu0 0.0
        %2045 = vmatpush1.msra.mxu0 %v2034
        %2046 = vmatprep.subr.mxu0 0.0
        %2047 = vmatpush1.msra.mxu0 0.0
        %2048 = vmatprep.subr.mxu0 0.0
        %2049 = vmatpush1.msra.mxu0 0.0
        %2050 = vmatprep.subr.mxu0 0.0
        %2051 = vmatpush1.msra.mxu0 0.0
        %2052 = vmatprep.subr.mxu0 0.0
        %2053 = vmatpush1.msra.mxu0 0.0
        %2054 = vmatprep.subr.mxu0 0.0
        %2055 = vmatpush1.msra.mxu0 0.0
        %2056 = vmatprep.subr.mxu0 0.0
        %2057 = vmatpush1.msra.mxu0 0.0
        %2058 = vmatprep.subr.mxu0 0.0
        %2059 = vmatpush1.msra.mxu0 0.0
        %2060 = vmatprep.subr.mxu0 0.0
        %2061 = vmatpush1.msra.mxu0 0.0
        %2062 = vmatprep.subr.mxu0 0.0
        %2063 = vmatpush1.msra.mxu0 0.0
        %2064 = vmatprep.subr.mxu0 0.0
        %2065 = vmatpush1.msra.mxu0 0.0
        %2066 = vmatprep.subr.mxu0 0.0
        %2067 = vmatpush1.msra.mxu0 0.0
        %2068 = vmatprep.subr.mxu0 0.0
        %2069 = vmatpush1.msra.mxu0 0.0
        %2070 = vmatprep.subr.mxu0 0.0
        %2071 = vmatpush1.msra.mxu0 0.0
        %2072 = vmatprep.subr.mxu0 0.0
        %2073 = vmatpush1.msra.mxu0 0.0
        %2074 = vmatprep.subr.mxu0 0.0
        %2075 = vmatpush1.msra.mxu0 0.0
        %2076 = vmatprep.subr.mxu0 0.0
        %2077 = vmatpush1.msra.mxu0 0.0
        %2078 = vmatprep.subr.mxu0 0.0
        %2079 = vmatpush1.msra.mxu0 0.0
        %2080 = vmatprep.subr.mxu0 0.0
        %2081 = vmatpush1.msra.mxu0 0.0
        %2082 = vmatprep.subr.mxu0 0.0
        %2083 = vmatpush1.msra.mxu0 0.0
        %2084 = vmatprep.subr.mxu0 0.0
        %2085 = vmatpush1.msra.mxu0 0.0
        %2086 = vmatprep.subr.mxu0 0.0
        %2087 = vmatpush1.msra.mxu0 0.0
        %2088 = vmatprep.subr.mxu0 0.0
        %2089 = vmatpush1.msra.mxu0 0.0
        %2090 = vmatprep.subr.mxu0 0.0
        %2091 = vmatpush1.msra.mxu0 0.0
        %2092 = vmatprep.subr.mxu0 0.0
        %2093 = vmatpush1.msra.mxu0 0.0
        %2094 = vmatprep.subr.mxu0 0.0
        %2095 = vmatpush1.msra.mxu0 0.0
        %2096 = vmatprep.subr.mxu0 0.0
        %2097 = vmatpush1.msra.mxu0 0.0
        %2098 = vmatprep.subr.mxu0 0.0
        %2099 = vmatpush1.msra.mxu0 0.0
        %2100 = vmatprep.subr.mxu0 0.0
        %2101 = vmatpush1.msra.mxu0 0.0
        %2102 = vmatprep.mubr.f32.mxu0 0.0
        %2103 = vmatmul.mubr.f32.gmra.mrb[0].mxu0 %v2036
        %v2104 = vpop.f32.mrb[0].mxu0
        %v2105 = vadd.f32 %v713, %v2104
        %v2106 = vpop.f32.mrb[0].mxu0
        %2107 = vdwg.mxu0
        %v2108 = vsel %vm718, %v2105, 0.0
        %2109 = vadd.xlane.f32.xlu0 %v2108
        %v2110 = vpop.xlane.xlu0 %2109
        %v2111 = vrcp.pop 32.0
        %v2112 = vmul.f32 %v2110, %v2111
        %v2113 = vsub.f32 %v2105, %v2112
        %v2114 = vmul.f32 %v2113, %v2113
        %v2115 = vsel %vm718, %v2114, 0.0
        %2116 = vadd.xlane.f32.xlu0 %v2115
        %v2117 = vpop.xlane.xlu0 %2116
        %v2118 = vmul.f32 %v2117, %v2111
        %v2119 = vadd.f32 %v2118, 1e-06
        %v2120 = vrsqrt.pop %v2119
        %v2121 = vmul.f32 %v2113, %v2120
        %v2122 = vld [vmem:[%s5] sm:$0x1]
        %v2124 = vlaneseq
        %v2125 = vshrl.u32 %v2124, 7
        %v2126 = vsub.s32 0, %v2125
        %v2127 = vrot.slane %v2122, %v2126
        %v2129 = vmul.f32 %v2121, %v2127
        %v2130 = vld [vmem:[%s6] sm:$0x1]
        %v2132 = vlaneseq
        %v2133 = vshrl.u32 %v2132, 7
        %v2134 = vsub.s32 0, %v2133
        %v2135 = vrot.slane %v2130, %v2134
        %v2137 = vadd.f32 %v2129, %v2135
        %v2138 = vld [vmem:[#allocation9] sm:$0xff]
        %v2139 = vld [vmem:[#allocation9 + $0x8] sm:$0xff]
        %v2140 = vld [vmem:[#allocation9 + $0x10] sm:$0xff]
        %v2141 = vld [vmem:[#allocation9 + $0x18] sm:$0xff]
        %v2142 = vld [vmem:[#allocation10] sm:$0x1]
        %v2144 = vlaneseq
        %v2145 = vshrl.u32 %v2144, 7
        %v2146 = vsub.s32 0, %v2145
        %v2147 = vrot.slane %v2142, %v2146
        %v2150 = vsel %vm718, %v2137, 0
        %2152 = vmatprep.subr.mxu0 0.0
        %2153 = vmatpush1.msra.mxu0 %v2138
        %2154 = vmatprep.subr.mxu0 0.0
        %2155 = vmatpush1.msra.mxu0 %v2139
        %2156 = vmatprep.subr.mxu0 0.0
        %2157 = vmatpush1.msra.mxu0 %v2140
        %2158 = vmatprep.subr.mxu0 0.0
        %2159 = vmatpush1.msra.mxu0 %v2141
        %2160 = vmatprep.subr.mxu0 0.0
        %2161 = vmatpush1.msra.mxu0 0.0
        %2162 = vmatprep.subr.mxu0 0.0
        %2163 = vmatpush1.msra.mxu0 0.0
        %2164 = vmatprep.subr.mxu0 0.0
        %2165 = vmatpush1.msra.mxu0 0.0
        %2166 = vmatprep.subr.mxu0 0.0
        %2167 = vmatpush1.msra.mxu0 0.0
        %2168 = vmatprep.subr.mxu0 0.0
        %2169 = vmatpush1.msra.mxu0 0.0
        %2170 = vmatprep.subr.mxu0 0.0
        %2171 = vmatpush1.msra.mxu0 0.0
        %2172 = vmatprep.subr.mxu0 0.0
        %2173 = vmatpush1.msra.mxu0 0.0
        %2174 = vmatprep.subr.mxu0 0.0
        %2175 = vmatpush1.msra.mxu0 0.0
        %2176 = vmatprep.subr.mxu0 0.0
        %2177 = vmatpush1.msra.mxu0 0.0
        %2178 = vmatprep.subr.mxu0 0.0
        %2179 = vmatpush1.msra.mxu0 0.0
        %2180 = vmatprep.subr.mxu0 0.0
        %2181 = vmatpush1.msra.mxu0 0.0
        %2182 = vmatprep.subr.mxu0 0.0
        %2183 = vmatpush1.msra.mxu0 0.0
        %2184 = vmatprep.subr.mxu0 0.0
        %2185 = vmatpush1.msra.mxu0 0.0
        %2186 = vmatprep.subr.mxu0 0.0
        %2187 = vmatpush1.msra.mxu0 0.0
        %2188 = vmatprep.subr.mxu0 0.0
        %2189 = vmatpush1.msra.mxu0 0.0
        %2190 = vmatprep.subr.mxu0 0.0
        %2191 = vmatpush1.msra.mxu0 0.0
        %2192 = vmatprep.subr.mxu0 0.0
        %2193 = vmatpush1.msra.mxu0 0.0
        %2194 = vmatprep.subr.mxu0 0.0
        %2195 = vmatpush1.msra.mxu0 0.0
        %2196 = vmatprep.subr.mxu0 0.0
        %2197 = vmatpush1.msra.mxu0 0.0
        %2198 = vmatprep.subr.mxu0 0.0
        %2199 = vmatpush1.msra.mxu0 0.0
        %2200 = vmatprep.subr.mxu0 0.0
        %2201 = vmatpush1.msra.mxu0 0.0
        %2202 = vmatprep.subr.mxu0 0.0
        %2203 = vmatpush1.msra.mxu0 0.0
        %2204 = vmatprep.subr.mxu0 0.0
        %2205 = vmatpush1.msra.mxu0 0.0
        %2206 = vmatprep.subr.mxu0 0.0
        %2207 = vmatpush1.msra.mxu0 0.0
        %2208 = vmatprep.subr.mxu0 0.0
        %2209 = vmatpush1.msra.mxu0 0.0
        %2210 = vmatprep.subr.mxu0 0.0
        %2211 = vmatpush1.msra.mxu0 0.0
        %2212 = vmatprep.subr.mxu0 0.0
        %2213 = vmatpush1.msra.mxu0 0.0
        %2214 = vmatprep.subr.mxu0 0.0
        %2215 = vmatpush1.msra.mxu0 0.0
        %2216 = vmatprep.mubr.f32.mxu0 0.0
        %2217 = vmatmul.mubr.f32.gmra.mrb[0].mxu0 %v2150
        %v2218 = vpop.f32.mrb[0].mxu0
        %v2219 = vadd.f32 %v2147, %v2218
        %v2220 = vpop.f32.mrb[0].mxu0
        %2221 = vdwg.mxu0
        %v2222 = vmax.f32 %v2219, 0.0
        %v2223 = vld [vmem:[%s9] sm:$0xff]
        %v2224 = vld [vmem:[%s9 + $0x8] sm:$0xff]
        %v2225 = vld [vmem:[%s9 + $0x10] sm:$0xff]
        %v2226 = vld [vmem:[%s9 + $0x18] sm:$0xff]
        %v2227 = vld [vmem:[%s9 + $0x20] sm:$0xff]
        %v2228 = vld [vmem:[%s9 + $0x28] sm:$0xff]
        %v2229 = vld [vmem:[%s9 + $0x30] sm:$0xff]
        %v2230 = vld [vmem:[%s9 + $0x38] sm:$0xff]
        %v2231 = vld [vmem:[%s10] sm:$0x1]
        %v2233 = vlaneseq
        %v2234 = vshrl.u32 %v2233, 7
        %v2235 = vsub.s32 0, %v2234
        %v2236 = vrot.slane %v2231, %v2235
        %vm2238 = vcmask 523264
        %v2240 = vsel %vm2238, %v2222, 0
        %2242 = vmatprep.subr.mxu0 0.0
        %2243 = vmatpush1.msra.mxu0 %v2223
        %2244 = vmatprep.subr.mxu0 0.0
        %2245 = vmatpush1.msra.mxu0 %v2224
        %2246 = vmatprep.subr.mxu0 0.0
        %2247 = vmatpush1.msra.mxu0 %v2225
        %2248 = vmatprep.subr.mxu0 0.0
        %2249 = vmatpush1.msra.mxu0 %v2226
        %2250 = vmatprep.subr.mxu0 0.0
        %2251 = vmatpush1.msra.mxu0 %v2227
        %2252 = vmatprep.subr.mxu0 0.0
        %2253 = vmatpush1.msra.mxu0 %v2228
        %2254 = vmatprep.subr.mxu0 0.0
        %2255 = vmatpush1.msra.mxu0 %v2229
        %2256 = vmatprep.subr.mxu0 0.0
        %2257 = vmatpush1.msra.mxu0 %v2230
        %2258 = vmatprep.subr.mxu0 0.0
        %2259 = vmatpush1.msra.mxu0 0.0
        %2260 = vmatprep.subr.mxu0 0.0
        %2261 = vmatpush1.msra.mxu0 0.0
        %2262 = vmatprep.subr.mxu0 0.0
        %2263 = vmatpush1.msra.mxu0 0.0
        %2264 = vmatprep.subr.mxu0 0.0
        %2265 = vmatpush1.msra.mxu0 0.0
        %2266 = vmatprep.subr.mxu0 0.0
        %2267 = vmatpush1.msra.mxu0 0.0
        %2268 = vmatprep.subr.mxu0 0.0
        %2269 = vmatpush1.msra.mxu0 0.0
        %2270 = vmatprep.subr.mxu0 0.0
        %2271 = vmatpush1.msra.mxu0 0.0
        %2272 = vmatprep.subr.mxu0 0.0
        %2273 = vmatpush1.msra.mxu0 0.0
        %2274 = vmatprep.subr.mxu0 0.0
        %2275 = vmatpush1.msra.mxu0 0.0
        %2276 = vmatprep.subr.mxu0 0.0
        %2277 = vmatpush1.msra.mxu0 0.0
        %2278 = vmatprep.subr.mxu0 0.0
        %2279 = vmatpush1.msra.mxu0 0.0
        %2280 = vmatprep.subr.mxu0 0.0
        %2281 = vmatpush1.msra.mxu0 0.0
        %2282 = vmatprep.subr.mxu0 0.0
        %2283 = vmatpush1.msra.mxu0 0.0
        %2284 = vmatprep.subr.mxu0 0.0
        %2285 = vmatpush1.msra.mxu0 0.0
        %2286 = vmatprep.subr.mxu0 0.0
        %2287 = vmatpush1.msra.mxu0 0.0
        %2288 = vmatprep.subr.mxu0 0.0
        %2289 = vmatpush1.msra.mxu0 0.0
        %2290 = vmatprep.subr.mxu0 0.0
        %2291 = vmatpush1.msra.mxu0 0.0
        %2292 = vmatprep.subr.mxu0 0.0
        %2293 = vmatpush1.msra.mxu0 0.0
        %2294 = vmatprep.subr.mxu0 0.0
        %2295 = vmatpush1.msra.mxu0 0.0
        %2296 = vmatprep.subr.mxu0 0.0
        %2297 = vmatpush1.msra.mxu0 0.0
        %2298 = vmatprep.subr.mxu0 0.0
        %2299 = vmatpush1.msra.mxu0 0.0
        %2300 = vmatprep.subr.mxu0 0.0
        %2301 = vmatpush1.msra.mxu0 0.0
        %2302 = vmatprep.subr.mxu0 0.0
        %2303 = vmatpush1.msra.mxu0 0.0
        %2304 = vmatprep.subr.mxu0 0.0
        %2305 = vmatpush1.msra.mxu0 0.0
        %2306 = vmatprep.mubr.f32.mxu0 0.0
        %2307 = vmatmul.mubr.f32.gmra.mrb[0].mxu0 %v2240
        %v2308 = vpop.f32.mrb[0].mxu0
        %v2309 = vadd.f32 %v2236, %v2308
        %v2310 = vpop.f32.mrb[0].mxu0
        %2311 = vdwg.mxu0
        %v2312 = vadd.f32 %v2309, %v2137
        %v2313 = vsel %vm718, %v2312, 0.0
        %2314 = vadd.xlane.f32.xlu0 %v2313
        %v2315 = vpop.xlane.xlu0 %2314
        %v2316 = vmul.f32 %v2315, %v2111
        %v2317 = vsub.f32 %v2312, %v2316
        %v2318 = vmul.f32 %v2317, %v2317
        %v2319 = vsel %vm718, %v2318, 0.0
        %2320 = vadd.xlane.f32.xlu0 %v2319
        %v2321 = vpop.xlane.xlu0 %2320
        %v2322 = vmul.f32 %v2321, %v2111
        %v2323 = vadd.f32 %v2322, 1e-06
        %v2324 = vrsqrt.pop %v2323
        %v2325 = vmul.f32 %v2317, %v2324
        %v2326 = vld [vmem:[%s11] sm:$0x1]
        %v2328 = vlaneseq
        %v2329 = vshrl.u32 %v2328, 7
        %v2330 = vsub.s32 0, %v2329
        %v2331 = vrot.slane %v2326, %v2330
        %v2333 = vmul.f32 %v2325, %v2331
        %v2334 = vld [vmem:[%s12] sm:$0x1]
        %v2336 = vlaneseq
        %v2337 = vshrl.u32 %v2336, 7
        %v2338 = vsub.s32 0, %v2337
        %v2339 = vrot.slane %v2334, %v2338
        %v2341 = vadd.f32 %v2333, %v2339
        %2342 = vst.msk [vmem:[%s544] sm:$0xff] %vm718, %v2341
        %s2343 = sand.u32 %s337, 1
        %s2344 = scalar_lea.sflag [#allocation6], %s2343
        %s2345 = sand.u32 %s337, 1
        %s2346 = smul.addr %s2345, 8
        %s2347 = scalar_lea.vmem [#allocation12], %s2346
        %s2348 = sand.u32 %s365, 1
        %s2349 = scalar_lea.sflag [#allocation14], %s2348
        %s2350 = sand.u32 %s365, 1
        %s2351 = smul.addr %s2350, 32
        %s2352 = scalar_lea.vmem [#allocation13], %s2351
        // Predicated region
        $region93: #{tpu_custom_call.1} parent=71 // pred_check
          %p2353 = pneg %p347
        $region94: #{tpu_custom_call.1} parent=71 // pred_check_branch
          %2355 = sbr.rel (%p2353) target = $region96
        $region95: #{tpu_custom_call.1} parent=71 // pred_region
          %s2357 = ssub.s32 128, 128
          %2358 = vsyncadd %s2344, %s2357
          %s2359 = sadd.s32 %s42, %s41
          %s2360 = smul.addr %s2359, 128
          %s2361 = scalar_lea.hbm %s13, %s2360
          %s2363 = sshll.u32 %s2347, 4
          %s2364 = int_to_ptr.vmem [resolvable:$true] %s2363
          %2366 = dma.vmem_to_hbm [thread:$0]  %s2364, 128, %s2361, %s2344
        $region96: #{tpu_custom_call.1} parent=71 // pred_fallthru
          _
        // Predicated region
        $region97: #{tpu_custom_call.1} parent=71 // pred_check
          %p2367 = pneg %p375
        $region98: #{tpu_custom_call.1} parent=71 // pred_check_branch
          %2369 = sbr.rel (%p2367) target = $region100
        $region99: #{tpu_custom_call.1} parent=71 // pred_region
          %s2371 = ssub.s32 512, 512
          %2372 = vsyncadd %s2349, %s2371
          %s2373 = smul.addr %s41, 4
          %s2374 = sadd.s32 %s42, %s2373
          %s2375 = smul.addr %s2374, 128
          %s2376 = scalar_lea.hbm %s14, %s2375
          %s2377 = sshll.u32 %s2352, 4
          %s2378 = int_to_ptr.vmem [resolvable:$true] %s2377
          %2383 = dma.vmem_to_hbm [thread:$0]  %s2378, 512, %s2376, %s2349, 128, 128, 8
        $region100: #{tpu_custom_call.1} parent=71 // pred_fallthru
          _
      $region72: #{tpu_custom_call.1} parent=5 // pred_fallthru
        _
      %p2384 = scmp.le.s32.totalorder 2, %s32
      // Predicated region
      $region101: #{tpu_custom_call.1} parent=5 // pred_check
        %p2385 = pneg %p2384
      $region102: #{tpu_custom_call.1} parent=5 // pred_check_branch
        %2387 = sbr.rel (%p2385) target = $region104
      $region103: #{tpu_custom_call.1} parent=5 // pred_region
        %s2388 = ssub.s32 %s32, 2
        // Predicated region
        $region105: #{tpu_custom_call.1} parent=103 // pred_check
          %p2389 = pneg %p353
        $region106: #{tpu_custom_call.1} parent=103 // pred_check_branch
          %2391 = sbr.rel (%p2389) target = $region108
        $region107: #{tpu_custom_call.1} parent=103 // pred_region
          %s2392 = sand.u32 %s338, 1
          %s2393 = scalar_lea.sflag [#allocation6], %s2392
          %s2394 = sand.u32 %s338, 1
          %s2395 = smul.addr %s2394, 8
          %s2396 = scalar_lea.vmem [#allocation12], %s2395
          %2397 = dma.done %s2393, 128
        $region108: #{tpu_custom_call.1} parent=103 // pred_fallthru
          _
        // Predicated region
        $region109: #{tpu_custom_call.1} parent=103 // pred_check
          %p2398 = pneg %p381
        $region110: #{tpu_custom_call.1} parent=103 // pred_check_branch
          %2400 = sbr.rel (%p2398) target = $region112
        $region111: #{tpu_custom_call.1} parent=103 // pred_region
          %s2401 = sand.u32 %s366, 1
          %s2402 = scalar_lea.sflag [#allocation14], %s2401
          %s2403 = sand.u32 %s366, 1
          %s2404 = smul.addr %s2403, 32
          %s2405 = scalar_lea.vmem [#allocation13], %s2404
          %2406 = dma.done %s2402, 512
        $region112: #{tpu_custom_call.1} parent=103 // pred_fallthru
          _
      $region104: #{tpu_custom_call.1} parent=5 // pred_fallthru
        _
    $region6: #{tpu_custom_call.1} parent=1 // loop_footer
      %s36 = sadd.s32 1, %s32
    $region7: #{tpu_custom_call.1} parent=1 // loop_footer_branch
      %31 = sbr.rel target = $region3
    $region8: #{tpu_custom_call.1} parent=1 // loop_exit
      _
    %2407 = vsyncpa [#allocation5], 1
    %s2408 = scalar_lea.sflag [#allocation5], 1
    %2409 = vsyncpa %s2408, 1
    %2410 = vsyncpa [#allocation8], 1
    %2411 = vsyncpa [#allocation11], 1
    %2412 = vsyncpa [#allocation6], 1
    %s2413 = scalar_lea.sflag [#allocation6], 1
    %2414 = vsyncpa %s2413, 1
    %2415 = vsyncpa [#allocation14], 1
    %s2416 = scalar_lea.sflag [#allocation14], 1
    %2417 = vsyncpa %s2416, 1

// kernel: tpu_custom_call.1
$region0: #{tpu_custom_call.1}
  #allocation0 [shape = 'u32[]', space=smem, size = 0x4, offset = 0x4, fixed_abs, tag = 'smem constant byte address 0x4 - core index']
  #allocation1 [shape = 'u32[144,128]{1,0:T(1,128)}', space=vmem, size = 0x12000, scoped, tag = 'internal scratch']
  #allocation2 [shape = 'f32[8,32]{1,0:T(8,128)}', space=vmem, size = 0x1000, scoped, tag = 'scratch operand']
  #allocation3 [shape = 'f32[8,32]{1,0:T(8,128)}', space=vmem, size = 0x1000, scoped, tag = 'scratch operand']
  %s0 = inlined_call_operand.hbm [shape: f32[2,8,32], index: 0, kind: input, shape index: {}]
  %s1 = inlined_call_operand.vmem [shape: f32[32,32], index: 1, kind: input, shape index: {}]
  %s2 = inlined_call_operand.vmem [shape: f32[32,32], index: 2, kind: input, shape index: {}]
  %s3 = inlined_call_operand.vmem [shape: f32[32,32], index: 3, kind: input, shape index: {}]
  %s4 = inlined_call_operand.hbm [shape: f32[32,32], index: 4, kind: input, shape index: {}]
  %s5 = inlined_call_operand.vmem [shape: f32[1,32], index: 5, kind: input, shape index: {}]
  %s6 = inlined_call_operand.vmem [shape: f32[1,32], index: 6, kind: input, shape index: {}]
  %s7 = inlined_call_operand.hbm [shape: f32[32,64], index: 7, kind: input, shape index: {}]
  %s8 = inlined_call_operand.hbm [shape: f32[1,64], index: 8, kind: input, shape index: {}]
  %s9 = inlined_call_operand.vmem [shape: f32[64,32], index: 9, kind: input, shape index: {}]
  %s10 = inlined_call_operand.vmem [shape: f32[1,32], index: 10, kind: input, shape index: {}]
  %s11 = inlined_call_operand.vmem [shape: f32[1,32], index: 11, kind: input, shape index: {}]
  %s12 = inlined_call_operand.vmem [shape: f32[1,32], index: 12, kind: input, shape index: {}]
  %s13 = inlined_call_operand.hbm [shape: f32[2,8,32], index: 13, kind: output, shape index: {0}]
  %s14 = inlined_call_operand.hbm [shape: f32[2,4,8,8], index: 14, kind: output, shape index: {1}]
  %15 = xla_tuple %s13, %s14
  %s16 = sld [smem:[#allocation0]]
  $region113: #{tpu_custom_call.1} parent=0
    _
  %s18 = ssub.s32 1, %s16
  %s19 = scalar_select 0, %s18, %s16
  $region1: #{tpu_custom_call.1} parent=0
    #allocation4 [shape = 'u8[8192]{0}', space=vmem, size = 0x2000, scoped, tag = 'input window, operand 0']
    #allocation5 [shape = 's32[2]{0}', space=sflag, size = 0x8, scoped, tag = 'scoped memory for tpu_custom_call.1']
    #allocation6 [shape = 's32[2]{0}', space=sflag, size = 0x8, scoped, tag = 'scoped memory for tpu_custom_call.1']
    #allocation7 [shape = 'u8[16384]{0}', space=vmem, size = 0x4000, scoped, tag = 'input window, operand 4, single buffered']
    #allocation8 [shape = 's32[1]{0}', space=sflag, size = 0x4, scoped, tag = 'scoped memory for tpu_custom_call.1']
    #allocation9 [shape = 'u8[16384]{0}', space=vmem, size = 0x4000, scoped, tag = 'input window, operand 7, single buffered']
    #allocation10 [shape = 'u8[512]{0}', space=vmem, size = 0x400, scoped, tag = 'input window, operand 8, single buffered']
    #allocation11 [shape = 's32[1]{0}', space=sflag, size = 0x4, scoped, tag = 'scoped memory for tpu_custom_call.1']
    #allocation12 [shape = 'u8[8192]{0}', space=vmem, size = 0x2000, scoped, tag = 'output window, operand 0']
    #allocation13 [shape = 'u8[32768]{0}', space=vmem, size = 0x8000, scoped, tag = 'output window, operand 1']
    #allocation14 [shape = 's32[2]{0}', space=sflag, size = 0x8, scoped, tag = 'scoped memory for tpu_custom_call.1']
    %20 = vsyncpa [#allocation5], 0
    %s21 = scalar_lea.sflag [#allocation5], 1
    %22 = vsyncpa %s21, 0
    %23 = vsyncpa [#allocation8], 0
    %24 = vsyncpa [#allocation11], 0
    %25 = vsyncpa [#allocation6], 0
    %s26 = scalar_lea.sflag [#allocation6], 1
    %27 = vsyncpa %s26, 0
    %28 = vsyncpa [#allocation14], 0
    %s29 = scalar_lea.sflag [#allocation14], 1
    %30 = vsyncpa %s29, 0
    loop: start=0, step=1, limit=4
    $region2: #{tpu_custom_call.1} parent=1 // loop_pre_header
      _
    $region3: #{tpu_custom_call.1} parent=1 // loop_header
      %s32 = sphi 0, %s36
      %p33 = scmp.ge.s32.totalorder %s32, 4
      %s39 = sphi 0, %s51
      %s40 = sphi 0, %s47
      %s41 = sphi 0, %s39
      %s42 = sphi 0, %s40
      %s43 = sphi 0, %s41
      %s44 = sphi 0, %s42
      %s54 = sphi 0, %s56
      %s57 = sphi 0, %s54
      %s58 = sphi 0, %s57
      %s74 = sphi 0, %s58
      %s78 = sphi 0, %s78
      %s80 = sphi 0, %s78
      %s81 = sphi 0, %s80
      %s95 = sphi 0, %s81
      %s99 = sphi 0, %s99
      %s101 = sphi 0, %s99
      %s102 = sphi 0, %s101
      %s116 = sphi 0, %s102
      %s120 = sphi 0, %s120
      %s122 = sphi 0, %s120
      %s123 = sphi 0, %s122
      %s137 = sphi 0, %s123
      %s141 = sphi 0, %s141
      %s143 = sphi 0, %s141
      %s144 = sphi 0, %s143
      %s158 = sphi 0, %s144
      %s162 = sphi 0, %s162
      %s164 = sphi 0, %s162
      %s165 = sphi 0, %s164
      %s179 = sphi 0, %s165
      %s183 = sphi 0, %s183
      %s185 = sphi 0, %s183
      %s186 = sphi 0, %s185
      %s200 = sphi 0, %s186
      %s204 = sphi 0, %s204
      %s206 = sphi 0, %s204
      %s207 = sphi 0, %s206
      %s221 = sphi 0, %s207
      %s225 = sphi 0, %s225
      %s227 = sphi 0, %s225
      %s228 = sphi 0, %s227
      %s242 = sphi 0, %s228
      %s246 = sphi 0, %s246
      %s248 = sphi 0, %s246
      %s249 = sphi 0, %s248
      %s263 = sphi 0, %s249
      %s267 = sphi 0, %s267
      %s269 = sphi 0, %s267
      %s270 = sphi 0, %s269
      %s284 = sphi 0, %s270
      %s288 = sphi 0, %s288
      %s290 = sphi 0, %s288
      %s291 = sphi 0, %s290
      %s305 = sphi 0, %s291
      %s309 = sphi 0, %s309
      %s311 = sphi 0, %s309
      %s312 = sphi 0, %s311
      %s326 = sphi 0, %s312
      %s334 = sphi 0, %s336
      %s337 = sphi 0, %s334
      %s338 = sphi 0, %s337
      %s354 = sphi 0, %s338
      %s362 = sphi 0, %s364
      %s365 = sphi 0, %s362
      %s366 = sphi 0, %s365
      %s382 = sphi 0, %s366
    $region4: #{tpu_custom_call.1} parent=1 // loop_header_branch
      %35 = sbr.rel (%p33) target = $region8
    $region5: #{tpu_custom_call.1} parent=1 // loop_body
      %s37 = ssub.s32 %s32, 1
      %s38 = ssub.s32 %s32, 2
      %s45 = sadd.s32 1, %s40
      %p46 = scmp.ge.s32.totalorder %s45, 1
      %s47 = scalar_select %p46, 0, %s45
      %s48 = sadd.s32 1, %s39
      %s49 = scalar_select %p46, %s48, %s39
      %p50 = scmp.ge.s32.totalorder %s49, 2
      %s51 = scalar_select %p50, 0, %s49
      %s52 = ssub.s32 %s39, %s51
      %p53 = scmp.eq.s32.totalorder %s52, 0
      %s55 = sadd.s32 %s54, 1
      %s56 = scalar_select %p53, %s54, %s55
      %p59 = pneg %p53
      %p60 = scmp.eq.s32.totalorder %s32, 1
      %p61 = por %p59, %p60
      %p62 = scmp.ne.s32.totalorder %s54, %s57
      %p63 = scmp.eq.s32.totalorder %s32, 0
      %p64 = por %p62, %p63
      %p65 = scmp.ne.s32.totalorder %s54, %s57
      %p66 = scmp.eq.s32.totalorder %s37, 1
      %p67 = por %p65, %p66
      %p68 = scmp.ne.s32.totalorder %s57, %s58
      %p69 = scmp.eq.s32.totalorder %s37, 0
      %p70 = por %p68, %p69
      %p71 = scmp.ne.s32.totalorder %s57, %s58
      %p72 = scmp.eq.s32.totalorder %s38, 1
      %p73 = por %p71, %p72
      %p75 = scmp.ne.s32.totalorder %s58, %s74
      %p76 = scmp.eq.s32.totalorder %s38, 0
      %p77 = por %p75, %p76
      %s79 = sadd.s32 %s78, 1
      %p82 = scmp.eq.s32.totalorder %s32, 1
      %p83 = scmp.ne.s32.totalorder %s78, %s80
      %p84 = scmp.eq.s32.totalorder %s32, 0
      %p85 = por %p83, %p84
      %p86 = scmp.ne.s32.totalorder %s78, %s80
      %p87 = scmp.eq.s32.totalorder %s37, 1
      %p88 = por %p86, %p87
      %p89 = scmp.ne.s32.totalorder %s80, %s81
      %p90 = scmp.eq.s32.totalorder %s37, 0
      %p91 = por %p89, %p90
      %p92 = scmp.ne.s32.totalorder %s80, %s81
      %p93 = scmp.eq.s32.totalorder %s38, 1
      %p94 = por %p92, %p93
      %p96 = scmp.ne.s32.totalorder %s81, %s95
      %p97 = scmp.eq.s32.totalorder %s38, 0
      %p98 = por %p96, %p97
      %s100 = sadd.s32 %s99, 1
      %p103 = scmp.eq.s32.totalorder %s32, 1
      %p104 = scmp.ne.s32.totalorder %s99, %s101
      %p105 = scmp.eq.s32.totalorder %s32, 0
      %p106 = por %p104, %p105
      %p107 = scmp.ne.s32.totalorder %s99, %s101
      %p108 = scmp.eq.s32.totalorder %s37, 1
      %p109 = por %p107, %p108
      %p110 = scmp.ne.s32.totalorder %s101, %s102
      %p111 = scmp.eq.s32.totalorder %s37, 0
      %p112 = por %p110, %p111
      %p113 = scmp.ne.s32.totalorder %s101, %s102
      %p114 = scmp.eq.s32.totalorder %s38, 1
      %p115 = por %p113, %p114
      %p117 = scmp.ne.s32.totalorder %s102, %s116
      %p118 = scmp.eq.s32.totalorder %s38, 0
      %p119 = por %p117, %p118
      %s121 = sadd.s32 %s120, 1
      %p124 = scmp.eq.s32.totalorder %s32, 1
      %p125 = scmp.ne.s32.totalorder %s120, %s122
      %p126 = scmp.eq.s32.totalorder %s32, 0
      %p127 = por %p125, %p126
      %p128 = scmp.ne.s32.totalorder %s120, %s122
      %p129 = scmp.eq.s32.totalorder %s37, 1
      %p130 = por %p128, %p129
      %p131 = scmp.ne.s32.totalorder %s122, %s123
      %p132 = scmp.eq.s32.totalorder %s37, 0
      %p133 = por %p131, %p132
      %p134 = scmp.ne.s32.totalorder %s122, %s123
      %p135 = scmp.eq.s32.totalorder %s38, 1
      %p136 = por %p134, %p135
      %p138 = scmp.ne.s32.totalorder %s123, %s137
      %p139 = scmp.eq.s32.totalorder %s38, 0
      %p140 = por %p138, %p139
      %s142 = sadd.s32 %s141, 1
      %p145 = scmp.eq.s32.totalorder %s32, 1
      %p146 = scmp.ne.s32.totalorder %s141, %s143
      %p147 = scmp.eq.s32.totalorder %s32, 0
      %p148 = por %p146, %p147
      %p149 = scmp.ne.s32.totalorder %s141, %s143
      %p150 = scmp.eq.s32.totalorder %s37, 1
      %p151 = por %p149, %p150
      %p152 = scmp.ne.s32.totalorder %s143, %s144
      %p153 = scmp.eq.s32.totalorder %s37, 0
      %p154 = por %p152, %p153
      %p155 = scmp.ne.s32.totalorder %s143, %s144
      %p156 = scmp.eq.s32.totalorder %s38, 1
      %p157 = por %p155, %p156
      %p159 = scmp.ne.s32.totalorder %s144, %s158
      %p160 = scmp.eq.s32.totalorder %s38, 0
      %p161 = por %p159, %p160
      %s163 = sadd.s32 %s162, 1
      %p166 = scmp.eq.s32.totalorder %s32, 1
      %p167 = scmp.ne.s32.totalorder %s162, %s164
      %p168 = scmp.eq.s32.totalorder %s32, 0
      %p169 = por %p167, %p168
      %p170 = scmp.ne.s32.totalorder %s162, %s164
      %p171 = scmp.eq.s32.totalorder %s37, 1
      %p172 = por %p170, %p171
      %p173 = scmp.ne.s32.totalorder %s164, %s165
      %p174 = scmp.eq.s32.totalorder %s37, 0
      %p175 = por %p173, %p174
      %p176 = scmp.ne.s32.totalorder %s164, %s165
      %p177 = scmp.eq.s32.totalorder %s38, 1
      %p178 = por %p176, %p177
      %p180 = scmp.ne.s32.totalorder %s165, %s179
      %p181 = scmp.eq.s32.totalorder %s38, 0
      %p182 = por %p180, %p181
      %s184 = sadd.s32 %s183, 1
      %p187 = scmp.eq.s32.totalorder %s32, 1
      %p188 = scmp.ne.s32.totalorder %s183, %s185
      %p189 = scmp.eq.s32.totalorder %s32, 0
      %p190 = por %p188, %p189
      %p191 = scmp.ne.s32.totalorder %s183, %s185
      %p192 = scmp.eq.s32.totalorder %s37, 1
      %p193 = por %p191, %p192
      %p194 = scmp.ne.s32.totalorder %s185, %s186
      %p195 = scmp.eq.s32.totalorder %s37, 0
      %p196 = por %p194, %p195
      %p197 = scmp.ne.s32.totalorder %s185, %s186
      %p198 = scmp.eq.s32.totalorder %s38, 1
      %p199 = por %p197, %p198
      %p201 = scmp.ne.s32.totalorder %s186, %s200
      %p202 = scmp.eq.s32.totalorder %s38, 0
      %p203 = por %p201, %p202
      %s205 = sadd.s32 %s204, 1
      %p208 = scmp.eq.s32.totalorder %s32, 1
      %p209 = scmp.ne.s32.totalorder %s204, %s206
      %p210 = scmp.eq.s32.totalorder %s32, 0
      %p211 = por %p209, %p210
      %p212 = scmp.ne.s32.totalorder %s204, %s206
      %p213 = scmp.eq.s32.totalorder %s37, 1
      %p214 = por %p212, %p213
      %p215 = scmp.ne.s32.totalorder %s206, %s207
      %p216 = scmp.eq.s32.totalorder %s37, 0
      %p217 = por %p215, %p216
      %p218 = scmp.ne.s32.totalorder %s206, %s207
      %p219 = scmp.eq.s32.totalorder %s38, 1
      %p220 = por %p218, %p219
      %p222 = scmp.ne.s32.totalorder %s207, %s221
      %p223 = scmp.eq.s32.totalorder %s38, 0
      %p224 = por %p222, %p223
      %s226 = sadd.s32 %s225, 1
      %p229 = scmp.eq.s32.totalorder %s32, 1
      %p230 = scmp.ne.s32.totalorder %s225, %s227
      %p231 = scmp.eq.s32.totalorder %s32, 0
      %p232 = por %p230, %p231
      %p233 = scmp.ne.s32.totalorder %s225, %s227
      %p234 = scmp.eq.s32.totalorder %s37, 1
      %p235 = por %p233, %p234
      %p236 = scmp.ne.s32.totalorder %s227, %s228
      %p237 = scmp.eq.s32.totalorder %s37, 0
      %p238 = por %p236, %p237
      %p239 = scmp.ne.s32.totalorder %s227, %s228
      %p240 = scmp.eq.s32.totalorder %s38, 1
      %p241 = por %p239, %p240
      %p243 = scmp.ne.s32.totalorder %s228, %s242
      %p244 = scmp.eq.s32.totalorder %s38, 0
      %p245 = por %p243, %p244
      %s247 = sadd.s32 %s246, 1
      %p250 = scmp.eq.s32.totalorder %s32, 1
      %p251 = scmp.ne.s32.totalorder %s246, %s248
      %p252 = scmp.eq.s32.totalorder %s32, 0
      %p253 = por %p251, %p252
      %p254 = scmp.ne.s32.totalorder %s246, %s248
      %p255 = scmp.eq.s32.totalorder %s37, 1
      %p256 = por %p254, %p255
      %p257 = scmp.ne.s32.totalorder %s248, %s249
      %p258 = scmp.eq.s32.totalorder %s37, 0
      %p259 = por %p257, %p258
      %p260 = scmp.ne.s32.totalorder %s248, %s249
      %p261 = scmp.eq.s32.totalorder %s38, 1
      %p262 = por %p260, %p261
      %p264 = scmp.ne.s32.totalorder %s249, %s263
      %p265 = scmp.eq.s32.totalorder %s38, 0
      %p266 = por %p264, %p265
      %s268 = sadd.s32 %s267, 1
      %p271 = scmp.eq.s32.totalorder %s32, 1
      %p272 = scmp.ne.s32.totalorder %s267, %s269
      %p273 = scmp.eq.s32.totalorder %s32, 0
      %p274 = por %p272, %p273
      %p275 = scmp.ne.s32.totalorder %s267, %s269
      %p276 = scmp.eq.s32.totalorder %s37, 1
      %p277 = por %p275, %p276
      %p278 = scmp.ne.s32.totalorder %s269, %s270
      %p279 = scmp.eq.s32.totalorder %s37, 0
      %p280 = por %p278, %p279
      %p281 = scmp.ne.s32.totalorder %s269, %s270
      %p282 = scmp.eq.s32.totalorder %s38, 1
      %p283 = por %p281, %p282
      %p285 = scmp.ne.s32.totalorder %s270, %s284
      %p286 = scmp.eq.s32.totalorder %s38, 0
      %p287 = por %p285, %p286
      %s289 = sadd.s32 %s288, 1
      %p292 = scmp.eq.s32.totalorder %s32, 1
      %p293 = scmp.ne.s32.totalorder %s288, %s290
      %p294 = scmp.eq.s32.totalorder %s32, 0
      %p295 = por %p293, %p294
      %p296 = scmp.ne.s32.totalorder %s288, %s290
      %p297 = scmp.eq.s32.totalorder %s37, 1
      %p298 = por %p296, %p297
      %p299 = scmp.ne.s32.totalorder %s290, %s291
      %p300 = scmp.eq.s32.totalorder %s37, 0
      %p301 = por %p299, %p300
      %p302 = scmp.ne.s32.totalorder %s290, %s291
      %p303 = scmp.eq.s32.totalorder %s38, 1
      %p304 = por %p302, %p303
      %p306 = scmp.ne.s32.totalorder %s291, %s305
      %p307 = scmp.eq.s32.totalorder %s38, 0
      %p308 = por %p306, %p307
      %s310 = sadd.s32 %s309, 1
      %p313 = scmp.eq.s32.totalorder %s32, 1
      %p314 = scmp.ne.s32.totalorder %s309, %s311
      %p315 = scmp.eq.s32.totalorder %s32, 0
      %p316 = por %p314, %p315
      %p317 = scmp.ne.s32.totalorder %s309, %s311
      %p318 = scmp.eq.s32.totalorder %s37, 1
      %p319 = por %p317, %p318
      %p320 = scmp.ne.s32.totalorder %s311, %s312
      %p321 = scmp.eq.s32.totalorder %s37, 0
      %p322 = por %p320, %p321
      %p323 = scmp.ne.s32.totalorder %s311, %s312
      %p324 = scmp.eq.s32.totalorder %s38, 1
      %p325 = por %p323, %p324
      %p327 = scmp.ne.s32.totalorder %s312, %s326
      %p328 = scmp.eq.s32.totalorder %s38, 0
      %p329 = por %p327, %p328
      %s330 = ssub.s32 %s39, %s51
      %s331 = ssub.s32 %s40, %s47
      %s332 = sor.u32 %s330, %s331
      %p333 = scmp.eq.s32.totalorder %s332, 0
      %s335 = sadd.s32 %s334, 1
      %s336 = scalar_select %p333, %s334, %s335
      %p339 = pneg %p333
      %p340 = scmp.eq.s32.totalorder %s32, 1
      %p341 = por %p339, %p340
      %p342 = scmp.ne.s32.totalorder %s334, %s337
      %p343 = scmp.eq.s32.totalorder %s32, 0
      %p344 = por %p342, %p343
      %p345 = scmp.ne.s32.totalorder %s334, %s337
      %p346 = scmp.eq.s32.totalorder %s37, 1
      %p347 = por %p345, %p346
      %p348 = scmp.ne.s32.totalorder %s337, %s338
      %p349 = scmp.eq.s32.totalorder %s37, 0
      %p350 = por %p348, %p349
      %p351 = scmp.ne.s32.totalorder %s337, %s338
      %p352 = scmp.eq.s32.totalorder %s38, 1
      %p353 = por %p351, %p352
      %p355 = scmp.ne.s32.totalorder %s338, %s354
      %p356 = scmp.eq.s32.totalorder %s38, 0
      %p357 = por %p355, %p356
      %s358 = ssub.s32 %s39, %s51
      %s359 = ssub.s32 %s40, %s47
      %s360 = sor.u32 %s358, %s359
      %p361 = scmp.eq.s32.totalorder %s360, 0
      %s363 = sadd.s32 %s362, 1
      %s364 = scalar_select %p361, %s362, %s363
      %p367 = pneg %p361
      %p368 = scmp.eq.s32.totalorder %s32, 1
      %p369 = por %p367, %p368
      %p370 = scmp.ne.s32.totalorder %s362, %s365
      %p371 = scmp.eq.s32.totalorder %s32, 0
      %p372 = por %p370, %p371
      %p373 = scmp.ne.s32.totalorder %s362, %s365
      %p374 = scmp.eq.s32.totalorder %s37, 1
      %p375 = por %p373, %p374
      %p376 = scmp.ne.s32.totalorder %s365, %s366
      %p377 = scmp.eq.s32.totalorder %s37, 0
      %p378 = por %p376, %p377
      %p379 = scmp.ne.s32.totalorder %s365, %s366
      %p380 = scmp.eq.s32.totalorder %s38, 1
      %p381 = por %p379, %p380
      %p383 = scmp.ne.s32.totalorder %s366, %s382
      %p384 = scmp.eq.s32.totalorder %s38, 0
      %p385 = por %p383, %p384
      %p386 = scmp.le.s32.totalorder 1, %s32
      %p387 = scmp.lt.s32.totalorder %s32, 3
      %p388 = pnand %p386, %p387
      %p389 = pneg %p388
      // Predicated region
      $region9: #{tpu_custom_call.1} parent=5 // pred_check
        _
      $region10: #{tpu_custom_call.1} parent=5 // pred_check_branch
        %391 = sbr.rel (%p388) target = $region12
      $region11: #{tpu_custom_call.1} parent=5 // pred_region
        %s392 = ssub.s32 %s32, 1
        // Predicated region
        $region13: #{tpu_custom_call.1} parent=11 // pred_check
          %p393 = pneg %p91
        $region14: #{tpu_custom_call.1} parent=11 // pred_check_branch
          %395 = sbr.rel (%p393) target = $region16
        $region15: #{tpu_custom_call.1} parent=11 // pred_region
          _
        $region16: #{tpu_custom_call.1} parent=11 // pred_fallthru
          _
        // Predicated region
        $region17: #{tpu_custom_call.1} parent=11 // pred_check
          %p396 = pneg %p112
        $region18: #{tpu_custom_call.1} parent=11 // pred_check_branch
          %398 = sbr.rel (%p396) target = $region20
        $region19: #{tpu_custom_call.1} parent=11 // pred_region
          _
        $region20: #{tpu_custom_call.1} parent=11 // pred_fallthru
          _
        // Predicated region
        $region21: #{tpu_custom_call.1} parent=11 // pred_check
          %p399 = pneg %p133
        $region22: #{tpu_custom_call.1} parent=11 // pred_check_branch
          %401 = sbr.rel (%p399) target = $region24
        $region23: #{tpu_custom_call.1} parent=11 // pred_region
          _
        $region24: #{tpu_custom_call.1} parent=11 // pred_fallthru
          _
        // Predicated region
        $region25: #{tpu_custom_call.1} parent=11 // pred_check
          %p402 = pneg %p154
        $region26: #{tpu_custom_call.1} parent=11 // pred_check_branch
          %404 = sbr.rel (%p402) target = $region28
        $region27: #{tpu_custom_call.1} parent=11 // pred_region
          %s406 = ssub.s32 512, 512
          %407 = vsyncadd [#allocation8], %s406
          %s408 = sshll.u32 [#allocation7], 4
          %s409 = int_to_ptr.vmem [resolvable:$true] %s408
          %414 = dma.hbm_to_vmem [thread:$0]  %s4, 512, %s409, [#allocation8], 128, 128, 8
        $region28: #{tpu_custom_call.1} parent=11 // pred_fallthru
          _
        // Predicated region
        $region29: #{tpu_custom_call.1} parent=11 // pred_check
          %p415 = pneg %p175
        $region30: #{tpu_custom_call.1} parent=11 // pred_check_branch
          %417 = sbr.rel (%p415) target = $region32
        $region31: #{tpu_custom_call.1} parent=11 // pred_region
          _
        $region32: #{tpu_custom_call.1} parent=11 // pred_fallthru
          _
        // Predicated region
        $region33: #{tpu_custom_call.1} parent=11 // pred_check
          %p418 = pneg %p196
        $region34: #{tpu_custom_call.1} parent=11 // pred_check_branch
          %420 = sbr.rel (%p418) target = $region36
        $region35: #{tpu_custom_call.1} parent=11 // pred_region
          _
        $region36: #{tpu_custom_call.1} parent=11 // pred_fallthru
          _
        // Predicated region
        $region37: #{tpu_custom_call.1} parent=11 // pred_check
          %p421 = pneg %p217
        $region38: #{tpu_custom_call.1} parent=11 // pred_check_branch
          %423 = sbr.rel (%p421) target = $region40
        $region39: #{tpu_custom_call.1} parent=11 // pred_region
          %s425 = ssub.s32 512, 512
          %426 = vsyncadd [#allocation8], %s425
          %s427 = sshll.u32 [#allocation9], 4
          %s428 = int_to_ptr.vmem [resolvable:$true] %s427
          %433 = dma.hbm_to_vmem [thread:$0]  %s7, 512, %s428, [#allocation8], 128, 128, 8
        $region40: #{tpu_custom_call.1} parent=11 // pred_fallthru
          _
        // Predicated region
        $region41: #{tpu_custom_call.1} parent=11 // pred_check
          %p434 = pneg %p238
        $region42: #{tpu_custom_call.1} parent=11 // pred_check_branch
          %436 = sbr.rel (%p434) target = $region44
        $region43: #{tpu_custom_call.1} parent=11 // pred_region
          %s438 = ssub.s32 16, 16
          %439 = vsyncadd [#allocation11], %s438
          %s441 = sshll.u32 [#allocation10], 4
          %s442 = int_to_ptr.vmem [resolvable:$true] %s441
          %444 = dma.hbm_to_vmem [thread:$0]  %s8, 16, %s442, [#allocation11]
        $region44: #{tpu_custom_call.1} parent=11 // pred_fallthru
          _
        // Predicated region
        $region45: #{tpu_custom_call.1} parent=11 // pred_check
          %p445 = pneg %p259
        $region46: #{tpu_custom_call.1} parent=11 // pred_check_branch
          %447 = sbr.rel (%p445) target = $region48
        $region47: #{tpu_custom_call.1} parent=11 // pred_region
          _
        $region48: #{tpu_custom_call.1} parent=11 // pred_fallthru
          _
        // Predicated region
        $region49: #{tpu_custom_call.1} parent=11 // pred_check
          %p448 = pneg %p280
        $region50: #{tpu_custom_call.1} parent=11 // pred_check_branch
          %450 = sbr.rel (%p448) target = $region52
        $region51: #{tpu_custom_call.1} parent=11 // pred_region
          _
        $region52: #{tpu_custom_call.1} parent=11 // pred_fallthru
          _
        // Predicated region
        $region53: #{tpu_custom_call.1} parent=11 // pred_check
          %p451 = pneg %p301
        $region54: #{tpu_custom_call.1} parent=11 // pred_check_branch
          %453 = sbr.rel (%p451) target = $region56
        $region55: #{tpu_custom_call.1} parent=11 // pred_region
          _
        $region56: #{tpu_custom_call.1} parent=11 // pred_fallthru
          _
        // Predicated region
        $region57: #{tpu_custom_call.1} parent=11 // pred_check
          %p454 = pneg %p322
        $region58: #{tpu_custom_call.1} parent=11 // pred_check_branch
          %456 = sbr.rel (%p454) target = $region60
        $region59: #{tpu_custom_call.1} parent=11 // pred_region
          _
        $region60: #{tpu_custom_call.1} parent=11 // pred_fallthru
          _
      $region12: #{tpu_custom_call.1} parent=5 // pred_fallthru
        _
      %p457 = scmp.lt.s32.totalorder %s32, 2
      // Predicated region
      $region61: #{tpu_custom_call.1} parent=5 // pred_check
        %p458 = pneg %p457
      $region62: #{tpu_custom_call.1} parent=5 // pred_check_branch
        %460 = sbr.rel (%p458) target = $region64
      $region63: #{tpu_custom_call.1} parent=5 // pred_region
        // Predicated region
        $region65: #{tpu_custom_call.1} parent=63 // pred_check
          %p461 = pneg %p64
        $region66: #{tpu_custom_call.1} parent=63 // pred_check_branch
          %463 = sbr.rel (%p461) target = $region68
        $region67: #{tpu_custom_call.1} parent=63 // pred_region
          %s464 = sand.u32 %s54, 1
          %s465 = scalar_lea.sflag [#allocation5], %s464
          %s466 = sand.u32 %s54, 1
          %s467 = smul.addr %s466, 8
          %s468 = scalar_lea.vmem [#allocation4], %s467
          %s470 = ssub.s32 128, 128
          %471 = vsyncadd %s465, %s470
          %s472 = smul.addr %s39, 128
          %s473 = scalar_lea.hbm %s0, %s472
          %s475 = sshll.u32 %s468, 4
          %s476 = int_to_ptr.vmem [resolvable:$true] %s475
          %478 = dma.hbm_to_vmem [thread:$0]  %s473, 128, %s476, %s465
        $region68: #{tpu_custom_call.1} parent=63 // pred_fallthru
          _
      $region64: #{tpu_custom_call.1} parent=5 // pred_fallthru
        _
      %p479 = scmp.le.s32.totalorder 1, %s32
      %p480 = scmp.lt.s32.totalorder %s32, 3
      %p481 = pnand %p479, %p480
      %p482 = pneg %p481
      // Predicated region
      $region69: #{tpu_custom_call.1} parent=5 // pred_check
        _
      $region70: #{tpu_custom_call.1} parent=5 // pred_check_branch
        %484 = sbr.rel (%p481) target = $region72
      $region71: #{tpu_custom_call.1} parent=5 // pred_region
        %s485 = ssub.s32 %s32, 1
        %s486 = sand.u32 %s57, 1
        %s487 = scalar_lea.sflag [#allocation5], %s486
        %s488 = sand.u32 %s57, 1
        %s489 = smul.addr %s488, 8
        %s490 = scalar_lea.vmem [#allocation4], %s489
        // Predicated region
        $region73: #{tpu_custom_call.1} parent=71 // pred_check
          %p491 = pneg %p70
        $region74: #{tpu_custom_call.1} parent=71 // pred_check_branch
          %493 = sbr.rel (%p491) target = $region76
        $region75: #{tpu_custom_call.1} parent=71 // pred_region
          %494 = dma.done %s487, 128
        $region76: #{tpu_custom_call.1} parent=71 // pred_fallthru
          _
        // Predicated region
        $region77: #{tpu_custom_call.1} parent=71 // pred_check
          %p495 = pneg %p154
        $region78: #{tpu_custom_call.1} parent=71 // pred_check_branch
          %497 = sbr.rel (%p495) target = $region80
        $region79: #{tpu_custom_call.1} parent=71 // pred_region
          %498 = dma.done [#allocation8], 512
        $region80: #{tpu_custom_call.1} parent=71 // pred_fallthru
          _
        // Predicated region
        $region81: #{tpu_custom_call.1} parent=71 // pred_check
          %p499 = pneg %p217
        $region82: #{tpu_custom_call.1} parent=71 // pred_check_branch
          %501 = sbr.rel (%p499) target = $region84
        $region83: #{tpu_custom_call.1} parent=71 // pred_region
          %502 = dma.done [#allocation8], 512
        $region84: #{tpu_custom_call.1} parent=71 // pred_fallthru
          _
        // Predicated region
        $region85: #{tpu_custom_call.1} parent=71 // pred_check
          %p503 = pneg %p238
        $region86: #{tpu_custom_call.1} parent=71 // pred_check_branch
          %505 = sbr.rel (%p503) target = $region88
        $region87: #{tpu_custom_call.1} parent=71 // pred_region
          %506 = dma.done [#allocation11], 16
        $region88: #{tpu_custom_call.1} parent=71 // pred_fallthru
          _
        %s507 = sand.u32 %s57, 1
        %s508 = scalar_lea.sflag [#allocation5], %s507
        %s509 = sand.u32 %s57, 1
        %s510 = smul.addr %s509, 8
        %s511 = scalar_lea.vmem [#allocation4], %s510
        %p512 = pneg %p70
        %p513 = pneg %p67
        %p514 = pneg %p91
        %p515 = pneg %p88
        %p516 = pneg %p112
        %p517 = pneg %p109
        %p518 = pneg %p133
        %p519 = pneg %p130
        %p520 = pneg %p154
        %p521 = pneg %p151
        %p522 = pneg %p175
        %p523 = pneg %p172
        %p524 = pneg %p196
        %p525 = pneg %p193
        %p526 = pneg %p217
        %p527 = pneg %p214
        %p528 = pneg %p238
        %p529 = pneg %p235
        %p530 = pneg %p259
        %p531 = pneg %p256
        %p532 = pneg %p280
        %p533 = pneg %p277
        %p534 = pneg %p301
        %p535 = pneg %p298
        %p536 = pneg %p322
        %p537 = pneg %p319
        %p538 = pneg %p350
        %p539 = pneg %p347
        %s540 = sand.u32 %s337, 1
        %s541 = scalar_lea.sflag [#allocation6], %s540
        %s542 = sand.u32 %s337, 1
        %s543 = smul.addr %s542, 8
        %s544 = scalar_lea.vmem [#allocation12], %s543
        %p545 = pneg %p378
        %p546 = pneg %p375
        %s547 = sand.u32 %s365, 1
        %s548 = scalar_lea.sflag [#allocation14], %s547
        %s549 = sand.u32 %s365, 1
        %s550 = smul.addr %s549, 32
        %s551 = scalar_lea.vmem [#allocation13], %s550
        %p552 = scmp.eq.s32.totalorder %s42, 0
        // Predicated region
        $region89: #{tpu_custom_call.1} parent=71 // pred_check
          %p553 = pneg %p552
        $region90: #{tpu_custom_call.1} parent=71 // pred_check_branch
          %555 = sbr.rel (%p553) target = $region92
        $region91: #{tpu_custom_call.1} parent=71 // pred_region
          %v556 = vld [vmem:[%s490] sm:$0xff]
          %v557 = vld [vmem:[%s2] sm:$0xff]
          %v558 = vld [vmem:[%s2 + $0x8] sm:$0xff]
          %v559 = vld [vmem:[%s2 + $0x10] sm:$0xff]
          %v560 = vld [vmem:[%s2 + $0x18] sm:$0xff]
          %vm561 = vcmask 261120
          %v563 = vsel %vm561, %v556, 0
          %565 = vmatprep.subr.mxu0 0.0
          %566 = vmatpush1.msra.mxu0 %v557
          %567 = vmatprep.subr.mxu0 0.0
          %568 = vmatpush1.msra.mxu0 %v558
          %569 = vmatprep.subr.mxu0 0.0
          %570 = vmatpush1.msra.mxu0 %v559
          %571 = vmatprep.subr.mxu0 0.0
          %572 = vmatpush1.msra.mxu0 %v560
          %573 = vmatprep.subr.mxu0 0.0
          %574 = vmatpush1.msra.mxu0 0.0
          %575 = vmatprep.subr.mxu0 0.0
          %576 = vmatpush1.msra.mxu0 0.0
          %577 = vmatprep.subr.mxu0 0.0
          %578 = vmatpush1.msra.mxu0 0.0
          %579 = vmatprep.subr.mxu0 0.0
          %580 = vmatpush1.msra.mxu0 0.0
          %581 = vmatprep.subr.mxu0 0.0
          %582 = vmatpush1.msra.mxu0 0.0
          %583 = vmatprep.subr.mxu0 0.0
          %584 = vmatpush1.msra.mxu0 0.0
          %585 = vmatprep.subr.mxu0 0.0
          %586 = vmatpush1.msra.mxu0 0.0
          %587 = vmatprep.subr.mxu0 0.0
          %588 = vmatpush1.msra.mxu0 0.0
          %589 = vmatprep.subr.mxu0 0.0
          %590 = vmatpush1.msra.mxu0 0.0
          %591 = vmatprep.subr.mxu0 0.0
          %592 = vmatpush1.msra.mxu0 0.0
          %593 = vmatprep.subr.mxu0 0.0
          %594 = vmatpush1.msra.mxu0 0.0
          %595 = vmatprep.subr.mxu0 0.0
          %596 = vmatpush1.msra.mxu0 0.0
          %597 = vmatprep.subr.mxu0 0.0
          %598 = vmatpush1.msra.mxu0 0.0
          %599 = vmatprep.subr.mxu0 0.0
          %600 = vmatpush1.msra.mxu0 0.0
          %601 = vmatprep.subr.mxu0 0.0
          %602 = vmatpush1.msra.mxu0 0.0
          %603 = vmatprep.subr.mxu0 0.0
          %604 = vmatpush1.msra.mxu0 0.0
          %605 = vmatprep.subr.mxu0 0.0
          %606 = vmatpush1.msra.mxu0 0.0
          %607 = vmatprep.subr.mxu0 0.0
          %608 = vmatpush1.msra.mxu0 0.0
          %609 = vmatprep.subr.mxu0 0.0
          %610 = vmatpush1.msra.mxu0 0.0
          %611 = vmatprep.subr.mxu0 0.0
          %612 = vmatpush1.msra.mxu0 0.0
          %613 = vmatprep.subr.mxu0 0.0
          %614 = vmatpush1.msra.mxu0 0.0
          %615 = vmatprep.subr.mxu0 0.0
          %616 = vmatpush1.msra.mxu0 0.0
          %617 = vmatprep.subr.mxu0 0.0
          %618 = vmatpush1.msra.mxu0 0.0
          %619 = vmatprep.subr.mxu0 0.0
          %620 = vmatpush1.msra.mxu0 0.0
          %621 = vmatprep.subr.mxu0 0.0
          %622 = vmatpush1.msra.mxu0 0.0
          %623 = vmatprep.subr.mxu0 0.0
          %624 = vmatpush1.msra.mxu0 0.0
          %625 = vmatprep.subr.mxu0 0.0
          %626 = vmatpush1.msra.mxu0 0.0
          %627 = vmatprep.subr.mxu0 0.0
          %628 = vmatpush1.msra.mxu0 0.0
          %629 = vmatprep.mubr.f32.mxu0 0.0
          %630 = vmatmul.mubr.f32.gmra.mrb[0].mxu0 %v563
          %v631 = vpop.f32.mrb[0].mxu0
          %v632 = vadd.f32 0.0, %v631
          %v633 = vpop.f32.mrb[0].mxu0
          %634 = vdwg.mxu0
          %635 = vst.msk [vmem:[#allocation2] sm:$0xff] %vm561, %v632
          %v636 = vld [vmem:[%s3] sm:$0xff]
          %v637 = vld [vmem:[%s3 + $0x8] sm:$0xff]
          %v638 = vld [vmem:[%s3 + $0x10] sm:$0xff]
          %v639 = vld [vmem:[%s3 + $0x18] sm:$0xff]
          %640 = vmatprep.subr.mxu0 0.0
          %641 = vmatpush1.msra.mxu0 %v636
          %642 = vmatprep.subr.mxu0 0.0
          %643 = vmatpush1.msra.mxu0 %v637
          %644 = vmatprep.subr.mxu0 0.0
          %645 = vmatpush1.msra.mxu0 %v638
          %646 = vmatprep.subr.mxu0 0.0
          %647 = vmatpush1.msra.mxu0 %v639
          %648 = vmatprep.subr.mxu0 0.0
          %649 = vmatpush1.msra.mxu0 0.0
          %650 = vmatprep.subr.mxu0 0.0
          %651 = vmatpush1.msra.mxu0 0.0
          %652 = vmatprep.subr.mxu0 0.0
          %653 = vmatpush1.msra.mxu0 0.0
          %654 = vmatprep.subr.mxu0 0.0
          %655 = vmatpush1.msra.mxu0 0.0
          %656 = vmatprep.subr.mxu0 0.0
          %657 = vmatpush1.msra.mxu0 0.0
          %658 = vmatprep.subr.mxu0 0.0
          %659 = vmatpush1.msra.mxu0 0.0
          %660 = vmatprep.subr.mxu0 0.0
          %661 = vmatpush1.msra.mxu0 0.0
          %662 = vmatprep.subr.mxu0 0.0
          %663 = vmatpush1.msra.mxu0 0.0
          %664 = vmatprep.subr.mxu0 0.0
          %665 = vmatpush1.msra.mxu0 0.0
          %666 = vmatprep.subr.mxu0 0.0
          %667 = vmatpush1.msra.mxu0 0.0
          %668 = vmatprep.subr.mxu0 0.0
          %669 = vmatpush1.msra.mxu0 0.0
          %670 = vmatprep.subr.mxu0 0.0
          %671 = vmatpush1.msra.mxu0 0.0
          %672 = vmatprep.subr.mxu0 0.0
          %673 = vmatpush1.msra.mxu0 0.0
          %674 = vmatprep.subr.mxu0 0.0
          %675 = vmatpush1.msra.mxu0 0.0
          %676 = vmatprep.subr.mxu0 0.0
          %677 = vmatpush1.msra.mxu0 0.0
          %678 = vmatprep.subr.mxu0 0.0
          %679 = vmatpush1.msra.mxu0 0.0
          %680 = vmatprep.subr.mxu0 0.0
          %681 = vmatpush1.msra.mxu0 0.0
          %682 = vmatprep.subr.mxu0 0.0
          %683 = vmatpush1.msra.mxu0 0.0
          %684 = vmatprep.subr.mxu0 0.0
          %685 = vmatpush1.msra.mxu0 0.0
          %686 = vmatprep.subr.mxu0 0.0
          %687 = vmatpush1.msra.mxu0 0.0
          %688 = vmatprep.subr.mxu0 0.0
          %689 = vmatpush1.msra.mxu0 0.0
          %690 = vmatprep.subr.mxu0 0.0
          %691 = vmatpush1.msra.mxu0 0.0
          %692 = vmatprep.subr.mxu0 0.0
          %693 = vmatpush1.msra.mxu0 0.0
          %694 = vmatprep.subr.mxu0 0.0
          %695 = vmatpush1.msra.mxu0 0.0
          %696 = vmatprep.subr.mxu0 0.0
          %697 = vmatpush1.msra.mxu0 0.0
          %698 = vmatprep.subr.mxu0 0.0
          %699 = vmatpush1.msra.mxu0 0.0
          %700 = vmatprep.subr.mxu0 0.0
          %701 = vmatpush1.msra.mxu0 0.0
          %702 = vmatprep.subr.mxu0 0.0
          %703 = vmatpush1.msra.mxu0 0.0
          %704 = vmatprep.mubr.f32.mxu0 0.0
          %705 = vmatmul.mubr.f32.gmra.mrb[0].mxu0 %v563
          %v706 = vpop.f32.mrb[0].mxu0
          %v707 = vadd.f32 0.0, %v706
          %v708 = vpop.f32.mrb[0].mxu0
          %709 = vdwg.mxu0
          %710 = vst.msk [vmem:[#allocation3] sm:$0xff] %vm561, %v707
        $region92: #{tpu_custom_call.1} parent=71 // pred_fallthru
          _
        %s711 = smul.u32 %s42, 8
        %s712 = scalar_lea.vmem %s490, %s711 [#allocation4]
        %v713 = vld [vmem:[%s712] sm:$0xff]
        %v714 = vld [vmem:[%s1] sm:$0xff]
        %v715 = vld [vmem:[%s1 + $0x8] sm:$0xff]
        %v716 = vld [vmem:[%s1 + $0x10] sm:$0xff]
        %v717 = vld [vmem:[%s1 + $0x18] sm:$0xff]
        %vm718 = vcmask 261120
        %v720 = vsel %vm718, %v713, 0
        %722 = vmatprep.subr.mxu0 0.0
        %723 = vmatpush1.msra.mxu0 %v714
        %724 = vmatprep.subr.mxu0 0.0
        %725 = vmatpush1.msra.mxu0 %v715
        %726 = vmatprep.subr.mxu0 0.0
        %727 = vmatpush1.msra.mxu0 %v716
        %728 = vmatprep.subr.mxu0 0.0
        %729 = vmatpush1.msra.mxu0 %v717
        %730 = vmatprep.subr.mxu0 0.0
        %731 = vmatpush1.msra.mxu0 0.0
        %732 = vmatprep.subr.mxu0 0.0
        %733 = vmatpush1.msra.mxu0 0.0
        %734 = vmatprep.subr.mxu0 0.0
        %735 = vmatpush1.msra.mxu0 0.0
        %736 = vmatprep.subr.mxu0 0.0
        %737 = vmatpush1.msra.mxu0 0.0
        %738 = vmatprep.subr.mxu0 0.0
        %739 = vmatpush1.msra.mxu0 0.0
        %740 = vmatprep.subr.mxu0 0.0
        %741 = vmatpush1.msra.mxu0 0.0
        %742 = vmatprep.subr.mxu0 0.0
        %743 = vmatpush1.msra.mxu0 0.0
        %744 = vmatprep.subr.mxu0 0.0
        %745 = vmatpush1.msra.mxu0 0.0
        %746 = vmatprep.subr.mxu0 0.0
        %747 = vmatpush1.msra.mxu0 0.0
        %748 = vmatprep.subr.mxu0 0.0
        %749 = vmatpush1.msra.mxu0 0.0
        %750 = vmatprep.subr.mxu0 0.0
        %751 = vmatpush1.msra.mxu0 0.0
        %752 = vmatprep.subr.mxu0 0.0
        %753 = vmatpush1.msra.mxu0 0.0
        %754 = vmatprep.subr.mxu0 0.0
        %755 = vmatpush1.msra.mxu0 0.0
        %756 = vmatprep.subr.mxu0 0.0
        %757 = vmatpush1.msra.mxu0 0.0
        %758 = vmatprep.subr.mxu0 0.0
        %759 = vmatpush1.msra.mxu0 0.0
        %760 = vmatprep.subr.mxu0 0.0
        %761 = vmatpush1.msra.mxu0 0.0
        %762 = vmatprep.subr.mxu0 0.0
        %763 = vmatpush1.msra.mxu0 0.0
        %764 = vmatprep.subr.mxu0 0.0
        %765 = vmatpush1.msra.mxu0 0.0
        %766 = vmatprep.subr.mxu0 0.0
        %767 = vmatpush1.msra.mxu0 0.0
        %768 = vmatprep.subr.mxu0 0.0
        %769 = vmatpush1.msra.mxu0 0.0
        %770 = vmatprep.subr.mxu0 0.0
        %771 = vmatpush1.msra.mxu0 0.0
        %772 = vmatprep.subr.mxu0 0.0
        %773 = vmatpush1.msra.mxu0 0.0
        %774 = vmatprep.subr.mxu0 0.0
        %775 = vmatpush1.msra.mxu0 0.0
        %776 = vmatprep.subr.mxu0 0.0
        %777 = vmatpush1.msra.mxu0 0.0
        %778 = vmatprep.subr.mxu0 0.0
        %779 = vmatpush1.msra.mxu0 0.0
        %780 = vmatprep.subr.mxu0 0.0
        %781 = vmatpush1.msra.mxu0 0.0
        %782 = vmatprep.subr.mxu0 0.0
        %783 = vmatpush1.msra.mxu0 0.0
        %784 = vmatprep.subr.mxu0 0.0
        %785 = vmatpush1.msra.mxu0 0.0
        %786 = vmatprep.mubr.f32.mxu0 0.0
        %787 = vmatmul.mubr.f32.gmra.mrb[0].mxu0 %v720
        %v788 = vpop.f32.mrb[0].mxu0
        %v789 = vadd.f32 0.0, %v788
        %v790 = vpop.f32.mrb[0].mxu0
        %791 = vdwg.mxu0
        %v792 = vmul.f32 %v789, 0.35355338
        %794 = vrot.lane.b32.xlu0 %v792, 120
        %v795 = vpop.permute.xlu0 %794
        %797 = vrot.lane.b32.xlu0 %v792, 112
        %v798 = vpop.permute.xlu0 %797
        %800 = vrot.lane.b32.xlu0 %v792, 104
        %v801 = vpop.permute.xlu0 %800
        %v803 = vcombine.low %v792, %v798
        %v804 = vcombine.high %v792, %v798
        %v806 = vunpack.c.l.s4 1983009808
        %v807 = vunpack.c.0.s8 %v806
        %v808 = vlaneseq
        %v809 = vshrl.u32 %v808, 7
        %v810 = vsub.s32 %v807, %v809
        %v811 = vrot.slane %v803, %v810
        %v813 = vunpack.c.l.s4 1983009808
        %v814 = vunpack.c.0.s8 %v813
        %v815 = vlaneseq
        %v816 = vshrl.u32 %v815, 7
        %v817 = vsub.s32 %v814, %v816
        %v818 = vrot.slane %v804, %v817
        %v819 = vcombine.low %v795, %v801
        %v820 = vcombine.high %v795, %v801
        %v822 = vunpack.c.l.s4 1983009808
        %v823 = vunpack.c.0.s8 %v822
        %v824 = vlaneseq
        %v825 = vshrl.u32 %v824, 7
        %v826 = vsub.s32 %v823, %v825
        %v827 = vrot.slane %v819, %v826
        %v829 = vunpack.c.l.s4 1983009808
        %v830 = vunpack.c.0.s8 %v829
        %v831 = vlaneseq
        %v832 = vshrl.u32 %v831, 7
        %v833 = vsub.s32 %v830, %v832
        %v834 = vrot.slane %v820, %v833
        %v835 = vcombine.low %v811, %v827
        %v836 = vcombine.high %v811, %v827
        %v838 = vunpack.c.l.s4 1934713408
        %v839 = vunpack.c.0.s8 %v838
        %v840 = vlaneseq
        %v841 = vshrl.u32 %v840, 7
        %v842 = vsub.s32 %v839, %v841
        %v843 = vrot.slane %v835, %v842
        %v845 = vunpack.c.l.s4 1934713408
        %v846 = vunpack.c.0.s8 %v845
        %v847 = vlaneseq
        %v848 = vshrl.u32 %v847, 7
        %v849 = vsub.s32 %v846, %v848
        %v850 = vrot.slane %v836, %v849
        %v851 = vcombine.low %v818, %v834
        %v852 = vcombine.high %v818, %v834
        %v854 = vunpack.c.l.s4 1934713408
        %v855 = vunpack.c.0.s8 %v854
        %v856 = vlaneseq
        %v857 = vshrl.u32 %v856, 7
        %v858 = vsub.s32 %v855, %v857
        %v859 = vrot.slane %v851, %v858
        %v861 = vunpack.c.l.s4 1934713408
        %v862 = vunpack.c.0.s8 %v861
        %v863 = vlaneseq
        %v864 = vshrl.u32 %v863, 7
        %v865 = vsub.s32 %v862, %v864
        %v866 = vrot.slane %v852, %v865
        %v867 = vcombine.high %v843, 0.0
        %v868 = vcombine.high %v850, 0.0
        %v869 = vcombine.high %v859, 0.0
        %v870 = vcombine.high %v866, 0.0
        %v871 = vcombine.low %v843, %v850
        %v873 = vunpack.c.l.s4 1983009808
        %v874 = vunpack.c.0.s8 %v873
        %v875 = vlaneseq
        %v876 = vshrl.u32 %v875, 7
        %v877 = vsub.s32 %v874, %v876
        %v878 = vrot.slane %v871, %v877
        %v879 = vcombine.low %v867, %v868
        %v881 = vunpack.c.l.s4 1983009808
        %v882 = vunpack.c.0.s8 %v881
        %v883 = vlaneseq
        %v884 = vshrl.u32 %v883, 7
        %v885 = vsub.s32 %v882, %v884
        %v886 = vrot.slane %v879, %v885
        %v887 = vcombine.low %v859, %v866
        %v889 = vunpack.c.l.s4 1983009808
        %v890 = vunpack.c.0.s8 %v889
        %v891 = vlaneseq
        %v892 = vshrl.u32 %v891, 7
        %v893 = vsub.s32 %v890, %v892
        %v894 = vrot.slane %v887, %v893
        %v895 = vcombine.low %v869, %v870
        %v897 = vunpack.c.l.s4 1983009808
        %v898 = vunpack.c.0.s8 %v897
        %v899 = vlaneseq
        %v900 = vshrl.u32 %v899, 7
        %v901 = vsub.s32 %v898, %v900
        %v902 = vrot.slane %v895, %v901
        %v903 = vcombine.low %v878, %v886
        %v904 = vcombine.high %v878, %v886
        %v906 = vunpack.c.l.s4 1934713408
        %v907 = vunpack.c.0.s8 %v906
        %v908 = vlaneseq
        %v909 = vshrl.u32 %v908, 7
        %v910 = vsub.s32 %v907, %v909
        %v911 = vrot.slane %v903, %v910
        %v913 = vunpack.c.l.s4 1934713408
        %v914 = vunpack.c.0.s8 %v913
        %v915 = vlaneseq
        %v916 = vshrl.u32 %v915, 7
        %v917 = vsub.s32 %v914, %v916
        %v918 = vrot.slane %v904, %v917
        %v919 = vcombine.low %v894, %v902
        %v920 = vcombine.high %v894, %v902
        %v922 = vunpack.c.l.s4 1934713408
        %v923 = vunpack.c.0.s8 %v922
        %v924 = vlaneseq
        %v925 = vshrl.u32 %v924, 7
        %v926 = vsub.s32 %v923, %v925
        %v927 = vrot.slane %v919, %v926
        %v929 = vunpack.c.l.s4 1934713408
        %v930 = vunpack.c.0.s8 %v929
        %v931 = vlaneseq
        %v932 = vshrl.u32 %v931, 7
        %v933 = vsub.s32 %v930, %v932
        %v934 = vrot.slane %v920, %v933
        %v935 = vcombine.low %v911, %v927
        %v936 = vcombine.high %v911, %v927
        %v937 = vcombine.low %v918, %v934
        %v938 = vcombine.high %v918, %v934
        %v939 = vld [vmem:[#allocation2] sm:$0xff]
        %941 = vrot.lane.b32.xlu0 %v939, 120
        %v942 = vpop.permute.xlu0 %941
        %944 = vrot.lane.b32.xlu0 %v939, 112
        %v945 = vpop.permute.xlu0 %944
        %947 = vrot.lane.b32.xlu0 %v939, 104
        %v948 = vpop.permute.xlu0 %947
        %v950 = vcombine.low %v939, %v945
        %v951 = vcombine.high %v939, %v945
        %v953 = vunpack.c.l.s4 1983009808
        %v954 = vunpack.c.0.s8 %v953
        %v955 = vlaneseq
        %v956 = vshrl.u32 %v955, 7
        %v957 = vsub.s32 %v954, %v956
        %v958 = vrot.slane %v950, %v957
        %v960 = vunpack.c.l.s4 1983009808
        %v961 = vunpack.c.0.s8 %v960
        %v962 = vlaneseq
        %v963 = vshrl.u32 %v962, 7
        %v964 = vsub.s32 %v961, %v963
        %v965 = vrot.slane %v951, %v964
        %v966 = vcombine.low %v942, %v948
        %v967 = vcombine.high %v942, %v948
        %v969 = vunpack.c.l.s4 1983009808
        %v970 = vunpack.c.0.s8 %v969
        %v971 = vlaneseq
        %v972 = vshrl.u32 %v971, 7
        %v973 = vsub.s32 %v970, %v972
        %v974 = vrot.slane %v966, %v973
        %v976 = vunpack.c.l.s4 1983009808
        %v977 = vunpack.c.0.s8 %v976
        %v978 = vlaneseq
        %v979 = vshrl.u32 %v978, 7
        %v980 = vsub.s32 %v977, %v979
        %v981 = vrot.slane %v967, %v980
        %v982 = vcombine.low %v958, %v974
        %v983 = vcombine.high %v958, %v974
        %v985 = vunpack.c.l.s4 1934713408
        %v986 = vunpack.c.0.s8 %v985
        %v987 = vlaneseq
        %v988 = vshrl.u32 %v987, 7
        %v989 = vsub.s32 %v986, %v988
        %v990 = vrot.slane %v982, %v989
        %v992 = vunpack.c.l.s4 1934713408
        %v993 = vunpack.c.0.s8 %v992
        %v994 = vlaneseq
        %v995 = vshrl.u32 %v994, 7
        %v996 = vsub.s32 %v993, %v995
        %v997 = vrot.slane %v983, %v996
        %v998 = vcombine.low %v965, %v981
        %v999 = vcombine.high %v965, %v981
        %v1001 = vunpack.c.l.s4 1934713408
        %v1002 = vunpack.c.0.s8 %v1001
        %v1003 = vlaneseq
        %v1004 = vshrl.u32 %v1003, 7
        %v1005 = vsub.s32 %v1002, %v1004
        %v1006 = vrot.slane %v998, %v1005
        %v1008 = vunpack.c.l.s4 1934713408
        %v1009 = vunpack.c.0.s8 %v1008
        %v1010 = vlaneseq
        %v1011 = vshrl.u32 %v1010, 7
        %v1012 = vsub.s32 %v1009, %v1011
        %v1013 = vrot.slane %v999, %v1012
        %v1014 = vcombine.high %v990, 0.0
        %v1015 = vcombine.high %v997, 0.0
        %v1016 = vcombine.high %v1006, 0.0
        %v1017 = vcombine.high %v1013, 0.0
        %v1018 = vcombine.low %v990, %v997
        %v1020 = vunpack.c.l.s4 1983009808
        %v1021 = vunpack.c.0.s8 %v1020
        %v1022 = vlaneseq
        %v1023 = vshrl.u32 %v1022, 7
        %v1024 = vsub.s32 %v1021, %v1023
        %v1025 = vrot.slane %v1018, %v1024
        %v1026 = vcombine.low %v1014, %v1015
        %v1028 = vunpack.c.l.s4 1983009808
        %v1029 = vunpack.c.0.s8 %v1028
        %v1030 = vlaneseq
        %v1031 = vshrl.u32 %v1030, 7
        %v1032 = vsub.s32 %v1029, %v1031
        %v1033 = vrot.slane %v1026, %v1032
        %v1034 = vcombine.low %v1006, %v1013
        %v1036 = vunpack.c.l.s4 1983009808
        %v1037 = vunpack.c.0.s8 %v1036
        %v1038 = vlaneseq
        %v1039 = vshrl.u32 %v1038, 7
        %v1040 = vsub.s32 %v1037, %v1039
        %v1041 = vrot.slane %v1034, %v1040
        %v1042 = vcombine.low %v1016, %v1017
        %v1044 = vunpack.c.l.s4 1983009808
        %v1045 = vunpack.c.0.s8 %v1044
        %v1046 = vlaneseq
        %v1047 = vshrl.u32 %v1046, 7
        %v1048 = vsub.s32 %v1045, %v1047
        %v1049 = vrot.slane %v1042, %v1048
        %v1050 = vcombine.low %v1025, %v1033
        %v1051 = vcombine.high %v1025, %v1033
        %v1053 = vunpack.c.l.s4 1934713408
        %v1054 = vunpack.c.0.s8 %v1053
        %v1055 = vlaneseq
        %v1056 = vshrl.u32 %v1055, 7
        %v1057 = vsub.s32 %v1054, %v1056
        %v1058 = vrot.slane %v1050, %v1057
        %v1060 = vunpack.c.l.s4 1934713408
        %v1061 = vunpack.c.0.s8 %v1060
        %v1062 = vlaneseq
        %v1063 = vshrl.u32 %v1062, 7
        %v1064 = vsub.s32 %v1061, %v1063
        %v1065 = vrot.slane %v1051, %v1064
        %v1066 = vcombine.low %v1041, %v1049
        %v1067 = vcombine.high %v1041, %v1049
        %v1069 = vunpack.c.l.s4 1934713408
        %v1070 = vunpack.c.0.s8 %v1069
        %v1071 = vlaneseq
        %v1072 = vshrl.u32 %v1071, 7
        %v1073 = vsub.s32 %v1070, %v1072
        %v1074 = vrot.slane %v1066, %v1073
        %v1076 = vunpack.c.l.s4 1934713408
        %v1077 = vunpack.c.0.s8 %v1076
        %v1078 = vlaneseq
        %v1079 = vshrl.u32 %v1078, 7
        %v1080 = vsub.s32 %v1077, %v1079
        %v1081 = vrot.slane %v1067, %v1080
        %v1082 = vcombine.low %v1058, %v1074
        %v1083 = vcombine.high %v1058, %v1074
        %v1084 = vcombine.low %v1065, %v1081
        %v1085 = vcombine.high %v1065, %v1081
        %v1086 = vld [vmem:[#allocation3] sm:$0xff]
        %1088 = vrot.lane.b32.xlu0 %v1086, 120
        %v1089 = vpop.permute.xlu0 %1088
        %1091 = vrot.lane.b32.xlu0 %v1086, 112
        %v1092 = vpop.permute.xlu0 %1091
        %1094 = vrot.lane.b32.xlu0 %v1086, 104
        %v1095 = vpop.permute.xlu0 %1094
        %v1097 = vcombine.low %v1086, %v1092
        %v1098 = vcombine.high %v1086, %v1092
        %v1100 = vunpack.c.l.s4 1983009808
        %v1101 = vunpack.c.0.s8 %v1100
        %v1102 = vlaneseq
        %v1103 = vshrl.u32 %v1102, 7
        %v1104 = vsub.s32 %v1101, %v1103
        %v1105 = vrot.slane %v1097, %v1104
        %v1107 = vunpack.c.l.s4 1983009808
        %v1108 = vunpack.c.0.s8 %v1107
        %v1109 = vlaneseq
        %v1110 = vshrl.u32 %v1109, 7
        %v1111 = vsub.s32 %v1108, %v1110
        %v1112 = vrot.slane %v1098, %v1111
        %v1113 = vcombine.low %v1089, %v1095
        %v1114 = vcombine.high %v1089, %v1095
        %v1116 = vunpack.c.l.s4 1983009808
        %v1117 = vunpack.c.0.s8 %v1116
        %v1118 = vlaneseq
        %v1119 = vshrl.u32 %v1118, 7
        %v1120 = vsub.s32 %v1117, %v1119
        %v1121 = vrot.slane %v1113, %v1120
        %v1123 = vunpack.c.l.s4 1983009808
        %v1124 = vunpack.c.0.s8 %v1123
        %v1125 = vlaneseq
        %v1126 = vshrl.u32 %v1125, 7
        %v1127 = vsub.s32 %v1124, %v1126
        %v1128 = vrot.slane %v1114, %v1127
        %v1129 = vcombine.low %v1105, %v1121
        %v1130 = vcombine.high %v1105, %v1121
        %v1132 = vunpack.c.l.s4 1934713408
        %v1133 = vunpack.c.0.s8 %v1132
        %v1134 = vlaneseq
        %v1135 = vshrl.u32 %v1134, 7
        %v1136 = vsub.s32 %v1133, %v1135
        %v1137 = vrot.slane %v1129, %v1136
        %v1139 = vunpack.c.l.s4 1934713408
        %v1140 = vunpack.c.0.s8 %v1139
        %v1141 = vlaneseq
        %v1142 = vshrl.u32 %v1141, 7
        %v1143 = vsub.s32 %v1140, %v1142
        %v1144 = vrot.slane %v1130, %v1143
        %v1145 = vcombine.low %v1112, %v1128
        %v1146 = vcombine.high %v1112, %v1128
        %v1148 = vunpack.c.l.s4 1934713408
        %v1149 = vunpack.c.0.s8 %v1148
        %v1150 = vlaneseq
        %v1151 = vshrl.u32 %v1150, 7
        %v1152 = vsub.s32 %v1149, %v1151
        %v1153 = vrot.slane %v1145, %v1152
        %v1155 = vunpack.c.l.s4 1934713408
        %v1156 = vunpack.c.0.s8 %v1155
        %v1157 = vlaneseq
        %v1158 = vshrl.u32 %v1157, 7
        %v1159 = vsub.s32 %v1156, %v1158
        %v1160 = vrot.slane %v1146, %v1159
        %v1161 = vcombine.high %v1137, 0.0
        %v1162 = vcombine.high %v1144, 0.0
        %v1163 = vcombine.high %v1153, 0.0
        %v1164 = vcombine.high %v1160, 0.0
        %v1165 = vcombine.low %v1137, %v1144
        %v1167 = vunpack.c.l.s4 1983009808
        %v1168 = vunpack.c.0.s8 %v1167
        %v1169 = vlaneseq
        %v1170 = vshrl.u32 %v1169, 7
        %v1171 = vsub.s32 %v1168, %v1170
        %v1172 = vrot.slane %v1165, %v1171
        %v1173 = vcombine.low %v1161, %v1162
        %v1175 = vunpack.c.l.s4 1983009808
        %v1176 = vunpack.c.0.s8 %v1175
        %v1177 = vlaneseq
        %v1178 = vshrl.u32 %v1177, 7
        %v1179 = vsub.s32 %v1176, %v1178
        %v1180 = vrot.slane %v1173, %v1179
        %v1181 = vcombine.low %v1153, %v1160
        %v1183 = vunpack.c.l.s4 1983009808
        %v1184 = vunpack.c.0.s8 %v1183
        %v1185 = vlaneseq
        %v1186 = vshrl.u32 %v1185, 7
        %v1187 = vsub.s32 %v1184, %v1186
        %v1188 = vrot.slane %v1181, %v1187
        %v1189 = vcombine.low %v1163, %v1164
        %v1191 = vunpack.c.l.s4 1983009808
        %v1192 = vunpack.c.0.s8 %v1191
        %v1193 = vlaneseq
        %v1194 = vshrl.u32 %v1193, 7
        %v1195 = vsub.s32 %v1192, %v1194
        %v1196 = vrot.slane %v1189, %v1195
        %v1197 = vcombine.low %v1172, %v1180
        %v1198 = vcombine.high %v1172, %v1180
        %v1200 = vunpack.c.l.s4 1934713408
        %v1201 = vunpack.c.0.s8 %v1200
        %v1202 = vlaneseq
        %v1203 = vshrl.u32 %v1202, 7
        %v1204 = vsub.s32 %v1201, %v1203
        %v1205 = vrot.slane %v1197, %v1204
        %v1207 = vunpack.c.l.s4 1934713408
        %v1208 = vunpack.c.0.s8 %v1207
        %v1209 = vlaneseq
        %v1210 = vshrl.u32 %v1209, 7
        %v1211 = vsub.s32 %v1208, %v1210
        %v1212 = vrot.slane %v1198, %v1211
        %v1213 = vcombine.low %v1188, %v1196
        %v1214 = vcombine.high %v1188, %v1196
        %v1216 = vunpack.c.l.s4 1934713408
        %v1217 = vunpack.c.0.s8 %v1216
        %v1218 = vlaneseq
        %v1219 = vshrl.u32 %v1218, 7
        %v1220 = vsub.s32 %v1217, %v1219
        %v1221 = vrot.slane %v1213, %v1220
        %v1223 = vunpack.c.l.s4 1934713408
        %v1224 = vunpack.c.0.s8 %v1223
        %v1225 = vlaneseq
        %v1226 = vshrl.u32 %v1225, 7
        %v1227 = vsub.s32 %v1224, %v1226
        %v1228 = vrot.slane %v1214, %v1227
        %v1229 = vcombine.low %v1205, %v1221
        %v1230 = vcombine.high %v1205, %v1221
        %v1231 = vcombine.low %v1212, %v1228
        %v1232 = vcombine.high %v1212, %v1228
        %vm1233 = vcmask 64512
        %v1235 = vsel %vm1233, %v935, 0
        %v1238 = vsel %vm1233, %v1082, 0
        %1240 = vmatprep.subr.mxu0 0.0
        %1241 = vmatpush1.xpose.msra.mxu0 %v1238
        %1242 = vmatprep.subr.mxu0 0.0
        %1243 = vmatpush1.xpose.msra.mxu0 0.0
        %1244 = vmatprep.subr.mxu0 0.0
        %1245 = vmatpush1.xpose.msra.mxu0 0.0
        %1246 = vmatprep.subr.mxu0 0.0
        %1247 = vmatpush1.xpose.msra.mxu0 0.0
        %1248 = vmatprep.subr.mxu0 0.0
        %1249 = vmatpush1.xpose.msra.mxu0 0.0
        %1250 = vmatprep.subr.mxu0 0.0
        %1251 = vmatpush1.xpose.msra.mxu0 0.0
        %1252 = vmatprep.subr.mxu0 0.0
        %1253 = vmatpush1.xpose.msra.mxu0 0.0
        %1254 = vmatprep.subr.mxu0 0.0
        %1255 = vmatpush1.xpose.msra.mxu0 0.0
        %1256 = vmatprep.subr.mxu0 0.0
        %1257 = vmatpush1.xpose.msra.mxu0 0.0
        %1258 = vmatprep.subr.mxu0 0.0
        %1259 = vmatpush1.xpose.msra.mxu0 0.0
        %1260 = vmatprep.subr.mxu0 0.0
        %1261 = vmatpush1.xpose.msra.mxu0 0.0
        %1262 = vmatprep.subr.mxu0 0.0
        %1263 = vmatpush1.xpose.msra.mxu0 0.0
        %1264 = vmatprep.subr.mxu0 0.0
        %1265 = vmatpush1.xpose.msra.mxu0 0.0
        %1266 = vmatprep.subr.mxu0 0.0
        %1267 = vmatpush1.xpose.msra.mxu0 0.0
        %1268 = vmatprep.subr.mxu0 0.0
        %1269 = vmatpush1.xpose.msra.mxu0 0.0
        %1270 = vmatprep.subr.mxu0 0.0
        %1271 = vmatpush1.xpose.msra.mxu0 0.0
        %1272 = vmatprep.subr.mxu0 0.0
        %1273 = vmatpush1.xpose.msra.mxu0 0.0
        %1274 = vmatprep.subr.mxu0 0.0
        %1275 = vmatpush1.xpose.msra.mxu0 0.0
        %1276 = vmatprep.subr.mxu0 0.0
        %1277 = vmatpush1.xpose.msra.mxu0 0.0
        %1278 = vmatprep.subr.mxu0 0.0
        %1279 = vmatpush1.xpose.msra.mxu0 0.0
        %1280 = vmatprep.subr.mxu0 0.0
        %1281 = vmatpush1.xpose.msra.mxu0 0.0
        %1282 = vmatprep.subr.mxu0 0.0
        %1283 = vmatpush1.xpose.msra.mxu0 0.0
        %1284 = vmatprep.subr.mxu0 0.0
        %1285 = vmatpush1.xpose.msra.mxu0 0.0
        %1286 = vmatprep.subr.mxu0 0.0
        %1287 = vmatpush1.xpose.msra.mxu0 0.0
        %1288 = vmatprep.subr.mxu0 0.0
        %1289 = vmatpush1.xpose.msra.mxu0 0.0
        %1290 = vmatprep.subr.mxu0 0.0
        %1291 = vmatpush1.xpose.msra.mxu0 0.0
        %1292 = vmatprep.subr.mxu0 0.0
        %1293 = vmatpush1.xpose.msra.mxu0 0.0
        %1294 = vmatprep.subr.mxu0 0.0
        %1295 = vmatpush1.xpose.msra.mxu0 0.0
        %1296 = vmatprep.subr.mxu0 0.0
        %1297 = vmatpush1.xpose.msra.mxu0 0.0
        %1298 = vmatprep.subr.mxu0 0.0
        %1299 = vmatpush1.xpose.msra.mxu0 0.0
        %1300 = vmatprep.subr.mxu0 0.0
        %1301 = vmatpush1.xpose.msra.mxu0 0.0
        %1302 = vmatprep.subr.mxu0 0.0
        %1303 = vmatpush1.xpose.msra.mxu0 0.0
        %1304 = vmatprep.mubr.f32.mxu0 0.0
        %1305 = vmatmul.mubr.f32.gmra.mrb[0].mxu0 %v1235
        %v1306 = vpop.f32.mrb[0].mxu0
        %v1307 = vadd.f32 0.0, %v1306
        %v1308 = vpop.f32.mrb[0].mxu0
        %1309 = vdwg.mxu0
        %v1311 = vsel %vm1233, %v936, 0
        %v1314 = vsel %vm1233, %v1083, 0
        %1316 = vmatprep.subr.mxu0 0.0
        %1317 = vmatpush1.xpose.msra.mxu0 %v1314
        %1318 = vmatprep.subr.mxu0 0.0
        %1319 = vmatpush1.xpose.msra.mxu0 0.0
        %1320 = vmatprep.subr.mxu0 0.0
        %1321 = vmatpush1.xpose.msra.mxu0 0.0
        %1322 = vmatprep.subr.mxu0 0.0
        %1323 = vmatpush1.xpose.msra.mxu0 0.0
        %1324 = vmatprep.subr.mxu0 0.0
        %1325 = vmatpush1.xpose.msra.mxu0 0.0
        %1326 = vmatprep.subr.mxu0 0.0
        %1327 = vmatpush1.xpose.msra.mxu0 0.0
        %1328 = vmatprep.subr.mxu0 0.0
        %1329 = vmatpush1.xpose.msra.mxu0 0.0
        %1330 = vmatprep.subr.mxu0 0.0
        %1331 = vmatpush1.xpose.msra.mxu0 0.0
        %1332 = vmatprep.subr.mxu0 0.0
        %1333 = vmatpush1.xpose.msra.mxu0 0.0
        %1334 = vmatprep.subr.mxu0 0.0
        %1335 = vmatpush1.xpose.msra.mxu0 0.0
        %1336 = vmatprep.subr.mxu0 0.0
        %1337 = vmatpush1.xpose.msra.mxu0 0.0
        %1338 = vmatprep.subr.mxu0 0.0
        %1339 = vmatpush1.xpose.msra.mxu0 0.0
        %1340 = vmatprep.subr.mxu0 0.0
        %1341 = vmatpush1.xpose.msra.mxu0 0.0
        %1342 = vmatprep.subr.mxu0 0.0
        %1343 = vmatpush1.xpose.msra.mxu0 0.0
        %1344 = vmatprep.subr.mxu0 0.0
        %1345 = vmatpush1.xpose.msra.mxu0 0.0
        %1346 = vmatprep.subr.mxu0 0.0
        %1347 = vmatpush1.xpose.msra.mxu0 0.0
        %1348 = vmatprep.subr.mxu0 0.0
        %1349 = vmatpush1.xpose.msra.mxu0 0.0
        %1350 = vmatprep.subr.mxu0 0.0
        %1351 = vmatpush1.xpose.msra.mxu0 0.0
        %1352 = vmatprep.subr.mxu0 0.0
        %1353 = vmatpush1.xpose.msra.mxu0 0.0
        %1354 = vmatprep.subr.mxu0 0.0
        %1355 = vmatpush1.xpose.msra.mxu0 0.0
        %1356 = vmatprep.subr.mxu0 0.0
        %1357 = vmatpush1.xpose.msra.mxu0 0.0
        %1358 = vmatprep.subr.mxu0 0.0
        %1359 = vmatpush1.xpose.msra.mxu0 0.0
        %1360 = vmatprep.subr.mxu0 0.0
        %1361 = vmatpush1.xpose.msra.mxu0 0.0
        %1362 = vmatprep.subr.mxu0 0.0
        %1363 = vmatpush1.xpose.msra.mxu0 0.0
        %1364 = vmatprep.subr.mxu0 0.0
        %1365 = vmatpush1.xpose.msra.mxu0 0.0
        %1366 = vmatprep.subr.mxu0 0.0
        %1367 = vmatpush1.xpose.msra.mxu0 0.0
        %1368 = vmatprep.subr.mxu0 0.0
        %1369 = vmatpush1.xpose.msra.mxu0 0.0
        %1370 = vmatprep.subr.mxu0 0.0
        %1371 = vmatpush1.xpose.msra.mxu0 0.0
        %1372 = vmatprep.subr.mxu0 0.0
        %1373 = vmatpush1.xpose.msra.mxu0 0.0
        %1374 = vmatprep.subr.mxu0 0.0
        %1375 = vmatpush1.xpose.msra.mxu0 0.0
        %1376 = vmatprep.subr.mxu0 0.0
        %1377 = vmatpush1.xpose.msra.mxu0 0.0
        %1378 = vmatprep.subr.mxu0 0.0
        %1379 = vmatpush1.xpose.msra.mxu0 0.0
        %1380 = vmatprep.mubr.f32.mxu0 0.0
        %1381 = vmatmul.mubr.f32.gmra.mrb[0].mxu0 %v1311
        %v1382 = vpop.f32.mrb[0].mxu0
        %v1383 = vadd.f32 0.0, %v1382
        %v1384 = vpop.f32.mrb[0].mxu0
        %1385 = vdwg.mxu0
        %v1387 = vsel %vm1233, %v937, 0
        %v1390 = vsel %vm1233, %v1084, 0
        %1392 = vmatprep.subr.mxu0 0.0
        %1393 = vmatpush1.xpose.msra.mxu0 %v1390
        %1394 = vmatprep.subr.mxu0 0.0
        %1395 = vmatpush1.xpose.msra.mxu0 0.0
        %1396 = vmatprep.subr.mxu0 0.0
        %1397 = vmatpush1.xpose.msra.mxu0 0.0
        %1398 = vmatprep.subr.mxu0 0.0
        %1399 = vmatpush1.xpose.msra.mxu0 0.0
        %1400 = vmatprep.subr.mxu0 0.0
        %1401 = vmatpush1.xpose.msra.mxu0 0.0
        %1402 = vmatprep.subr.mxu0 0.0
        %1403 = vmatpush1.xpose.msra.mxu0 0.0
        %1404 = vmatprep.subr.mxu0 0.0
        %1405 = vmatpush1.xpose.msra.mxu0 0.0
        %1406 = vmatprep.subr.mxu0 0.0
        %1407 = vmatpush1.xpose.msra.mxu0 0.0
        %1408 = vmatprep.subr.mxu0 0.0
        %1409 = vmatpush1.xpose.msra.mxu0 0.0
        %1410 = vmatprep.subr.mxu0 0.0
        %1411 = vmatpush1.xpose.msra.mxu0 0.0
        %1412 = vmatprep.subr.mxu0 0.0
        %1413 = vmatpush1.xpose.msra.mxu0 0.0
        %1414 = vmatprep.subr.mxu0 0.0
        %1415 = vmatpush1.xpose.msra.mxu0 0.0
        %1416 = vmatprep.subr.mxu0 0.0
        %1417 = vmatpush1.xpose.msra.mxu0 0.0
        %1418 = vmatprep.subr.mxu0 0.0
        %1419 = vmatpush1.xpose.msra.mxu0 0.0
        %1420 = vmatprep.subr.mxu0 0.0
        %1421 = vmatpush1.xpose.msra.mxu0 0.0
        %1422 = vmatprep.subr.mxu0 0.0
        %1423 = vmatpush1.xpose.msra.mxu0 0.0
        %1424 = vmatprep.subr.mxu0 0.0
        %1425 = vmatpush1.xpose.msra.mxu0 0.0
        %1426 = vmatprep.subr.mxu0 0.0
        %1427 = vmatpush1.xpose.msra.mxu0 0.0
        %1428 = vmatprep.subr.mxu0 0.0
        %1429 = vmatpush1.xpose.msra.mxu0 0.0
        %1430 = vmatprep.subr.mxu0 0.0
        %1431 = vmatpush1.xpose.msra.mxu0 0.0
        %1432 = vmatprep.subr.mxu0 0.0
        %1433 = vmatpush1.xpose.msra.mxu0 0.0
        %1434 = vmatprep.subr.mxu0 0.0
        %1435 = vmatpush1.xpose.msra.mxu0 0.0
        %1436 = vmatprep.subr.mxu0 0.0
        %1437 = vmatpush1.xpose.msra.mxu0 0.0
        %1438 = vmatprep.subr.mxu0 0.0
        %1439 = vmatpush1.xpose.msra.mxu0 0.0
        %1440 = vmatprep.subr.mxu0 0.0
        %1441 = vmatpush1.xpose.msra.mxu0 0.0
        %1442 = vmatprep.subr.mxu0 0.0
        %1443 = vmatpush1.xpose.msra.mxu0 0.0
        %1444 = vmatprep.subr.mxu0 0.0
        %1445 = vmatpush1.xpose.msra.mxu0 0.0
        %1446 = vmatprep.subr.mxu0 0.0
        %1447 = vmatpush1.xpose.msra.mxu0 0.0
        %1448 = vmatprep.subr.mxu0 0.0
        %1449 = vmatpush1.xpose.msra.mxu0 0.0
        %1450 = vmatprep.subr.mxu0 0.0
        %1451 = vmatpush1.xpose.msra.mxu0 0.0
        %1452 = vmatprep.subr.mxu0 0.0
        %1453 = vmatpush1.xpose.msra.mxu0 0.0
        %1454 = vmatprep.subr.mxu0 0.0
        %1455 = vmatpush1.xpose.msra.mxu0 0.0
        %1456 = vmatprep.mubr.f32.mxu0 0.0
        %1457 = vmatmul.mubr.f32.gmra.mrb[0].mxu0 %v1387
        %v1458 = vpop.f32.mrb[0].mxu0
        %v1459 = vadd.f32 0.0, %v1458
        %v1460 = vpop.f32.mrb[0].mxu0
        %1461 = vdwg.mxu0
        %v1463 = vsel %vm1233, %v938, 0
        %v1466 = vsel %vm1233, %v1085, 0
        %1468 = vmatprep.subr.mxu0 0.0
        %1469 = vmatpush1.xpose.msra.mxu0 %v1466
        %1470 = vmatprep.subr.mxu0 0.0
        %1471 = vmatpush1.xpose.msra.mxu0 0.0
        %1472 = vmatprep.subr.mxu0 0.0
        %1473 = vmatpush1.xpose.msra.mxu0 0.0
        %1474 = vmatprep.subr.mxu0 0.0
        %1475 = vmatpush1.xpose.msra.mxu0 0.0
        %1476 = vmatprep.subr.mxu0 0.0
        %1477 = vmatpush1.xpose.msra.mxu0 0.0
        %1478 = vmatprep.subr.mxu0 0.0
        %1479 = vmatpush1.xpose.msra.mxu0 0.0
        %1480 = vmatprep.subr.mxu0 0.0
        %1481 = vmatpush1.xpose.msra.mxu0 0.0
        %1482 = vmatprep.subr.mxu0 0.0
        %1483 = vmatpush1.xpose.msra.mxu0 0.0
        %1484 = vmatprep.subr.mxu0 0.0
        %1485 = vmatpush1.xpose.msra.mxu0 0.0
        %1486 = vmatprep.subr.mxu0 0.0
        %1487 = vmatpush1.xpose.msra.mxu0 0.0
        %1488 = vmatprep.subr.mxu0 0.0
        %1489 = vmatpush1.xpose.msra.mxu0 0.0
        %1490 = vmatprep.subr.mxu0 0.0
        %1491 = vmatpush1.xpose.msra.mxu0 0.0
        %1492 = vmatprep.subr.mxu0 0.0
        %1493 = vmatpush1.xpose.msra.mxu0 0.0
        %1494 = vmatprep.subr.mxu0 0.0
        %1495 = vmatpush1.xpose.msra.mxu0 0.0
        %1496 = vmatprep.subr.mxu0 0.0
        %1497 = vmatpush1.xpose.msra.mxu0 0.0
        %1498 = vmatprep.subr.mxu0 0.0
        %1499 = vmatpush1.xpose.msra.mxu0 0.0
        %1500 = vmatprep.subr.mxu0 0.0
        %1501 = vmatpush1.xpose.msra.mxu0 0.0
        %1502 = vmatprep.subr.mxu0 0.0
        %1503 = vmatpush1.xpose.msra.mxu0 0.0
        %1504 = vmatprep.subr.mxu0 0.0
        %1505 = vmatpush1.xpose.msra.mxu0 0.0
        %1506 = vmatprep.subr.mxu0 0.0
        %1507 = vmatpush1.xpose.msra.mxu0 0.0
        %1508 = vmatprep.subr.mxu0 0.0
        %1509 = vmatpush1.xpose.msra.mxu0 0.0
        %1510 = vmatprep.subr.mxu0 0.0
        %1511 = vmatpush1.xpose.msra.mxu0 0.0
        %1512 = vmatprep.subr.mxu0 0.0
        %1513 = vmatpush1.xpose.msra.mxu0 0.0
        %1514 = vmatprep.subr.mxu0 0.0
        %1515 = vmatpush1.xpose.msra.mxu0 0.0
        %1516 = vmatprep.subr.mxu0 0.0
        %1517 = vmatpush1.xpose.msra.mxu0 0.0
        %1518 = vmatprep.subr.mxu0 0.0
        %1519 = vmatpush1.xpose.msra.mxu0 0.0
        %1520 = vmatprep.subr.mxu0 0.0
        %1521 = vmatpush1.xpose.msra.mxu0 0.0
        %1522 = vmatprep.subr.mxu0 0.0
        %1523 = vmatpush1.xpose.msra.mxu0 0.0
        %1524 = vmatprep.subr.mxu0 0.0
        %1525 = vmatpush1.xpose.msra.mxu0 0.0
        %1526 = vmatprep.subr.mxu0 0.0
        %1527 = vmatpush1.xpose.msra.mxu0 0.0
        %1528 = vmatprep.subr.mxu0 0.0
        %1529 = vmatpush1.xpose.msra.mxu0 0.0
        %1530 = vmatprep.subr.mxu0 0.0
        %1531 = vmatpush1.xpose.msra.mxu0 0.0
        %1532 = vmatprep.mubr.f32.mxu0 0.0
        %1533 = vmatmul.mubr.f32.gmra.mrb[0].mxu0 %v1463
        %v1534 = vpop.f32.mrb[0].mxu0
        %v1535 = vadd.f32 0.0, %v1534
        %v1536 = vpop.f32.mrb[0].mxu0
        %1537 = vdwg.mxu0
        %v1538 = vsel %vm1233, %v1307, -inf
        %1539 = vmax.xlane.f32.xlu0 %v1538
        %v1540 = vpop.xlane.xlu0 %1539
        %v1541 = vsel %vm1233, %v1383, -inf
        %1542 = vmax.xlane.f32.xlu0 %v1541
        %v1543 = vpop.xlane.xlu0 %1542
        %v1544 = vsel %vm1233, %v1459, -inf
        %1545 = vmax.xlane.f32.xlu0 %v1544
        %v1546 = vpop.xlane.xlu0 %1545
        %v1547 = vsel %vm1233, %v1535, -inf
        %1548 = vmax.xlane.f32.xlu0 %v1547
        %v1549 = vpop.xlane.xlu0 %1548
        %v1550 = vsub.f32 %v1307, %v1540
        %v1551 = vsub.f32 %v1383, %v1543
        %v1552 = vsub.f32 %v1459, %v1546
        %v1553 = vsub.f32 %v1535, %v1549
        %v1554 = vmul.f32 %v1550, 1.442695
        %v1555 = vpow.pop %v1554
        %v1556 = vmul.f32 %v1551, 1.442695
        %v1557 = vpow.pop %v1556
        %v1558 = vmul.f32 %v1552, 1.442695
        %v1559 = vpow.pop %v1558
        %v1560 = vmul.f32 %v1553, 1.442695
        %v1561 = vpow.pop %v1560
        %v1562 = vsel %vm1233, %v1555, 0.0
        %1563 = vadd.xlane.f32.xlu0 %v1562
        %v1564 = vpop.xlane.xlu0 %1563
        %v1565 = vsel %vm1233, %v1557, 0.0
        %1566 = vadd.xlane.f32.xlu0 %v1565
        %v1567 = vpop.xlane.xlu0 %1566
        %v1568 = vsel %vm1233, %v1559, 0.0
        %1569 = vadd.xlane.f32.xlu0 %v1568
        %v1570 = vpop.xlane.xlu0 %1569
        %v1571 = vsel %vm1233, %v1561, 0.0
        %1572 = vadd.xlane.f32.xlu0 %v1571
        %v1573 = vpop.xlane.xlu0 %1572
        %v1574 = vrcp.pop %v1564
        %v1575 = vrcp.pop %v1567
        %v1576 = vrcp.pop %v1570
        %v1577 = vrcp.pop %v1573
        %v1578 = vmul.f32 %v1555, %v1574
        %v1579 = vmul.f32 %v1557, %v1575
        %v1580 = vmul.f32 %v1559, %v1576
        %v1581 = vmul.f32 %v1561, %v1577
        %1582 = vst.msk [vmem:[%s551] sm:$0xff] %vm1233, %v1578
        %1583 = vst.msk [vmem:[%s551 + $0x8] sm:$0xff] %vm1233, %v1579
        %1584 = vst.msk [vmem:[%s551 + $0x10] sm:$0xff] %vm1233, %v1580
        %1585 = vst.msk [vmem:[%s551 + $0x18] sm:$0xff] %vm1233, %v1581
        %v1587 = vsel %vm1233, %v1578, 0
        %1589 = vmatprep.subr.mxu0 0.0
        %1590 = vmatpush1.msra.mxu0 %v1229
        %1591 = vmatprep.subr.mxu0 0.0
        %1592 = vmatpush1.msra.mxu0 0.0
        %1593 = vmatprep.subr.mxu0 0.0
        %1594 = vmatpush1.msra.mxu0 0.0
        %1595 = vmatprep.subr.mxu0 0.0
        %1596 = vmatpush1.msra.mxu0 0.0
        %1597 = vmatprep.subr.mxu0 0.0
        %1598 = vmatpush1.msra.mxu0 0.0
        %1599 = vmatprep.subr.mxu0 0.0
        %1600 = vmatpush1.msra.mxu0 0.0
        %1601 = vmatprep.subr.mxu0 0.0
        %1602 = vmatpush1.msra.mxu0 0.0
        %1603 = vmatprep.subr.mxu0 0.0
        %1604 = vmatpush1.msra.mxu0 0.0
        %1605 = vmatprep.subr.mxu0 0.0
        %1606 = vmatpush1.msra.mxu0 0.0
        %1607 = vmatprep.subr.mxu0 0.0
        %1608 = vmatpush1.msra.mxu0 0.0
        %1609 = vmatprep.subr.mxu0 0.0
        %1610 = vmatpush1.msra.mxu0 0.0
        %1611 = vmatprep.subr.mxu0 0.0
        %1612 = vmatpush1.msra.mxu0 0.0
        %1613 = vmatprep.subr.mxu0 0.0
        %1614 = vmatpush1.msra.mxu0 0.0
        %1615 = vmatprep.subr.mxu0 0.0
        %1616 = vmatpush1.msra.mxu0 0.0
        %1617 = vmatprep.subr.mxu0 0.0
        %1618 = vmatpush1.msra.mxu0 0.0
        %1619 = vmatprep.subr.mxu0 0.0
        %1620 = vmatpush1.msra.mxu0 0.0
        %1621 = vmatprep.subr.mxu0 0.0
        %1622 = vmatpush1.msra.mxu0 0.0
        %1623 = vmatprep.subr.mxu0 0.0
        %1624 = vmatpush1.msra.mxu0 0.0
        %1625 = vmatprep.subr.mxu0 0.0
        %1626 = vmatpush1.msra.mxu0 0.0
        %1627 = vmatprep.subr.mxu0 0.0
        %1628 = vmatpush1.msra.mxu0 0.0
        %1629 = vmatprep.subr.mxu0 0.0
        %1630 = vmatpush1.msra.mxu0 0.0
        %1631 = vmatprep.subr.mxu0 0.0
        %1632 = vmatpush1.msra.mxu0 0.0
        %1633 = vmatprep.subr.mxu0 0.0
        %1634 = vmatpush1.msra.mxu0 0.0
        %1635 = vmatprep.subr.mxu0 0.0
        %1636 = vmatpush1.msra.mxu0 0.0
        %1637 = vmatprep.subr.mxu0 0.0
        %1638 = vmatpush1.msra.mxu0 0.0
        %1639 = vmatprep.subr.mxu0 0.0
        %1640 = vmatpush1.msra.mxu0 0.0
        %1641 = vmatprep.subr.mxu0 0.0
        %1642 = vmatpush1.msra.mxu0 0.0
        %1643 = vmatprep.subr.mxu0 0.0
        %1644 = vmatpush1.msra.mxu0 0.0
        %1645 = vmatprep.subr.mxu0 0.0
        %1646 = vmatpush1.msra.mxu0 0.0
        %1647 = vmatprep.subr.mxu0 0.0
        %1648 = vmatpush1.msra.mxu0 0.0
        %1649 = vmatprep.subr.mxu0 0.0
        %1650 = vmatpush1.msra.mxu0 0.0
        %1651 = vmatprep.subr.mxu0 0.0
        %1652 = vmatpush1.msra.mxu0 0.0
        %1653 = vmatprep.mubr.f32.mxu0 0.0
        %1654 = vmatmul.mubr.f32.gmra.mrb[0].mxu0 %v1587
        %v1655 = vpop.f32.mrb[0].mxu0
        %v1656 = vadd.f32 0.0, %v1655
        %v1657 = vpop.f32.mrb[0].mxu0
        %1658 = vdwg.mxu0
        %v1660 = vsel %vm1233, %v1579, 0
        %1662 = vmatprep.subr.mxu0 0.0
        %1663 = vmatpush1.msra.mxu0 %v1230
        %1664 = vmatprep.subr.mxu0 0.0
        %1665 = vmatpush1.msra.mxu0 0.0
        %1666 = vmatprep.subr.mxu0 0.0
        %1667 = vmatpush1.msra.mxu0 0.0
        %1668 = vmatprep.subr.mxu0 0.0
        %1669 = vmatpush1.msra.mxu0 0.0
        %1670 = vmatprep.subr.mxu0 0.0
        %1671 = vmatpush1.msra.mxu0 0.0
        %1672 = vmatprep.subr.mxu0 0.0
        %1673 = vmatpush1.msra.mxu0 0.0
        %1674 = vmatprep.subr.mxu0 0.0
        %1675 = vmatpush1.msra.mxu0 0.0
        %1676 = vmatprep.subr.mxu0 0.0
        %1677 = vmatpush1.msra.mxu0 0.0
        %1678 = vmatprep.subr.mxu0 0.0
        %1679 = vmatpush1.msra.mxu0 0.0
        %1680 = vmatprep.subr.mxu0 0.0
        %1681 = vmatpush1.msra.mxu0 0.0
        %1682 = vmatprep.subr.mxu0 0.0
        %1683 = vmatpush1.msra.mxu0 0.0
        %1684 = vmatprep.subr.mxu0 0.0
        %1685 = vmatpush1.msra.mxu0 0.0
        %1686 = vmatprep.subr.mxu0 0.0
        %1687 = vmatpush1.msra.mxu0 0.0
        %1688 = vmatprep.subr.mxu0 0.0
        %1689 = vmatpush1.msra.mxu0 0.0
        %1690 = vmatprep.subr.mxu0 0.0
        %1691 = vmatpush1.msra.mxu0 0.0
        %1692 = vmatprep.subr.mxu0 0.0
        %1693 = vmatpush1.msra.mxu0 0.0
        %1694 = vmatprep.subr.mxu0 0.0
        %1695 = vmatpush1.msra.mxu0 0.0
        %1696 = vmatprep.subr.mxu0 0.0
        %1697 = vmatpush1.msra.mxu0 0.0
        %1698 = vmatprep.subr.mxu0 0.0
        %1699 = vmatpush1.msra.mxu0 0.0
        %1700 = vmatprep.subr.mxu0 0.0
        %1701 = vmatpush1.msra.mxu0 0.0
        %1702 = vmatprep.subr.mxu0 0.0
        %1703 = vmatpush1.msra.mxu0 0.0
        %1704 = vmatprep.subr.mxu0 0.0
        %1705 = vmatpush1.msra.mxu0 0.0
        %1706 = vmatprep.subr.mxu0 0.0
        %1707 = vmatpush1.msra.mxu0 0.0
        %1708 = vmatprep.subr.mxu0 0.0
        %1709 = vmatpush1.msra.mxu0 0.0
        %1710 = vmatprep.subr.mxu0 0.0
        %1711 = vmatpush1.msra.mxu0 0.0
        %1712 = vmatprep.subr.mxu0 0.0
        %1713 = vmatpush1.msra.mxu0 0.0
        %1714 = vmatprep.subr.mxu0 0.0
        %1715 = vmatpush1.msra.mxu0 0.0
        %1716 = vmatprep.subr.mxu0 0.0
        %1717 = vmatpush1.msra.mxu0 0.0
        %1718 = vmatprep.subr.mxu0 0.0
        %1719 = vmatpush1.msra.mxu0 0.0
        %1720 = vmatprep.subr.mxu0 0.0
        %1721 = vmatpush1.msra.mxu0 0.0
        %1722 = vmatprep.subr.mxu0 0.0
        %1723 = vmatpush1.msra.mxu0 0.0
        %1724 = vmatprep.subr.mxu0 0.0
        %1725 = vmatpush1.msra.mxu0 0.0
        %1726 = vmatprep.mubr.f32.mxu0 0.0
        %1727 = vmatmul.mubr.f32.gmra.mrb[0].mxu0 %v1660
        %v1728 = vpop.f32.mrb[0].mxu0
        %v1729 = vadd.f32 0.0, %v1728
        %v1730 = vpop.f32.mrb[0].mxu0
        %1731 = vdwg.mxu0
        %v1733 = vsel %vm1233, %v1580, 0
        %1735 = vmatprep.subr.mxu0 0.0
        %1736 = vmatpush1.msra.mxu0 %v1231
        %1737 = vmatprep.subr.mxu0 0.0
        %1738 = vmatpush1.msra.mxu0 0.0
        %1739 = vmatprep.subr.mxu0 0.0
        %1740 = vmatpush1.msra.mxu0 0.0
        %1741 = vmatprep.subr.mxu0 0.0
        %1742 = vmatpush1.msra.mxu0 0.0
        %1743 = vmatprep.subr.mxu0 0.0
        %1744 = vmatpush1.msra.mxu0 0.0
        %1745 = vmatprep.subr.mxu0 0.0
        %1746 = vmatpush1.msra.mxu0 0.0
        %1747 = vmatprep.subr.mxu0 0.0
        %1748 = vmatpush1.msra.mxu0 0.0
        %1749 = vmatprep.subr.mxu0 0.0
        %1750 = vmatpush1.msra.mxu0 0.0
        %1751 = vmatprep.subr.mxu0 0.0
        %1752 = vmatpush1.msra.mxu0 0.0
        %1753 = vmatprep.subr.mxu0 0.0
        %1754 = vmatpush1.msra.mxu0 0.0
        %1755 = vmatprep.subr.mxu0 0.0
        %1756 = vmatpush1.msra.mxu0 0.0
        %1757 = vmatprep.subr.mxu0 0.0
        %1758 = vmatpush1.msra.mxu0 0.0
        %1759 = vmatprep.subr.mxu0 0.0
        %1760 = vmatpush1.msra.mxu0 0.0
        %1761 = vmatprep.subr.mxu0 0.0
        %1762 = vmatpush1.msra.mxu0 0.0
        %1763 = vmatprep.subr.mxu0 0.0
        %1764 = vmatpush1.msra.mxu0 0.0
        %1765 = vmatprep.subr.mxu0 0.0
        %1766 = vmatpush1.msra.mxu0 0.0
        %1767 = vmatprep.subr.mxu0 0.0
        %1768 = vmatpush1.msra.mxu0 0.0
        %1769 = vmatprep.subr.mxu0 0.0
        %1770 = vmatpush1.msra.mxu0 0.0
        %1771 = vmatprep.subr.mxu0 0.0
        %1772 = vmatpush1.msra.mxu0 0.0
        %1773 = vmatprep.subr.mxu0 0.0
        %1774 = vmatpush1.msra.mxu0 0.0
        %1775 = vmatprep.subr.mxu0 0.0
        %1776 = vmatpush1.msra.mxu0 0.0
        %1777 = vmatprep.subr.mxu0 0.0
        %1778 = vmatpush1.msra.mxu0 0.0
        %1779 = vmatprep.subr.mxu0 0.0
        %1780 = vmatpush1.msra.mxu0 0.0
        %1781 = vmatprep.subr.mxu0 0.0
        %1782 = vmatpush1.msra.mxu0 0.0
        %1783 = vmatprep.subr.mxu0 0.0
        %1784 = vmatpush1.msra.mxu0 0.0
        %1785 = vmatprep.subr.mxu0 0.0
        %1786 = vmatpush1.msra.mxu0 0.0
        %1787 = vmatprep.subr.mxu0 0.0
        %1788 = vmatpush1.msra.mxu0 0.0
        %1789 = vmatprep.subr.mxu0 0.0
        %1790 = vmatpush1.msra.mxu0 0.0
        %1791 = vmatprep.subr.mxu0 0.0
        %1792 = vmatpush1.msra.mxu0 0.0
        %1793 = vmatprep.subr.mxu0 0.0
        %1794 = vmatpush1.msra.mxu0 0.0
        %1795 = vmatprep.subr.mxu0 0.0
        %1796 = vmatpush1.msra.mxu0 0.0
        %1797 = vmatprep.subr.mxu0 0.0
        %1798 = vmatpush1.msra.mxu0 0.0
        %1799 = vmatprep.mubr.f32.mxu0 0.0
        %1800 = vmatmul.mubr.f32.gmra.mrb[0].mxu0 %v1733
        %v1801 = vpop.f32.mrb[0].mxu0
        %v1802 = vadd.f32 0.0, %v1801
        %v1803 = vpop.f32.mrb[0].mxu0
        %1804 = vdwg.mxu0
        %v1806 = vsel %vm1233, %v1581, 0
        %1808 = vmatprep.subr.mxu0 0.0
        %1809 = vmatpush1.msra.mxu0 %v1232
        %1810 = vmatprep.subr.mxu0 0.0
        %1811 = vmatpush1.msra.mxu0 0.0
        %1812 = vmatprep.subr.mxu0 0.0
        %1813 = vmatpush1.msra.mxu0 0.0
        %1814 = vmatprep.subr.mxu0 0.0
        %1815 = vmatpush1.msra.mxu0 0.0
        %1816 = vmatprep.subr.mxu0 0.0
        %1817 = vmatpush1.msra.mxu0 0.0
        %1818 = vmatprep.subr.mxu0 0.0
        %1819 = vmatpush1.msra.mxu0 0.0
        %1820 = vmatprep.subr.mxu0 0.0
        %1821 = vmatpush1.msra.mxu0 0.0
        %1822 = vmatprep.subr.mxu0 0.0
        %1823 = vmatpush1.msra.mxu0 0.0
        %1824 = vmatprep.subr.mxu0 0.0
        %1825 = vmatpush1.msra.mxu0 0.0
        %1826 = vmatprep.subr.mxu0 0.0
        %1827 = vmatpush1.msra.mxu0 0.0
        %1828 = vmatprep.subr.mxu0 0.0
        %1829 = vmatpush1.msra.mxu0 0.0
        %1830 = vmatprep.subr.mxu0 0.0
        %1831 = vmatpush1.msra.mxu0 0.0
        %1832 = vmatprep.subr.mxu0 0.0
        %1833 = vmatpush1.msra.mxu0 0.0
        %1834 = vmatprep.subr.mxu0 0.0
        %1835 = vmatpush1.msra.mxu0 0.0
        %1836 = vmatprep.subr.mxu0 0.0
        %1837 = vmatpush1.msra.mxu0 0.0
        %1838 = vmatprep.subr.mxu0 0.0
        %1839 = vmatpush1.msra.mxu0 0.0
        %1840 = vmatprep.subr.mxu0 0.0
        %1841 = vmatpush1.msra.mxu0 0.0
        %1842 = vmatprep.subr.mxu0 0.0
        %1843 = vmatpush1.msra.mxu0 0.0
        %1844 = vmatprep.subr.mxu0 0.0
        %1845 = vmatpush1.msra.mxu0 0.0
        %1846 = vmatprep.subr.mxu0 0.0
        %1847 = vmatpush1.msra.mxu0 0.0
        %1848 = vmatprep.subr.mxu0 0.0
        %1849 = vmatpush1.msra.mxu0 0.0
        %1850 = vmatprep.subr.mxu0 0.0
        %1851 = vmatpush1.msra.mxu0 0.0
        %1852 = vmatprep.subr.mxu0 0.0
        %1853 = vmatpush1.msra.mxu0 0.0
        %1854 = vmatprep.subr.mxu0 0.0
        %1855 = vmatpush1.msra.mxu0 0.0
        %1856 = vmatprep.subr.mxu0 0.0
        %1857 = vmatpush1.msra.mxu0 0.0
        %1858 = vmatprep.subr.mxu0 0.0
        %1859 = vmatpush1.msra.mxu0 0.0
        %1860 = vmatprep.subr.mxu0 0.0
        %1861 = vmatpush1.msra.mxu0 0.0
        %1862 = vmatprep.subr.mxu0 0.0
        %1863 = vmatpush1.msra.mxu0 0.0
        %1864 = vmatprep.subr.mxu0 0.0
        %1865 = vmatpush1.msra.mxu0 0.0
        %1866 = vmatprep.subr.mxu0 0.0
        %1867 = vmatpush1.msra.mxu0 0.0
        %1868 = vmatprep.subr.mxu0 0.0
        %1869 = vmatpush1.msra.mxu0 0.0
        %1870 = vmatprep.subr.mxu0 0.0
        %1871 = vmatpush1.msra.mxu0 0.0
        %1872 = vmatprep.mubr.f32.mxu0 0.0
        %1873 = vmatmul.mubr.f32.gmra.mrb[0].mxu0 %v1806
        %v1874 = vpop.f32.mrb[0].mxu0
        %v1875 = vadd.f32 0.0, %v1874
        %v1876 = vpop.f32.mrb[0].mxu0
        %1877 = vdwg.mxu0
        %v1878 = vcombine.low %v1656, %v1802
        %v1879 = vcombine.high %v1656, %v1802
        %v1881 = vunpack.c.l.s4 1983009808
        %v1882 = vunpack.c.0.s8 %v1881
        %v1883 = vlaneseq
        %v1884 = vshrl.u32 %v1883, 7
        %v1885 = vsub.s32 %v1882, %v1884
        %v1886 = vrot.slane %v1878, %v1885
        %v1888 = vunpack.c.l.s4 1983009808
        %v1889 = vunpack.c.0.s8 %v1888
        %v1890 = vlaneseq
        %v1891 = vshrl.u32 %v1890, 7
        %v1892 = vsub.s32 %v1889, %v1891
        %v1893 = vrot.slane %v1879, %v1892
        %v1894 = vcombine.low %v1729, %v1875
        %v1895 = vcombine.high %v1729, %v1875
        %v1897 = vunpack.c.l.s4 1983009808
        %v1898 = vunpack.c.0.s8 %v1897
        %v1899 = vlaneseq
        %v1900 = vshrl.u32 %v1899, 7
        %v1901 = vsub.s32 %v1898, %v1900
        %v1902 = vrot.slane %v1894, %v1901
        %v1904 = vunpack.c.l.s4 1983009808
        %v1905 = vunpack.c.0.s8 %v1904
        %v1906 = vlaneseq
        %v1907 = vshrl.u32 %v1906, 7
        %v1908 = vsub.s32 %v1905, %v1907
        %v1909 = vrot.slane %v1895, %v1908
        %v1910 = vcombine.low %v1886, %v1902
        %v1911 = vcombine.high %v1886, %v1902
        %v1913 = vunpack.c.l.s4 1934713408
        %v1914 = vunpack.c.0.s8 %v1913
        %v1915 = vlaneseq
        %v1916 = vshrl.u32 %v1915, 7
        %v1917 = vsub.s32 %v1914, %v1916
        %v1918 = vrot.slane %v1910, %v1917
        %v1920 = vunpack.c.l.s4 1934713408
        %v1921 = vunpack.c.0.s8 %v1920
        %v1922 = vlaneseq
        %v1923 = vshrl.u32 %v1922, 7
        %v1924 = vsub.s32 %v1921, %v1923
        %v1925 = vrot.slane %v1911, %v1924
        %v1926 = vcombine.low %v1893, %v1909
        %v1927 = vcombine.high %v1893, %v1909
        %v1929 = vunpack.c.l.s4 1934713408
        %v1930 = vunpack.c.0.s8 %v1929
        %v1931 = vlaneseq
        %v1932 = vshrl.u32 %v1931, 7
        %v1933 = vsub.s32 %v1930, %v1932
        %v1934 = vrot.slane %v1926, %v1933
        %v1936 = vunpack.c.l.s4 1934713408
        %v1937 = vunpack.c.0.s8 %v1936
        %v1938 = vlaneseq
        %v1939 = vshrl.u32 %v1938, 7
        %v1940 = vsub.s32 %v1937, %v1939
        %v1941 = vrot.slane %v1927, %v1940
        %v1942 = vcombine.high %v1918, 0.0
        %v1943 = vcombine.high %v1925, 0.0
        %v1944 = vcombine.high %v1934, 0.0
        %v1945 = vcombine.high %v1941, 0.0
        %v1946 = vcombine.low %v1918, %v1925
        %v1948 = vunpack.c.l.s4 1983009808
        %v1949 = vunpack.c.0.s8 %v1948
        %v1950 = vlaneseq
        %v1951 = vshrl.u32 %v1950, 7
        %v1952 = vsub.s32 %v1949, %v1951
        %v1953 = vrot.slane %v1946, %v1952
        %v1954 = vcombine.low %v1942, %v1943
        %v1956 = vunpack.c.l.s4 1983009808
        %v1957 = vunpack.c.0.s8 %v1956
        %v1958 = vlaneseq
        %v1959 = vshrl.u32 %v1958, 7
        %v1960 = vsub.s32 %v1957, %v1959
        %v1961 = vrot.slane %v1954, %v1960
        %v1962 = vcombine.low %v1934, %v1941
        %v1964 = vunpack.c.l.s4 1983009808
        %v1965 = vunpack.c.0.s8 %v1964
        %v1966 = vlaneseq
        %v1967 = vshrl.u32 %v1966, 7
        %v1968 = vsub.s32 %v1965, %v1967
        %v1969 = vrot.slane %v1962, %v1968
        %v1970 = vcombine.low %v1944, %v1945
        %v1972 = vunpack.c.l.s4 1983009808
        %v1973 = vunpack.c.0.s8 %v1972
        %v1974 = vlaneseq
        %v1975 = vshrl.u32 %v1974, 7
        %v1976 = vsub.s32 %v1973, %v1975
        %v1977 = vrot.slane %v1970, %v1976
        %v1978 = vcombine.low %v1953, %v1961
        %v1979 = vcombine.high %v1953, %v1961
        %v1981 = vunpack.c.l.s4 1934713408
        %v1982 = vunpack.c.0.s8 %v1981
        %v1983 = vlaneseq
        %v1984 = vshrl.u32 %v1983, 7
        %v1985 = vsub.s32 %v1982, %v1984
        %v1986 = vrot.slane %v1978, %v1985
        %v1988 = vunpack.c.l.s4 1934713408
        %v1989 = vunpack.c.0.s8 %v1988
        %v1990 = vlaneseq
        %v1991 = vshrl.u32 %v1990, 7
        %v1992 = vsub.s32 %v1989, %v1991
        %v1993 = vrot.slane %v1979, %v1992
        %v1994 = vcombine.low %v1969, %v1977
        %v1995 = vcombine.high %v1969, %v1977
        %v1997 = vunpack.c.l.s4 1934713408
        %v1998 = vunpack.c.0.s8 %v1997
        %v1999 = vlaneseq
        %v2000 = vshrl.u32 %v1999, 7
        %v2001 = vsub.s32 %v1998, %v2000
        %v2002 = vrot.slane %v1994, %v2001
        %v2004 = vunpack.c.l.s4 1934713408
        %v2005 = vunpack.c.0.s8 %v2004
        %v2006 = vlaneseq
        %v2007 = vshrl.u32 %v2006, 7
        %v2008 = vsub.s32 %v2005, %v2007
        %v2009 = vrot.slane %v1995, %v2008
        %v2010 = vcombine.low %v1986, %v2002
        %v2011 = vcombine.high %v1986, %v2002
        %v2012 = vcombine.low %v1993, %v2009
        %v2013 = vcombine.high %v1993, %v2009
        %2015 = vrot.lane.b32.xlu0 %v2011, 8
        %v2016 = vpop.permute.xlu0 %2015
        %2019 = vrot.lane.b32.xlu0 %v2012, 16
        %v2020 = vpop.permute.xlu0 %2019
        %2023 = vrot.lane.b32.xlu0 %v2013, 24
        %v2024 = vpop.permute.xlu0 %2023
        %v2026 = vsel %vm1233, %v2010, %v2016
        %vm2027 = vcmask 130048
        %v2028 = vsel %vm2027, %v2026, %v2020
        %vm2029 = vcmask 195584
        %v2030 = vsel %vm2029, %v2028, %v2024
        %v2031 = vld [vmem:[#allocation7] sm:$0xff]
        %v2032 = vld [vmem:[#allocation7 + $0x8] sm:$0xff]
        %v2033 = vld [vmem:[#allocation7 + $0x10] sm:$0xff]
        %v2034 = vld [vmem:[#allocation7 + $0x18] sm:$0xff]
        %v2036 = vsel %vm718, %v2030, 0
        %2038 = vmatprep.subr.mxu0 0.0
        %2039 = vmatpush1.msra.mxu0 %v2031
        %2040 = vmatprep.subr.mxu0 0.0
        %2041 = vmatpush1.msra.mxu0 %v2032
        %2042 = vmatprep.subr.mxu0 0.0
        %2043 = vmatpush1.msra.mxu0 %v2033
        %2044 = vmatprep.subr.mxu0 0.0
        %2045 = vmatpush1.msra.mxu0 %v2034
        %2046 = vmatprep.subr.mxu0 0.0
        %2047 = vmatpush1.msra.mxu0 0.0
        %2048 = vmatprep.subr.mxu0 0.0
        %2049 = vmatpush1.msra.mxu0 0.0
        %2050 = vmatprep.subr.mxu0 0.0
        %2051 = vmatpush1.msra.mxu0 0.0
        %2052 = vmatprep.subr.mxu0 0.0
        %2053 = vmatpush1.msra.mxu0 0.0
        %2054 = vmatprep.subr.mxu0 0.0
        %2055 = vmatpush1.msra.mxu0 0.0
        %2056 = vmatprep.subr.mxu0 0.0
        %2057 = vmatpush1.msra.mxu0 0.0
        %2058 = vmatprep.subr.mxu0 0.0
        %2059 = vmatpush1.msra.mxu0 0.0
        %2060 = vmatprep.subr.mxu0 0.0
        %2061 = vmatpush1.msra.mxu0 0.0
        %2062 = vmatprep.subr.mxu0 0.0
        %2063 = vmatpush1.msra.mxu0 0.0
        %2064 = vmatprep.subr.mxu0 0.0
        %2065 = vmatpush1.msra.mxu0 0.0
        %2066 = vmatprep.subr.mxu0 0.0
        %2067 = vmatpush1.msra.mxu0 0.0
        %2068 = vmatprep.subr.mxu0 0.0
        %2069 = vmatpush1.msra.mxu0 0.0
        %2070 = vmatprep.subr.mxu0 0.0
        %2071 = vmatpush1.msra.mxu0 0.0
        %2072 = vmatprep.subr.mxu0 0.0
        %2073 = vmatpush1.msra.mxu0 0.0
        %2074 = vmatprep.subr.mxu0 0.0
        %2075 = vmatpush1.msra.mxu0 0.0
        %2076 = vmatprep.subr.mxu0 0.0
        %2077 = vmatpush1.msra.mxu0 0.0
        %2078 = vmatprep.subr.mxu0 0.0
        %2079 = vmatpush1.msra.mxu0 0.0
        %2080 = vmatprep.subr.mxu0 0.0
        %2081 = vmatpush1.msra.mxu0 0.0
        %2082 = vmatprep.subr.mxu0 0.0
        %2083 = vmatpush1.msra.mxu0 0.0
        %2084 = vmatprep.subr.mxu0 0.0
        %2085 = vmatpush1.msra.mxu0 0.0
        %2086 = vmatprep.subr.mxu0 0.0
        %2087 = vmatpush1.msra.mxu0 0.0
        %2088 = vmatprep.subr.mxu0 0.0
        %2089 = vmatpush1.msra.mxu0 0.0
        %2090 = vmatprep.subr.mxu0 0.0
        %2091 = vmatpush1.msra.mxu0 0.0
        %2092 = vmatprep.subr.mxu0 0.0
        %2093 = vmatpush1.msra.mxu0 0.0
        %2094 = vmatprep.subr.mxu0 0.0
        %2095 = vmatpush1.msra.mxu0 0.0
        %2096 = vmatprep.subr.mxu0 0.0
        %2097 = vmatpush1.msra.mxu0 0.0
        %2098 = vmatprep.subr.mxu0 0.0
        %2099 = vmatpush1.msra.mxu0 0.0
        %2100 = vmatprep.subr.mxu0 0.0
        %2101 = vmatpush1.msra.mxu0 0.0
        %2102 = vmatprep.mubr.f32.mxu0 0.0
        %2103 = vmatmul.mubr.f32.gmra.mrb[0].mxu0 %v2036
        %v2104 = vpop.f32.mrb[0].mxu0
        %v2105 = vadd.f32 %v713, %v2104
        %v2106 = vpop.f32.mrb[0].mxu0
        %2107 = vdwg.mxu0
        %v2108 = vsel %vm718, %v2105, 0.0
        %2109 = vadd.xlane.f32.xlu0 %v2108
        %v2110 = vpop.xlane.xlu0 %2109
        %v2111 = vrcp.pop 32.0
        %v2112 = vmul.f32 %v2110, %v2111
        %v2113 = vsub.f32 %v2105, %v2112
        %v2114 = vmul.f32 %v2113, %v2113
        %v2115 = vsel %vm718, %v2114, 0.0
        %2116 = vadd.xlane.f32.xlu0 %v2115
        %v2117 = vpop.xlane.xlu0 %2116
        %v2118 = vmul.f32 %v2117, %v2111
        %v2119 = vadd.f32 %v2118, 1e-06
        %v2120 = vrsqrt.pop %v2119
        %v2121 = vmul.f32 %v2113, %v2120
        %v2122 = vld [vmem:[%s5] sm:$0x1]
        %v2124 = vlaneseq
        %v2125 = vshrl.u32 %v2124, 7
        %v2126 = vsub.s32 0, %v2125
        %v2127 = vrot.slane %v2122, %v2126
        %v2129 = vmul.f32 %v2121, %v2127
        %v2130 = vld [vmem:[%s6] sm:$0x1]
        %v2132 = vlaneseq
        %v2133 = vshrl.u32 %v2132, 7
        %v2134 = vsub.s32 0, %v2133
        %v2135 = vrot.slane %v2130, %v2134
        %v2137 = vadd.f32 %v2129, %v2135
        %v2138 = vld [vmem:[#allocation9] sm:$0xff]
        %v2139 = vld [vmem:[#allocation9 + $0x8] sm:$0xff]
        %v2140 = vld [vmem:[#allocation9 + $0x10] sm:$0xff]
        %v2141 = vld [vmem:[#allocation9 + $0x18] sm:$0xff]
        %v2142 = vld [vmem:[#allocation10] sm:$0x1]
        %v2144 = vlaneseq
        %v2145 = vshrl.u32 %v2144, 7
        %v2146 = vsub.s32 0, %v2145
        %v2147 = vrot.slane %v2142, %v2146
        %v2150 = vsel %vm718, %v2137, 0
        %2152 = vmatprep.subr.mxu0 0.0
        %2153 = vmatpush1.msra.mxu0 %v2138
        %2154 = vmatprep.subr.mxu0 0.0
        %2155 = vmatpush1.msra.mxu0 %v2139
        %2156 = vmatprep.subr.mxu0 0.0
        %2157 = vmatpush1.msra.mxu0 %v2140
        %2158 = vmatprep.subr.mxu0 0.0
        %2159 = vmatpush1.msra.mxu0 %v2141
        %2160 = vmatprep.subr.mxu0 0.0
        %2161 = vmatpush1.msra.mxu0 0.0
        %2162 = vmatprep.subr.mxu0 0.0
        %2163 = vmatpush1.msra.mxu0 0.0
        %2164 = vmatprep.subr.mxu0 0.0
        %2165 = vmatpush1.msra.mxu0 0.0
        %2166 = vmatprep.subr.mxu0 0.0
        %2167 = vmatpush1.msra.mxu0 0.0
        %2168 = vmatprep.subr.mxu0 0.0
        %2169 = vmatpush1.msra.mxu0 0.0
        %2170 = vmatprep.subr.mxu0 0.0
        %2171 = vmatpush1.msra.mxu0 0.0
        %2172 = vmatprep.subr.mxu0 0.0
        %2173 = vmatpush1.msra.mxu0 0.0
        %2174 = vmatprep.subr.mxu0 0.0
        %2175 = vmatpush1.msra.mxu0 0.0
        %2176 = vmatprep.subr.mxu0 0.0
        %2177 = vmatpush1.msra.mxu0 0.0
        %2178 = vmatprep.subr.mxu0 0.0
        %2179 = vmatpush1.msra.mxu0 0.0
        %2180 = vmatprep.subr.mxu0 0.0
        %2181 = vmatpush1.msra.mxu0 0.0
        %2182 = vmatprep.subr.mxu0 0.0
        %2183 = vmatpush1.msra.mxu0 0.0
        %2184 = vmatprep.subr.mxu0 0.0
        %2185 = vmatpush1.msra.mxu0 0.0
        %2186 = vmatprep.subr.mxu0 0.0
        %2187 = vmatpush1.msra.mxu0 0.0
        %2188 = vmatprep.subr.mxu0 0.0
        %2189 = vmatpush1.msra.mxu0 0.0
        %2190 = vmatprep.subr.mxu0 0.0
        %2191 = vmatpush1.msra.mxu0 0.0
        %2192 = vmatprep.subr.mxu0 0.0
        %2193 = vmatpush1.msra.mxu0 0.0
        %2194 = vmatprep.subr.mxu0 0.0
        %2195 = vmatpush1.msra.mxu0 0.0
        %2196 = vmatprep.subr.mxu0 0.0
        %2197 = vmatpush1.msra.mxu0 0.0
        %2198 = vmatprep.subr.mxu0 0.0
        %2199 = vmatpush1.msra.mxu0 0.0
        %2200 = vmatprep.subr.mxu0 0.0
        %2201 = vmatpush1.msra.mxu0 0.0
        %2202 = vmatprep.subr.mxu0 0.0
        %2203 = vmatpush1.msra.mxu0 0.0
        %2204 = vmatprep.subr.mxu0 0.0
        %2205 = vmatpush1.msra.mxu0 0.0
        %2206 = vmatprep.subr.mxu0 0.0
        %2207 = vmatpush1.msra.mxu0 0.0
        %2208 = vmatprep.subr.mxu0 0.0
        %2209 = vmatpush1.msra.mxu0 0.0
        %2210 = vmatprep.subr.mxu0 0.0
        %2211 = vmatpush1.msra.mxu0 0.0
        %2212 = vmatprep.subr.mxu0 0.0
        %2213 = vmatpush1.msra.mxu0 0.0
        %2214 = vmatprep.subr.mxu0 0.0
        %2215 = vmatpush1.msra.mxu0 0.0
        %2216 = vmatprep.mubr.f32.mxu0 0.0
        %2217 = vmatmul.mubr.f32.gmra.mrb[0].mxu0 %v2150
        %v2218 = vpop.f32.mrb[0].mxu0
        %v2219 = vadd.f32 %v2147, %v2218
        %v2220 = vpop.f32.mrb[0].mxu0
        %2221 = vdwg.mxu0
        %v2222 = vmax.f32 %v2219, 0.0
        %v2223 = vld [vmem:[%s9] sm:$0xff]
        %v2224 = vld [vmem:[%s9 + $0x8] sm:$0xff]
        %v2225 = vld [vmem:[%s9 + $0x10] sm:$0xff]
        %v2226 = vld [vmem:[%s9 + $0x18] sm:$0xff]
        %v2227 = vld [vmem:[%s9 + $0x20] sm:$0xff]
        %v2228 = vld [vmem:[%s9 + $0x28] sm:$0xff]
        %v2229 = vld [vmem:[%s9 + $0x30] sm:$0xff]
        %v2230 = vld [vmem:[%s9 + $0x38] sm:$0xff]
        %v2231 = vld [vmem:[%s10] sm:$0x1]
        %v2233 = vlaneseq
        %v2234 = vshrl.u32 %v2233, 7
        %v2235 = vsub.s32 0, %v2234
        %v2236 = vrot.slane %v2231, %v2235
        %vm2238 = vcmask 523264
        %v2240 = vsel %vm2238, %v2222, 0
        %2242 = vmatprep.subr.mxu0 0.0
        %2243 = vmatpush1.msra.mxu0 %v2223
        %2244 = vmatprep.subr.mxu0 0.0
        %2245 = vmatpush1.msra.mxu0 %v2224
        %2246 = vmatprep.subr.mxu0 0.0
        %2247 = vmatpush1.msra.mxu0 %v2225
        %2248 = vmatprep.subr.mxu0 0.0
        %2249 = vmatpush1.msra.mxu0 %v2226
        %2250 = vmatprep.subr.mxu0 0.0
        %2251 = vmatpush1.msra.mxu0 %v2227
        %2252 = vmatprep.subr.mxu0 0.0
        %2253 = vmatpush1.msra.mxu0 %v2228
        %2254 = vmatprep.subr.mxu0 0.0
        %2255 = vmatpush1.msra.mxu0 %v2229
        %2256 = vmatprep.subr.mxu0 0.0
        %2257 = vmatpush1.msra.mxu0 %v2230
        %2258 = vmatprep.subr.mxu0 0.0
        %2259 = vmatpush1.msra.mxu0 0.0
        %2260 = vmatprep.subr.mxu0 0.0
        %2261 = vmatpush1.msra.mxu0 0.0
        %2262 = vmatprep.subr.mxu0 0.0
        %2263 = vmatpush1.msra.mxu0 0.0
        %2264 = vmatprep.subr.mxu0 0.0
        %2265 = vmatpush1.msra.mxu0 0.0
        %2266 = vmatprep.subr.mxu0 0.0
        %2267 = vmatpush1.msra.mxu0 0.0
        %2268 = vmatprep.subr.mxu0 0.0
        %2269 = vmatpush1.msra.mxu0 0.0
        %2270 = vmatprep.subr.mxu0 0.0
        %2271 = vmatpush1.msra.mxu0 0.0
        %2272 = vmatprep.subr.mxu0 0.0
        %2273 = vmatpush1.msra.mxu0 0.0
        %2274 = vmatprep.subr.mxu0 0.0
        %2275 = vmatpush1.msra.mxu0 0.0
        %2276 = vmatprep.subr.mxu0 0.0
        %2277 = vmatpush1.msra.mxu0 0.0
        %2278 = vmatprep.subr.mxu0 0.0
        %2279 = vmatpush1.msra.mxu0 0.0
        %2280 = vmatprep.subr.mxu0 0.0
        %2281 = vmatpush1.msra.mxu0 0.0
        %2282 = vmatprep.subr.mxu0 0.0
        %2283 = vmatpush1.msra.mxu0 0.0
        %2284 = vmatprep.subr.mxu0 0.0
        %2285 = vmatpush1.msra.mxu0 0.0
        %2286 = vmatprep.subr.mxu0 0.0
        %2287 = vmatpush1.msra.mxu0 0.0
        %2288 = vmatprep.subr.mxu0 0.0
        %2289 = vmatpush1.msra.mxu0 0.0
        %2290 = vmatprep.subr.mxu0 0.0
        %2291 = vmatpush1.msra.mxu0 0.0
        %2292 = vmatprep.subr.mxu0 0.0
        %2293 = vmatpush1.msra.mxu0 0.0
        %2294 = vmatprep.subr.mxu0 0.0
        %2295 = vmatpush1.msra.mxu0 0.0
        %2296 = vmatprep.subr.mxu0 0.0
        %2297 = vmatpush1.msra.mxu0 0.0
        %2298 = vmatprep.subr.mxu0 0.0
        %2299 = vmatpush1.msra.mxu0 0.0
        %2300 = vmatprep.subr.mxu0 0.0
        %2301 = vmatpush1.msra.mxu0 0.0
        %2302 = vmatprep.subr.mxu0 0.0
        %2303 = vmatpush1.msra.mxu0 0.0
        %2304 = vmatprep.subr.mxu0 0.0
        %2305 = vmatpush1.msra.mxu0 0.0
        %2306 = vmatprep.mubr.f32.mxu0 0.0
        %2307 = vmatmul.mubr.f32.gmra.mrb[0].mxu0 %v2240
        %v2308 = vpop.f32.mrb[0].mxu0
        %v2309 = vadd.f32 %v2236, %v2308
        %v2310 = vpop.f32.mrb[0].mxu0
        %2311 = vdwg.mxu0
        %v2312 = vadd.f32 %v2309, %v2137
        %v2313 = vsel %vm718, %v2312, 0.0
        %2314 = vadd.xlane.f32.xlu0 %v2313
        %v2315 = vpop.xlane.xlu0 %2314
        %v2316 = vmul.f32 %v2315, %v2111
        %v2317 = vsub.f32 %v2312, %v2316
        %v2318 = vmul.f32 %v2317, %v2317
        %v2319 = vsel %vm718, %v2318, 0.0
        %2320 = vadd.xlane.f32.xlu0 %v2319
        %v2321 = vpop.xlane.xlu0 %2320
        %v2322 = vmul.f32 %v2321, %v2111
        %v2323 = vadd.f32 %v2322, 1e-06
        %v2324 = vrsqrt.pop %v2323
        %v2325 = vmul.f32 %v2317, %v2324
        %v2326 = vld [vmem:[%s11] sm:$0x1]
        %v2328 = vlaneseq
        %v2329 = vshrl.u32 %v2328, 7
        %v2330 = vsub.s32 0, %v2329
        %v2331 = vrot.slane %v2326, %v2330
        %v2333 = vmul.f32 %v2325, %v2331
        %v2334 = vld [vmem:[%s12] sm:$0x1]
        %v2336 = vlaneseq
        %v2337 = vshrl.u32 %v2336, 7
        %v2338 = vsub.s32 0, %v2337
        %v2339 = vrot.slane %v2334, %v2338
        %v2341 = vadd.f32 %v2333, %v2339
        %2342 = vst.msk [vmem:[%s544] sm:$0xff] %vm718, %v2341
        %s2343 = sand.u32 %s337, 1
        %s2344 = scalar_lea.sflag [#allocation6], %s2343
        %s2345 = sand.u32 %s337, 1
        %s2346 = smul.addr %s2345, 8
        %s2347 = scalar_lea.vmem [#allocation12], %s2346
        %s2348 = sand.u32 %s365, 1
        %s2349 = scalar_lea.sflag [#allocation14], %s2348
        %s2350 = sand.u32 %s365, 1
        %s2351 = smul.addr %s2350, 32
        %s2352 = scalar_lea.vmem [#allocation13], %s2351
        // Predicated region
        $region93: #{tpu_custom_call.1} parent=71 // pred_check
          %p2353 = pneg %p347
        $region94: #{tpu_custom_call.1} parent=71 // pred_check_branch
          %2355 = sbr.rel (%p2353) target = $region96
        $region95: #{tpu_custom_call.1} parent=71 // pred_region
          %s2357 = ssub.s32 128, 128
          %2358 = vsyncadd %s2344, %s2357
          %s2359 = sadd.s32 %s42, %s41
          %s2360 = smul.addr %s2359, 128
          %s2361 = scalar_lea.hbm %s13, %s2360
          %s2363 = sshll.u32 %s2347, 4
          %s2364 = int_to_ptr.vmem [resolvable:$true] %s2363
          %2366 = dma.vmem_to_hbm [thread:$0]  %s2364, 128, %s2361, %s2344
        $region96: #{tpu_custom_call.1} parent=71 // pred_fallthru
          _
        // Predicated region
        $region97: #{tpu_custom_call.1} parent=71 // pred_check
          %p2367 = pneg %p375
        $region98: #{tpu_custom_call.1} parent=71 // pred_check_branch
          %2369 = sbr.rel (%p2367) target = $region100
        $region99: #{tpu_custom_call.1} parent=71 // pred_region
          %s2371 = ssub.s32 512, 512
          %2372 = vsyncadd %s2349, %s2371
          %s2373 = smul.addr %s41, 4
          %s2374 = sadd.s32 %s42, %s2373
          %s2375 = smul.addr %s2374, 128
          %s2376 = scalar_lea.hbm %s14, %s2375
          %s2377 = sshll.u32 %s2352, 4
          %s2378 = int_to_ptr.vmem [resolvable:$true] %s2377
          %2383 = dma.vmem_to_hbm [thread:$0]  %s2378, 512, %s2376, %s2349, 128, 128, 8
        $region100: #{tpu_custom_call.1} parent=71 // pred_fallthru
          _
      $region72: #{tpu_custom_call.1} parent=5 // pred_fallthru
        _
      %p2384 = scmp.le.s32.totalorder 2, %s32
      // Predicated region
      $region101: #{tpu_custom_call.1} parent=5 // pred_check
        %p2385 = pneg %p2384
      $region102: #{tpu_custom_call.1} parent=5 // pred_check_branch
        %2387 = sbr.rel (%p2385) target = $region104
      $region103: #{tpu_custom_call.1} parent=5 // pred_region
        %s2388 = ssub.s32 %s32, 2
        // Predicated region
        $region105: #{tpu_custom_call.1} parent=103 // pred_check
          %p2389 = pneg %p353
        $region106: #{tpu_custom_call.1} parent=103 // pred_check_branch
          %2391 = sbr.rel (%p2389) target = $region108
        $region107: #{tpu_custom_call.1} parent=103 // pred_region
          %s2392 = sand.u32 %s338, 1
          %s2393 = scalar_lea.sflag [#allocation6], %s2392
          %s2394 = sand.u32 %s338, 1
          %s2395 = smul.addr %s2394, 8
          %s2396 = scalar_lea.vmem [#allocation12], %s2395
          %2397 = dma.done %s2393, 128
        $region108: #{tpu_custom_call.1} parent=103 // pred_fallthru
          _
        // Predicated region
        $region109: #{tpu_custom_call.1} parent=103 // pred_check
          %p2398 = pneg %p381
        $region110: #{tpu_custom_call.1} parent=103 // pred_check_branch
          %2400 = sbr.rel (%p2398) target = $region112
        $region111: #{tpu_custom_call.1} parent=103 // pred_region
          %s2401 = sand.u32 %s366, 1
          %s2402 = scalar_lea.sflag [#allocation14], %s2401
          %s2403 = sand.u32 %s366, 1
          %s2404 = smul.addr %s2403, 32
          %s2405 = scalar_lea.vmem [#allocation13], %s2404
          %2406 = dma.done %s2402, 512
        $region112: #{tpu_custom_call.1} parent=103 // pred_fallthru
          _
      $region104: #{tpu_custom_call.1} parent=5 // pred_fallthru
        _
    $region6: #{tpu_custom_call.1} parent=1 // loop_footer
      %s36 = sadd.s32 1, %s32
    $region7: #{tpu_custom_call.1} parent=1 // loop_footer_branch
      %31 = sbr.rel target = $region3
    $region8: #{tpu_custom_call.1} parent=1 // loop_exit
      _
    %2407 = vsyncpa [#allocation5], 1
    %s2408 = scalar_lea.sflag [#allocation5], 1
    %2409 = vsyncpa %s2408, 1
    %2410 = vsyncpa [#allocation8], 1
    %2411 = vsyncpa [#allocation11], 1
    %2412 = vsyncpa [#allocation6], 1
    %s2413 = scalar_lea.sflag [#allocation6], 1
    %2414 = vsyncpa %s2413, 1
    %2415 = vsyncpa [#allocation14], 1
    %s2416 = scalar_lea.sflag [#allocation14], 1
    %2417 = vsyncpa %s2416, 1

</llo_original>
